<compile_context>
chip_gen: v5e
topology: v5e:2x2
jax: 0.10.0
libtpu: 0.0.40
codegen_flags: <defaults>
</compile_context>

<pallas_src>
import jax
import jax.numpy as jnp
from jax.experimental import pallas as pl
from jax.experimental.pallas import tpu as pltpu


# ---------------------------------------------------------------------------
# Single fused kernel: conv1+relu+pool -> conv2+relu+pool -> conv3+relu+pool -> dense
# One grid step processes one image of the batch.
# ---------------------------------------------------------------------------
def _fused_forward_kernel(x_ref, w1_ref, b1_ref, w2_ref, b2_ref, w3_ref, b3_ref,
                          wd_ref, bd_ref, o_ref, flat1, flat2, flat3):
    _, H, W, Cin = x_ref.shape
    H1, W1 = H // 2, W // 2
    H2, W2 = H1 // 2, W1 // 2
    H3, W3 = H2 // 2, W2 // 2

    def store_padded(flat_ref, y_flat, hh, ww):
        # flat_ref: ((hh+4)*ww, C) scratch.  Rows are the (h, w) raster of the activation
        # with 2*ww zero rows on top and bottom (so every 3x3 tap below is a contiguous
        # slice).  Offsets / extents are multiples of 8 for ww in {16, 8, 4}.
        C = flat_ref.shape[-1]
        zeros = jnp.zeros((2 * ww, C), jnp.float32)
        flat_ref[0:2 * ww, :] = zeros
        flat_ref[2 * ww:(hh + 2) * ww, :] = y_flat
        flat_ref[(hh + 2) * ww:(hh + 4) * ww, :] = zeros

    def conv_relu_pool(flat_ref, w_ref, b_ref, hh, ww):
        # 3x3 SAME conv + bias + ReLU + 2x2/2 maxpool on a (hh, ww, Cin) activation stored
        # flat (with zero halo rows) in `flat_ref`.  Returns (hh//2 * ww//2, Cout) rows in
        # (h, w) raster order.
        cin = flat_ref.shape[-1]
        cout = w_ref.shape[-1]
        # per-row "w" coordinate, used to zero the taps that wrap across columns
        w_idx = jax.lax.broadcasted_iota(jnp.int32, (hh, ww, cin), 1).reshape(hh * ww, cin)
        acc = jnp.zeros((hh * ww, cout), jnp.float32)
        for dy in range(3):
            for dx in range(3):
                start = (dy + 1) * ww + (dx - 1)
                tap = flat_ref[start:start + hh * ww, :]
                if dx == 0:          # reads column w-1: invalid at w == 0
                    tap = jnp.where(w_idx >= 1, tap, 0.0)
                elif dx == 2:        # reads column w+1: invalid at w == ww-1
                    tap = jnp.where(w_idx <= ww - 2, tap, 0.0)
                acc = acc + jnp.dot(tap, w_ref[dy, dx],
                                    preferred_element_type=jnp.float32)
        acc = jnp.maximum(acc + b_ref[...], 0.0)                    # bias + ReLU
        acc = acc.reshape(hh, ww // 2, 2, cout).max(axis=2)         # pool over w
        acc = acc.reshape(hh // 2, 2, ww // 2, cout).max(axis=1)    # pool over h
        return acc.reshape((hh // 2) * (ww // 2), cout)

    # ---- layer 1 ----
    store_padded(flat1, x_ref[0].reshape(H * W, Cin), H, W)
    y1 = conv_relu_pool(flat1, w1_ref, b1_ref, H, W)                # (H1*W1, C1)
    # TODO(synk): nn.Dropout(0.1) is identity at inference; omitted (no RNG state).
    # ---- layer 2 ----
    store_padded(flat2, y1, H1, W1)
    y2 = conv_relu_pool(flat2, w2_ref, b2_ref, H1, W1)              # (H2*W2, C2)
    # ---- layer 3 ----
    store_padded(flat3, y2, H2, W2)
    y3 = conv_relu_pool(flat3, w3_ref, b3_ref, H2, W2)              # (H3*W3, C3)

    # ---- fused dense tail: logits = flatten(y3) @ wd + bd ----
    # The PyTorch (c, h, w) flatten order is already folded into wd_ref, which has shape
    # (H3*W3, C3, 10), so row p of y3 multiplies weight slab wd_ref[p].
    out = bd_ref[...].astype(jnp.float32)                           # (1, 10)
    for p in range(H3 * W3):
        out = out + jnp.dot(y3[p:p + 1, :], wd_ref[p],
                            preferred_element_type=jnp.float32)
    o_ref[0] = out.astype(o_ref.dtype)


# ---------------------------------------------------------------------------
# Full forward (matches Network_classification.forward)
# ---------------------------------------------------------------------------
def network_classification_forward(x_nchw, params):
    x = jnp.transpose(x_nchw, (0, 2, 3, 1))         # NCHW -> NHWC (channels on lanes)
    B, H, W, Cin = x.shape
    w1, w2, w3 = params["w1"], params["w2"], params["w3"]
    C1, C2, C3 = w1.shape[-1], w2.shape[-1], w3.shape[-1]
    H3, W3 = H // 8, W // 8
    n_out = params["wd"].shape[-1]

    # Fold the PyTorch NCHW flatten order (c, h, w) into the dense weight (trace-time only)
    # so the kernel consumes the (h, w, c)-ordered activation directly.
    wd = params["wd"].reshape(C3, H3 * W3, n_out).transpose(1, 0, 2)   # (H3*W3, C3, 10)
    bd = params["bd"].reshape(1, n_out)

    out = pl.pallas_call(
        _fused_forward_kernel,
        out_shape=jax.ShapeDtypeStruct((B, 1, n_out), x.dtype),
        grid_spec=pltpu.PrefetchScalarGridSpec(
            num_scalar_prefetch=0,
            grid=(B,),
            in_specs=[
                pl.BlockSpec((1, H, W, Cin), lambda i: (i, 0, 0, 0)),
                pl.BlockSpec((3, 3, Cin, C1), lambda i: (0, 0, 0, 0)),
                pl.BlockSpec((1, C1), lambda i: (0, 0)),
                pl.BlockSpec((3, 3, C1, C2), lambda i: (0, 0, 0, 0)),
                pl.BlockSpec((1, C2), lambda i: (0, 0)),
                pl.BlockSpec((3, 3, C2, C3), lambda i: (0, 0, 0, 0)),
                pl.BlockSpec((1, C3), lambda i: (0, 0)),
                pl.BlockSpec((H3 * W3, C3, n_out), lambda i: (0, 0, 0)),
                pl.BlockSpec((1, n_out), lambda i: (0, 0)),
            ],
            out_specs=pl.BlockSpec((1, 1, n_out), lambda i: (i, 0, 0)),
            scratch_shapes=[
                pltpu.VMEM(((H + 4) * W, Cin), jnp.float32),
                pltpu.VMEM(((H // 2 + 4) * (W // 2), C1), jnp.float32),
                pltpu.VMEM(((H // 4 + 4) * (W // 4), C2), jnp.float32),
            ],
        ),
        compiler_params=pltpu.CompilerParams(
            dimension_semantics=("parallel",)),
    )(x, w1, params["b1"].reshape(1, C1),
      w2, params["b2"].reshape(1, C2),
      w3, params["b3"].reshape(1, C3),
      wd, bd)
    return out.reshape(B, n_out)


# ---------------------------------------------------------------------------
# Pure-JAX reference for validation.
# ---------------------------------------------------------------------------
def reference_forward(x_nchw, params):
    x = jnp.transpose(x_nchw, (0, 2, 3, 1))

    def block(x, w, b):
        y = jax.lax.conv_general_dilated(
            x, w, window_strides=(1, 1), padding="SAME",
            dimension_numbers=("NHWC", "HWIO", "NHWC"))
        y = jnp.maximum(y + b[None, None, None, :], 0.0)
        y = jax.lax.reduce_window(y, -jnp.inf, jax.lax.max,
                                  (1, 2, 2, 1), (1, 2, 2, 1), "VALID")
        return y

    x = block(x, params["w1"], params["b1"])
    x = block(x, params["w2"], params["b2"])
    x = block(x, params["w3"], params["b3"])
    x = jnp.transpose(x, (0, 3, 1, 2)).reshape(x.shape[0], -1)   # NCHW flatten order
    return x @ params["wd"] + params["bd"]


def init_params(key, cin, h, w):
    conv_layers = [8, 16, 32]
    dense_input = (h // 8) * (w // 8) * conv_layers[-1]
    ks = jax.random.split(key, 8)
    return {
        "w1": 0.1 * jax.random.normal(ks[0], (3, 3, cin, conv_layers[0]), jnp.float32),
        "b1": 0.1 * jax.random.normal(ks[1], (conv_layers[0],), jnp.float32),
        "w2": 0.1 * jax.random.normal(ks[2], (3, 3, conv_layers[0], conv_layers[1]), jnp.float32),
        "b2": 0.1 * jax.random.normal(ks[3], (conv_layers[1],), jnp.float32),
        "w3": 0.1 * jax.random.normal(ks[4], (3, 3, conv_layers[1], conv_layers[2]), jnp.float32),
        "b3": 0.1 * jax.random.normal(ks[5], (conv_layers[2],), jnp.float32),
        "wd": 0.1 * jax.random.normal(ks[6], (dense_input, 10), jnp.float32),
        "bd": 0.1 * jax.random.normal(ks[7], (10,), jnp.float32),
    }


if __name__ == "__main__":
    key = jax.random.PRNGKey(0)
    k_x, k_p = jax.random.split(key)

    B, C, H, W = 2, 4, 16, 16          # shape arg to the module: (4, 16, 16)
    x = jax.random.normal(k_x, (B, C, H, W), jnp.float32)
    params = init_params(k_p, C, H, W)

    out = jax.jit(network_classification_forward)(x, params)
    out = jax.block_until_ready(out)
    assert out.shape == (B, 10), out.shape

    ref = reference_forward(x, params)
    assert jnp.allclose(out, ref, rtol=1e-4, atol=1e-4), (
        float(jnp.max(jnp.abs(out - ref))))

    print("KERNEL_OK")
</pallas_src>

<mosaic_0001>
module attributes {stable_mosaic.version = 11 : i64} {
  func.func @_fused_forward_kernel(%arg0: i32, %arg1: memref<1x16x16x4xf32, #tpu.memory_space<vmem>>, %arg2: memref<3x3x4x8xf32, #tpu.memory_space<vmem>>, %arg3: memref<1x8xf32, #tpu.memory_space<vmem>>, %arg4: memref<3x3x8x16xf32, #tpu.memory_space<vmem>>, %arg5: memref<1x16xf32, #tpu.memory_space<vmem>>, %arg6: memref<3x3x16x32xf32, #tpu.memory_space<vmem>>, %arg7: memref<1x32xf32, #tpu.memory_space<vmem>>, %arg8: memref<4x32x10xf32, #tpu.memory_space<vmem>>, %arg9: memref<1x10xf32, #tpu.memory_space<vmem>>, %arg10: memref<1x1x10xf32, #tpu.memory_space<vmem>>, %arg11: memref<320x4xf32, #tpu.memory_space<vmem>>, %arg12: memref<96x8xf32, #tpu.memory_space<vmem>>, %arg13: memref<32x16xf32, #tpu.memory_space<vmem>>) attributes {dimension_semantics = [#tpu.dimension_semantics<parallel>], iteration_bounds = array<i64: 2>, scalar_prefetch = 0 : i64, scratch_operands = 3 : i64, tpu.core_type = #tpu.core_type<tc>, window_params = [{transform_indices = @transform_0, window_bounds = array<i64: 1, 16, 16, 4>}, {pipeline_mode = #tpu.pipeline_mode<synchronous>, transform_indices = @transform_1, window_bounds = array<i64: 3, 3, 4, 8>}, {pipeline_mode = #tpu.pipeline_mode<synchronous>, transform_indices = @transform_2, window_bounds = array<i64: 1, 8>}, {pipeline_mode = #tpu.pipeline_mode<synchronous>, transform_indices = @transform_3, window_bounds = array<i64: 3, 3, 8, 16>}, {pipeline_mode = #tpu.pipeline_mode<synchronous>, transform_indices = @transform_4, window_bounds = array<i64: 1, 16>}, {pipeline_mode = #tpu.pipeline_mode<synchronous>, transform_indices = @transform_5, window_bounds = array<i64: 3, 3, 16, 32>}, {pipeline_mode = #tpu.pipeline_mode<synchronous>, transform_indices = @transform_6, window_bounds = array<i64: 1, 32>}, {pipeline_mode = #tpu.pipeline_mode<synchronous>, transform_indices = @transform_7, window_bounds = array<i64: 4, 32, 10>}, {pipeline_mode = #tpu.pipeline_mode<synchronous>, transform_indices = @transform_8, window_bounds = array<i64: 1, 10>}, {transform_indices = @transform_9, window_bounds = array<i64: 1, 1, 10>}]} {
    %c0 = arith.constant 0 : index
    %c0_0 = arith.constant 0 : index
    %c0_1 = arith.constant 0 : index
    %c0_2 = arith.constant 0 : index
    %0 = vector.load %arg1[%c0, %c0_0, %c0_1, %c0_2] : memref<1x16x16x4xf32, #tpu.memory_space<vmem>>, vector<1x16x16x4xf32>
    %1 = vector.shape_cast %0 : vector<1x16x16x4xf32> to vector<16x16x4xf32>
    %2 = vector.shape_cast %1 : vector<16x16x4xf32> to vector<256x4xf32>
    %cst = arith.constant 0.000000e+00 : f32
    %3 = vector.broadcast %cst : f32 to vector<32x4xf32>
    %c0_3 = arith.constant 0 : index
    %c0_4 = arith.constant 0 : index
    %4 = vector.load %arg11[%c0_3, %c0_4] : memref<320x4xf32, #tpu.memory_space<vmem>>, vector<32x4xf32>
    tpu.vector_store %arg11[%c0_3, %c0_4], %3 {strides = array<i32>} : memref<320x4xf32, #tpu.memory_space<vmem>>, vector<32x4xf32>,
    %c32 = arith.constant 32 : index
    %c0_5 = arith.constant 0 : index
    %5 = vector.load %arg11[%c32, %c0_5] : memref<320x4xf32, #tpu.memory_space<vmem>>, vector<256x4xf32>
    tpu.vector_store %arg11[%c32, %c0_5], %2 {strides = array<i32>} : memref<320x4xf32, #tpu.memory_space<vmem>>, vector<256x4xf32>,
    %c288 = arith.constant 288 : index
    %c0_6 = arith.constant 0 : index
    %6 = vector.load %arg11[%c288, %c0_6] : memref<320x4xf32, #tpu.memory_space<vmem>>, vector<32x4xf32>
    tpu.vector_store %arg11[%c288, %c0_6], %3 {strides = array<i32>} : memref<320x4xf32, #tpu.memory_space<vmem>>, vector<32x4xf32>,
    %7 = tpu.iota {dimensions = array<i32: 1>} : vector<16x16x4xi32>
    %8 = vector.shape_cast %7 : vector<16x16x4xi32> to vector<256x4xi32>
    %cst_7 = arith.constant 0.000000e+00 : f32
    %9 = vector.broadcast %cst_7 : f32 to vector<256x8xf32>
    %c15 = arith.constant 15 : index
    %c0_8 = arith.constant 0 : index
    %10 = vector.load %arg11[%c15, %c0_8] : memref<320x4xf32, #tpu.memory_space<vmem>>, vector<256x4xf32>
    %c1_i32 = arith.constant 1 : i32
    %11 = vector.broadcast %c1_i32 : i32 to vector<256x4xi32>
    %12 = arith.cmpi sge, %8, %11 : vector<256x4xi32>
    %cst_9 = arith.constant 0.000000e+00 : f32
    %13 = vector.broadcast %cst_9 : f32 to vector<256x4xf32>
    %14 = arith.select %12, %10, %13 : vector<256x4xi1>, vector<256x4xf32>
    %c0_10 = arith.constant 0 : index
    %c0_11 = arith.constant 0 : index
    %c0_12 = arith.constant 0 : index
    %c0_13 = arith.constant 0 : index
    %15 = vector.load %arg2[%c0_10, %c0_11, %c0_12, %c0_13] : memref<3x3x4x8xf32, #tpu.memory_space<vmem>>, vector<1x1x4x8xf32>
    %16 = vector.shape_cast %15 : vector<1x1x4x8xf32> to vector<4x8xf32>
    %cst_14 = arith.constant dense<0.000000e+00> : vector<256x8xf32>
    %17 = tpu.matmul %14, %16, %cst_14 {dimension_numbers = #tpu.dot_dimension_numbers<[1], [0], [0], [1], [0, 0, 1, 1], [], []>} : vector<256x4xf32>, vector<4x8xf32>, vector<256x8xf32> -> vector<256x8xf32>
    %18 = arith.addf %9, %17 : vector<256x8xf32>
    %c16 = arith.constant 16 : index
    %c0_15 = arith.constant 0 : index
    %19 = vector.load %arg11[%c16, %c0_15] : memref<320x4xf32, #tpu.memory_space<vmem>>, vector<256x4xf32>
    %c0_16 = arith.constant 0 : index
    %c1 = arith.constant 1 : index
    %c0_17 = arith.constant 0 : index
    %c0_18 = arith.constant 0 : index
    %20 = vector.load %arg2[%c0_16, %c1, %c0_17, %c0_18] : memref<3x3x4x8xf32, #tpu.memory_space<vmem>>, vector<1x1x4x8xf32>
    %21 = vector.shape_cast %20 : vector<1x1x4x8xf32> to vector<4x8xf32>
    %cst_19 = arith.constant dense<0.000000e+00> : vector<256x8xf32>
    %22 = tpu.matmul %19, %21, %cst_19 {dimension_numbers = #tpu.dot_dimension_numbers<[1], [0], [0], [1], [0, 0, 1, 1], [], []>} : vector<256x4xf32>, vector<4x8xf32>, vector<256x8xf32> -> vector<256x8xf32>
    %23 = arith.addf %18, %22 : vector<256x8xf32>
    %c17 = arith.constant 17 : index
    %c0_20 = arith.constant 0 : index
    %24 = vector.load %arg11[%c17, %c0_20] : memref<320x4xf32, #tpu.memory_space<vmem>>, vector<256x4xf32>
    %c14_i32 = arith.constant 14 : i32
    %25 = vector.broadcast %c14_i32 : i32 to vector<256x4xi32>
    %26 = arith.cmpi sle, %8, %25 : vector<256x4xi32>
    %cst_21 = arith.constant 0.000000e+00 : f32
    %27 = vector.broadcast %cst_21 : f32 to vector<256x4xf32>
    %28 = arith.select %26, %24, %27 : vector<256x4xi1>, vector<256x4xf32>
    %c0_22 = arith.constant 0 : index
    %c2 = arith.constant 2 : index
    %c0_23 = arith.constant 0 : index
    %c0_24 = arith.constant 0 : index
    %29 = vector.load %arg2[%c0_22, %c2, %c0_23, %c0_24] : memref<3x3x4x8xf32, #tpu.memory_space<vmem>>, vector<1x1x4x8xf32>
    %30 = vector.shape_cast %29 : vector<1x1x4x8xf32> to vector<4x8xf32>
    %cst_25 = arith.constant dense<0.000000e+00> : vector<256x8xf32>
    %31 = tpu.matmul %28, %30, %cst_25 {dimension_numbers = #tpu.dot_dimension_numbers<[1], [0], [0], [1], [0, 0, 1, 1], [], []>} : vector<256x4xf32>, vector<4x8xf32>, vector<256x8xf32> -> vector<256x8xf32>
    %32 = arith.addf %23, %31 : vector<256x8xf32>
    %c31 = arith.constant 31 : index
    %c0_26 = arith.constant 0 : index
    %33 = vector.load %arg11[%c31, %c0_26] : memref<320x4xf32, #tpu.memory_space<vmem>>, vector<256x4xf32>
    %c1_i32_27 = arith.constant 1 : i32
    %34 = vector.broadcast %c1_i32_27 : i32 to vector<256x4xi32>
    %35 = arith.cmpi sge, %8, %34 : vector<256x4xi32>
    %cst_28 = arith.constant 0.000000e+00 : f32
    %36 = vector.broadcast %cst_28 : f32 to vector<256x4xf32>
    %37 = arith.select %35, %33, %36 : vector<256x4xi1>, vector<256x4xf32>
    %c1_29 = arith.constant 1 : index
    %c0_30 = arith.constant 0 : index
    %c0_31 = arith.constant 0 : index
    %c0_32 = arith.constant 0 : index
    %38 = vector.load %arg2[%c1_29, %c0_30, %c0_31, %c0_32] : memref<3x3x4x8xf32, #tpu.memory_space<vmem>>, vector<1x1x4x8xf32>
    %39 = vector.shape_cast %38 : vector<1x1x4x8xf32> to vector<4x8xf32>
    %cst_33 = arith.constant dense<0.000000e+00> : vector<256x8xf32>
    %40 = tpu.matmul %37, %39, %cst_33 {dimension_numbers = #tpu.dot_dimension_numbers<[1], [0], [0], [1], [0, 0, 1, 1], [], []>} : vector<256x4xf32>, vector<4x8xf32>, vector<256x8xf32> -> vector<256x8xf32>
    %41 = arith.addf %32, %40 : vector<256x8xf32>
    %c32_34 = arith.constant 32 : index
    %c0_35 = arith.constant 0 : index
    %42 = vector.load %arg11[%c32_34, %c0_35] : memref<320x4xf32, #tpu.memory_space<vmem>>, vector<256x4xf32>
    %c1_36 = arith.constant 1 : index
    %c1_37 = arith.constant 1 : index
    %c0_38 = arith.constant 0 : index
    %c0_39 = arith.constant 0 : index
    %43 = vector.load %arg2[%c1_36, %c1_37, %c0_38, %c0_39] : memref<3x3x4x8xf32, #tpu.memory_space<vmem>>, vector<1x1x4x8xf32>
    %44 = vector.shape_cast %43 : vector<1x1x4x8xf32> to vector<4x8xf32>
    %cst_40 = arith.constant dense<0.000000e+00> : vector<256x8xf32>
    %45 = tpu.matmul %42, %44, %cst_40 {dimension_numbers = #tpu.dot_dimension_numbers<[1], [0], [0], [1], [0, 0, 1, 1], [], []>} : vector<256x4xf32>, vector<4x8xf32>, vector<256x8xf32> -> vector<256x8xf32>
    %46 = arith.addf %41, %45 : vector<256x8xf32>
    %c33 = arith.constant 33 : index
    %c0_41 = arith.constant 0 : index
    %47 = vector.load %arg11[%c33, %c0_41] : memref<320x4xf32, #tpu.memory_space<vmem>>, vector<256x4xf32>
    %c14_i32_42 = arith.constant 14 : i32
    %48 = vector.broadcast %c14_i32_42 : i32 to vector<256x4xi32>
    %49 = arith.cmpi sle, %8, %48 : vector<256x4xi32>
    %cst_43 = arith.constant 0.000000e+00 : f32
    %50 = vector.broadcast %cst_43 : f32 to vector<256x4xf32>
    %51 = arith.select %49, %47, %50 : vector<256x4xi1>, vector<256x4xf32>
    %c1_44 = arith.constant 1 : index
    %c2_45 = arith.constant 2 : index
    %c0_46 = arith.constant 0 : index
    %c0_47 = arith.constant 0 : index
    %52 = vector.load %arg2[%c1_44, %c2_45, %c0_46, %c0_47] : memref<3x3x4x8xf32, #tpu.memory_space<vmem>>, vector<1x1x4x8xf32>
    %53 = vector.shape_cast %52 : vector<1x1x4x8xf32> to vector<4x8xf32>
    %cst_48 = arith.constant dense<0.000000e+00> : vector<256x8xf32>
    %54 = tpu.matmul %51, %53, %cst_48 {dimension_numbers = #tpu.dot_dimension_numbers<[1], [0], [0], [1], [0, 0, 1, 1], [], []>} : vector<256x4xf32>, vector<4x8xf32>, vector<256x8xf32> -> vector<256x8xf32>
    %55 = arith.addf %46, %54 : vector<256x8xf32>
    %c47 = arith.constant 47 : index
    %c0_49 = arith.constant 0 : index
    %56 = vector.load %arg11[%c47, %c0_49] : memref<320x4xf32, #tpu.memory_space<vmem>>, vector<256x4xf32>
    %c1_i32_50 = arith.constant 1 : i32
    %57 = vector.broadcast %c1_i32_50 : i32 to vector<256x4xi32>
    %58 = arith.cmpi sge, %8, %57 : vector<256x4xi32>
    %cst_51 = arith.constant 0.000000e+00 : f32
    %59 = vector.broadcast %cst_51 : f32 to vector<256x4xf32>
    %60 = arith.select %58, %56, %59 : vector<256x4xi1>, vector<256x4xf32>
    %c2_52 = arith.constant 2 : index
    %c0_53 = arith.constant 0 : index
    %c0_54 = arith.constant 0 : index
    %c0_55 = arith.constant 0 : index
    %61 = vector.load %arg2[%c2_52, %c0_53, %c0_54, %c0_55] : memref<3x3x4x8xf32, #tpu.memory_space<vmem>>, vector<1x1x4x8xf32>
    %62 = vector.shape_cast %61 : vector<1x1x4x8xf32> to vector<4x8xf32>
    %cst_56 = arith.constant dense<0.000000e+00> : vector<256x8xf32>
    %63 = tpu.matmul %60, %62, %cst_56 {dimension_numbers = #tpu.dot_dimension_numbers<[1], [0], [0], [1], [0, 0, 1, 1], [], []>} : vector<256x4xf32>, vector<4x8xf32>, vector<256x8xf32> -> vector<256x8xf32>
    %64 = arith.addf %55, %63 : vector<256x8xf32>
    %c48 = arith.constant 48 : index
    %c0_57 = arith.constant 0 : index
    %65 = vector.load %arg11[%c48, %c0_57] : memref<320x4xf32, #tpu.memory_space<vmem>>, vector<256x4xf32>
    %c2_58 = arith.constant 2 : index
    %c1_59 = arith.constant 1 : index
    %c0_60 = arith.constant 0 : index
    %c0_61 = arith.constant 0 : index
    %66 = vector.load %arg2[%c2_58, %c1_59, %c0_60, %c0_61] : memref<3x3x4x8xf32, #tpu.memory_space<vmem>>, vector<1x1x4x8xf32>
    %67 = vector.shape_cast %66 : vector<1x1x4x8xf32> to vector<4x8xf32>
    %cst_62 = arith.constant dense<0.000000e+00> : vector<256x8xf32>
    %68 = tpu.matmul %65, %67, %cst_62 {dimension_numbers = #tpu.dot_dimension_numbers<[1], [0], [0], [1], [0, 0, 1, 1], [], []>} : vector<256x4xf32>, vector<4x8xf32>, vector<256x8xf32> -> vector<256x8xf32>
    %69 = arith.addf %64, %68 : vector<256x8xf32>
    %c49 = arith.constant 49 : index
    %c0_63 = arith.constant 0 : index
    %70 = vector.load %arg11[%c49, %c0_63] : memref<320x4xf32, #tpu.memory_space<vmem>>, vector<256x4xf32>
    %c14_i32_64 = arith.constant 14 : i32
    %71 = vector.broadcast %c14_i32_64 : i32 to vector<256x4xi32>
    %72 = arith.cmpi sle, %8, %71 : vector<256x4xi32>
    %cst_65 = arith.constant 0.000000e+00 : f32
    %73 = vector.broadcast %cst_65 : f32 to vector<256x4xf32>
    %74 = arith.select %72, %70, %73 : vector<256x4xi1>, vector<256x4xf32>
    %c2_66 = arith.constant 2 : index
    %c2_67 = arith.constant 2 : index
    %c0_68 = arith.constant 0 : index
    %c0_69 = arith.constant 0 : index
    %75 = vector.load %arg2[%c2_66, %c2_67, %c0_68, %c0_69] : memref<3x3x4x8xf32, #tpu.memory_space<vmem>>, vector<1x1x4x8xf32>
    %76 = vector.shape_cast %75 : vector<1x1x4x8xf32> to vector<4x8xf32>
    %cst_70 = arith.constant dense<0.000000e+00> : vector<256x8xf32>
    %77 = tpu.matmul %74, %76, %cst_70 {dimension_numbers = #tpu.dot_dimension_numbers<[1], [0], [0], [1], [0, 0, 1, 1], [], []>} : vector<256x4xf32>, vector<4x8xf32>, vector<256x8xf32> -> vector<256x8xf32>
    %78 = arith.addf %69, %77 : vector<256x8xf32>
    %c0_71 = arith.constant 0 : index
    %c0_72 = arith.constant 0 : index
    %79 = vector.load %arg3[%c0_71, %c0_72] : memref<1x8xf32, #tpu.memory_space<vmem>>, vector<1x8xf32>
    %80 = vector.broadcast %79 : vector<1x8xf32> to vector<256x8xf32>
    %81 = arith.addf %78, %80 : vector<256x8xf32>
    %cst_73 = arith.constant 0.000000e+00 : f32
    %82 = vector.broadcast %cst_73 : f32 to vector<256x8xf32>
    %83 = arith.maximumf %81, %82 : vector<256x8xf32>
    %84 = vector.shape_cast %83 : vector<256x8xf32> to vector<16x8x2x8xf32>
    %cst_74 = arith.constant dense<0xFF800000> : vector<16x8x8xf32>
    %85 = vector.multi_reduction <maximumf>, %84, %cst_74 [2] : vector<16x8x2x8xf32> to vector<16x8x8xf32>
    %86 = vector.shape_cast %85 : vector<16x8x8xf32> to vector<8x2x8x8xf32>
    %cst_75 = arith.constant dense<0xFF800000> : vector<8x8x8xf32>
    %87 = vector.multi_reduction <maximumf>, %86, %cst_75 [1] : vector<8x2x8x8xf32> to vector<8x8x8xf32>
    %88 = vector.shape_cast %87 : vector<8x8x8xf32> to vector<64x8xf32>
    %cst_76 = arith.constant 0.000000e+00 : f32
    %89 = vector.broadcast %cst_76 : f32 to vector<16x8xf32>
    %c0_77 = arith.constant 0 : index
    %c0_78 = arith.constant 0 : index
    %90 = vector.load %arg12[%c0_77, %c0_78] : memref<96x8xf32, #tpu.memory_space<vmem>>, vector<16x8xf32>
    tpu.vector_store %arg12[%c0_77, %c0_78], %89 {strides = array<i32>} : memref<96x8xf32, #tpu.memory_space<vmem>>, vector<16x8xf32>,
    %c16_79 = arith.constant 16 : index
    %c0_80 = arith.constant 0 : index
    %91 = vector.load %arg12[%c16_79, %c0_80] : memref<96x8xf32, #tpu.memory_space<vmem>>, vector<64x8xf32>
    tpu.vector_store %arg12[%c16_79, %c0_80], %88 {strides = array<i32>} : memref<96x8xf32, #tpu.memory_space<vmem>>, vector<64x8xf32>,
    %c80 = arith.constant 80 : index
    %c0_81 = arith.constant 0 : index
    %92 = vector.load %arg12[%c80, %c0_81] : memref<96x8xf32, #tpu.memory_space<vmem>>, vector<16x8xf32>
    tpu.vector_store %arg12[%c80, %c0_81], %89 {strides = array<i32>} : memref<96x8xf32, #tpu.memory_space<vmem>>, vector<16x8xf32>,
    %93 = tpu.iota {dimensions = array<i32: 1>} : vector<8x8x8xi32>
    %94 = vector.shape_cast %93 : vector<8x8x8xi32> to vector<64x8xi32>
    %cst_82 = arith.constant 0.000000e+00 : f32
    %95 = vector.broadcast %cst_82 : f32 to vector<64x16xf32>
    %c7 = arith.constant 7 : index
    %c0_83 = arith.constant 0 : index
    %96 = vector.load %arg12[%c7, %c0_83] : memref<96x8xf32, #tpu.memory_space<vmem>>, vector<64x8xf32>
    %c1_i32_84 = arith.constant 1 : i32
    %97 = vector.broadcast %c1_i32_84 : i32 to vector<64x8xi32>
    %98 = arith.cmpi sge, %94, %97 : vector<64x8xi32>
    %cst_85 = arith.constant 0.000000e+00 : f32
    %99 = vector.broadcast %cst_85 : f32 to vector<64x8xf32>
    %100 = arith.select %98, %96, %99 : vector<64x8xi1>, vector<64x8xf32>
    %c0_86 = arith.constant 0 : index
    %c0_87 = arith.constant 0 : index
    %c0_88 = arith.constant 0 : index
    %c0_89 = arith.constant 0 : index
    %101 = vector.load %arg4[%c0_86, %c0_87, %c0_88, %c0_89] : memref<3x3x8x16xf32, #tpu.memory_space<vmem>>, vector<1x1x8x16xf32>
    %102 = vector.shape_cast %101 : vector<1x1x8x16xf32> to vector<8x16xf32>
    %cst_90 = arith.constant dense<0.000000e+00> : vector<64x16xf32>
    %103 = tpu.matmul %100, %102, %cst_90 {dimension_numbers = #tpu.dot_dimension_numbers<[1], [0], [0], [1], [0, 0, 1, 1], [], []>} : vector<64x8xf32>, vector<8x16xf32>, vector<64x16xf32> -> vector<64x16xf32>
    %104 = arith.addf %95, %103 : vector<64x16xf32>
    %c8 = arith.constant 8 : index
    %c0_91 = arith.constant 0 : index
    %105 = vector.load %arg12[%c8, %c0_91] : memref<96x8xf32, #tpu.memory_space<vmem>>, vector<64x8xf32>
    %c0_92 = arith.constant 0 : index
    %c1_93 = arith.constant 1 : index
    %c0_94 = arith.constant 0 : index
    %c0_95 = arith.constant 0 : index
    %106 = vector.load %arg4[%c0_92, %c1_93, %c0_94, %c0_95] : memref<3x3x8x16xf32, #tpu.memory_space<vmem>>, vector<1x1x8x16xf32>
    %107 = vector.shape_cast %106 : vector<1x1x8x16xf32> to vector<8x16xf32>
    %cst_96 = arith.constant dense<0.000000e+00> : vector<64x16xf32>
    %108 = tpu.matmul %105, %107, %cst_96 {dimension_numbers = #tpu.dot_dimension_numbers<[1], [0], [0], [1], [0, 0, 1, 1], [], []>} : vector<64x8xf32>, vector<8x16xf32>, vector<64x16xf32> -> vector<64x16xf32>
    %109 = arith.addf %104, %108 : vector<64x16xf32>
    %c9 = arith.constant 9 : index
    %c0_97 = arith.constant 0 : index
    %110 = vector.load %arg12[%c9, %c0_97] : memref<96x8xf32, #tpu.memory_space<vmem>>, vector<64x8xf32>
    %c6_i32 = arith.constant 6 : i32
    %111 = vector.broadcast %c6_i32 : i32 to vector<64x8xi32>
    %112 = arith.cmpi sle, %94, %111 : vector<64x8xi32>
    %cst_98 = arith.constant 0.000000e+00 : f32
    %113 = vector.broadcast %cst_98 : f32 to vector<64x8xf32>
    %114 = arith.select %112, %110, %113 : vector<64x8xi1>, vector<64x8xf32>
    %c0_99 = arith.constant 0 : index
    %c2_100 = arith.constant 2 : index
    %c0_101 = arith.constant 0 : index
    %c0_102 = arith.constant 0 : index
    %115 = vector.load %arg4[%c0_99, %c2_100, %c0_101, %c0_102] : memref<3x3x8x16xf32, #tpu.memory_space<vmem>>, vector<1x1x8x16xf32>
    %116 = vector.shape_cast %115 : vector<1x1x8x16xf32> to vector<8x16xf32>
    %cst_103 = arith.constant dense<0.000000e+00> : vector<64x16xf32>
    %117 = tpu.matmul %114, %116, %cst_103 {dimension_numbers = #tpu.dot_dimension_numbers<[1], [0], [0], [1], [0, 0, 1, 1], [], []>} : vector<64x8xf32>, vector<8x16xf32>, vector<64x16xf32> -> vector<64x16xf32>
    %118 = arith.addf %109, %117 : vector<64x16xf32>
    %c15_104 = arith.constant 15 : index
    %c0_105 = arith.constant 0 : index
    %119 = vector.load %arg12[%c15_104, %c0_105] : memref<96x8xf32, #tpu.memory_space<vmem>>, vector<64x8xf32>
    %c1_i32_106 = arith.constant 1 : i32
    %120 = vector.broadcast %c1_i32_106 : i32 to vector<64x8xi32>
    %121 = arith.cmpi sge, %94, %120 : vector<64x8xi32>
    %cst_107 = arith.constant 0.000000e+00 : f32
    %122 = vector.broadcast %cst_107 : f32 to vector<64x8xf32>
    %123 = arith.select %121, %119, %122 : vector<64x8xi1>, vector<64x8xf32>
    %c1_108 = arith.constant 1 : index
    %c0_109 = arith.constant 0 : index
    %c0_110 = arith.constant 0 : index
    %c0_111 = arith.constant 0 : index
    %124 = vector.load %arg4[%c1_108, %c0_109, %c0_110, %c0_111] : memref<3x3x8x16xf32, #tpu.memory_space<vmem>>, vector<1x1x8x16xf32>
    %125 = vector.shape_cast %124 : vector<1x1x8x16xf32> to vector<8x16xf32>
    %cst_112 = arith.constant dense<0.000000e+00> : vector<64x16xf32>
    %126 = tpu.matmul %123, %125, %cst_112 {dimension_numbers = #tpu.dot_dimension_numbers<[1], [0], [0], [1], [0, 0, 1, 1], [], []>} : vector<64x8xf32>, vector<8x16xf32>, vector<64x16xf32> -> vector<64x16xf32>
    %127 = arith.addf %118, %126 : vector<64x16xf32>
    %c16_113 = arith.constant 16 : index
    %c0_114 = arith.constant 0 : index
    %128 = vector.load %arg12[%c16_113, %c0_114] : memref<96x8xf32, #tpu.memory_space<vmem>>, vector<64x8xf32>
    %c1_115 = arith.constant 1 : index
    %c1_116 = arith.constant 1 : index
    %c0_117 = arith.constant 0 : index
    %c0_118 = arith.constant 0 : index
    %129 = vector.load %arg4[%c1_115, %c1_116, %c0_117, %c0_118] : memref<3x3x8x16xf32, #tpu.memory_space<vmem>>, vector<1x1x8x16xf32>
    %130 = vector.shape_cast %129 : vector<1x1x8x16xf32> to vector<8x16xf32>
    %cst_119 = arith.constant dense<0.000000e+00> : vector<64x16xf32>
    %131 = tpu.matmul %128, %130, %cst_119 {dimension_numbers = #tpu.dot_dimension_numbers<[1], [0], [0], [1], [0, 0, 1, 1], [], []>} : vector<64x8xf32>, vector<8x16xf32>, vector<64x16xf32> -> vector<64x16xf32>
    %132 = arith.addf %127, %131 : vector<64x16xf32>
    %c17_120 = arith.constant 17 : index
    %c0_121 = arith.constant 0 : index
    %133 = vector.load %arg12[%c17_120, %c0_121] : memref<96x8xf32, #tpu.memory_space<vmem>>, vector<64x8xf32>
    %c6_i32_122 = arith.constant 6 : i32
    %134 = vector.broadcast %c6_i32_122 : i32 to vector<64x8xi32>
    %135 = arith.cmpi sle, %94, %134 : vector<64x8xi32>
    %cst_123 = arith.constant 0.000000e+00 : f32
    %136 = vector.broadcast %cst_123 : f32 to vector<64x8xf32>
    %137 = arith.select %135, %133, %136 : vector<64x8xi1>, vector<64x8xf32>
    %c1_124 = arith.constant 1 : index
    %c2_125 = arith.constant 2 : index
    %c0_126 = arith.constant 0 : index
    %c0_127 = arith.constant 0 : index
    %138 = vector.load %arg4[%c1_124, %c2_125, %c0_126, %c0_127] : memref<3x3x8x16xf32, #tpu.memory_space<vmem>>, vector<1x1x8x16xf32>
    %139 = vector.shape_cast %138 : vector<1x1x8x16xf32> to vector<8x16xf32>
    %cst_128 = arith.constant dense<0.000000e+00> : vector<64x16xf32>
    %140 = tpu.matmul %137, %139, %cst_128 {dimension_numbers = #tpu.dot_dimension_numbers<[1], [0], [0], [1], [0, 0, 1, 1], [], []>} : vector<64x8xf32>, vector<8x16xf32>, vector<64x16xf32> -> vector<64x16xf32>
    %141 = arith.addf %132, %140 : vector<64x16xf32>
    %c23 = arith.constant 23 : index
    %c0_129 = arith.constant 0 : index
    %142 = vector.load %arg12[%c23, %c0_129] : memref<96x8xf32, #tpu.memory_space<vmem>>, vector<64x8xf32>
    %c1_i32_130 = arith.constant 1 : i32
    %143 = vector.broadcast %c1_i32_130 : i32 to vector<64x8xi32>
    %144 = arith.cmpi sge, %94, %143 : vector<64x8xi32>
    %cst_131 = arith.constant 0.000000e+00 : f32
    %145 = vector.broadcast %cst_131 : f32 to vector<64x8xf32>
    %146 = arith.select %144, %142, %145 : vector<64x8xi1>, vector<64x8xf32>
    %c2_132 = arith.constant 2 : index
    %c0_133 = arith.constant 0 : index
    %c0_134 = arith.constant 0 : index
    %c0_135 = arith.constant 0 : index
    %147 = vector.load %arg4[%c2_132, %c0_133, %c0_134, %c0_135] : memref<3x3x8x16xf32, #tpu.memory_space<vmem>>, vector<1x1x8x16xf32>
    %148 = vector.shape_cast %147 : vector<1x1x8x16xf32> to vector<8x16xf32>
    %cst_136 = arith.constant dense<0.000000e+00> : vector<64x16xf32>
    %149 = tpu.matmul %146, %148, %cst_136 {dimension_numbers = #tpu.dot_dimension_numbers<[1], [0], [0], [1], [0, 0, 1, 1], [], []>} : vector<64x8xf32>, vector<8x16xf32>, vector<64x16xf32> -> vector<64x16xf32>
    %150 = arith.addf %141, %149 : vector<64x16xf32>
    %c24 = arith.constant 24 : index
    %c0_137 = arith.constant 0 : index
    %151 = vector.load %arg12[%c24, %c0_137] : memref<96x8xf32, #tpu.memory_space<vmem>>, vector<64x8xf32>
    %c2_138 = arith.constant 2 : index
    %c1_139 = arith.constant 1 : index
    %c0_140 = arith.constant 0 : index
    %c0_141 = arith.constant 0 : index
    %152 = vector.load %arg4[%c2_138, %c1_139, %c0_140, %c0_141] : memref<3x3x8x16xf32, #tpu.memory_space<vmem>>, vector<1x1x8x16xf32>
    %153 = vector.shape_cast %152 : vector<1x1x8x16xf32> to vector<8x16xf32>
    %cst_142 = arith.constant dense<0.000000e+00> : vector<64x16xf32>
    %154 = tpu.matmul %151, %153, %cst_142 {dimension_numbers = #tpu.dot_dimension_numbers<[1], [0], [0], [1], [0, 0, 1, 1], [], []>} : vector<64x8xf32>, vector<8x16xf32>, vector<64x16xf32> -> vector<64x16xf32>
    %155 = arith.addf %150, %154 : vector<64x16xf32>
    %c25 = arith.constant 25 : index
    %c0_143 = arith.constant 0 : index
    %156 = vector.load %arg12[%c25, %c0_143] : memref<96x8xf32, #tpu.memory_space<vmem>>, vector<64x8xf32>
    %c6_i32_144 = arith.constant 6 : i32
    %157 = vector.broadcast %c6_i32_144 : i32 to vector<64x8xi32>
    %158 = arith.cmpi sle, %94, %157 : vector<64x8xi32>
    %cst_145 = arith.constant 0.000000e+00 : f32
    %159 = vector.broadcast %cst_145 : f32 to vector<64x8xf32>
    %160 = arith.select %158, %156, %159 : vector<64x8xi1>, vector<64x8xf32>
    %c2_146 = arith.constant 2 : index
    %c2_147 = arith.constant 2 : index
    %c0_148 = arith.constant 0 : index
    %c0_149 = arith.constant 0 : index
    %161 = vector.load %arg4[%c2_146, %c2_147, %c0_148, %c0_149] : memref<3x3x8x16xf32, #tpu.memory_space<vmem>>, vector<1x1x8x16xf32>
    %162 = vector.shape_cast %161 : vector<1x1x8x16xf32> to vector<8x16xf32>
    %cst_150 = arith.constant dense<0.000000e+00> : vector<64x16xf32>
    %163 = tpu.matmul %160, %162, %cst_150 {dimension_numbers = #tpu.dot_dimension_numbers<[1], [0], [0], [1], [0, 0, 1, 1], [], []>} : vector<64x8xf32>, vector<8x16xf32>, vector<64x16xf32> -> vector<64x16xf32>
    %164 = arith.addf %155, %163 : vector<64x16xf32>
    %c0_151 = arith.constant 0 : index
    %c0_152 = arith.constant 0 : index
    %165 = vector.load %arg5[%c0_151, %c0_152] : memref<1x16xf32, #tpu.memory_space<vmem>>, vector<1x16xf32>
    %166 = vector.broadcast %165 : vector<1x16xf32> to vector<64x16xf32>
    %167 = arith.addf %164, %166 : vector<64x16xf32>
    %cst_153 = arith.constant 0.000000e+00 : f32
    %168 = vector.broadcast %cst_153 : f32 to vector<64x16xf32>
    %169 = arith.maximumf %167, %168 : vector<64x16xf32>
    %170 = vector.shape_cast %169 : vector<64x16xf32> to vector<8x4x2x16xf32>
    %cst_154 = arith.constant dense<0xFF800000> : vector<8x4x16xf32>
    %171 = vector.multi_reduction <maximumf>, %170, %cst_154 [2] : vector<8x4x2x16xf32> to vector<8x4x16xf32>
    %172 = vector.shape_cast %171 : vector<8x4x16xf32> to vector<4x2x4x16xf32>
    %cst_155 = arith.constant dense<0xFF800000> : vector<4x4x16xf32>
    %173 = vector.multi_reduction <maximumf>, %172, %cst_155 [1] : vector<4x2x4x16xf32> to vector<4x4x16xf32>
    %174 = vector.shape_cast %173 : vector<4x4x16xf32> to vector<16x16xf32>
    %cst_156 = arith.constant 0.000000e+00 : f32
    %175 = vector.broadcast %cst_156 : f32 to vector<8x16xf32>
    %c0_157 = arith.constant 0 : index
    %c0_158 = arith.constant 0 : index
    %176 = vector.load %arg13[%c0_157, %c0_158] : memref<32x16xf32, #tpu.memory_space<vmem>>, vector<8x16xf32>
    tpu.vector_store %arg13[%c0_157, %c0_158], %175 {strides = array<i32>} : memref<32x16xf32, #tpu.memory_space<vmem>>, vector<8x16xf32>,
    %c8_159 = arith.constant 8 : index
    %c0_160 = arith.constant 0 : index
    %177 = vector.load %arg13[%c8_159, %c0_160] : memref<32x16xf32, #tpu.memory_space<vmem>>, vector<16x16xf32>
    tpu.vector_store %arg13[%c8_159, %c0_160], %174 {strides = array<i32>} : memref<32x16xf32, #tpu.memory_space<vmem>>, vector<16x16xf32>,
    %c24_161 = arith.constant 24 : index
    %c0_162 = arith.constant 0 : index
    %178 = vector.load %arg13[%c24_161, %c0_162] : memref<32x16xf32, #tpu.memory_space<vmem>>, vector<8x16xf32>
    tpu.vector_store %arg13[%c24_161, %c0_162], %175 {strides = array<i32>} : memref<32x16xf32, #tpu.memory_space<vmem>>, vector<8x16xf32>,
    %179 = tpu.iota {dimensions = array<i32: 1>} : vector<4x4x16xi32>
    %180 = vector.shape_cast %179 : vector<4x4x16xi32> to vector<16x16xi32>
    %cst_163 = arith.constant 0.000000e+00 : f32
    %181 = vector.broadcast %cst_163 : f32 to vector<16x32xf32>
    %c3 = arith.constant 3 : index
    %c0_164 = arith.constant 0 : index
    %182 = vector.load %arg13[%c3, %c0_164] : memref<32x16xf32, #tpu.memory_space<vmem>>, vector<16x16xf32>
    %c1_i32_165 = arith.constant 1 : i32
    %183 = vector.broadcast %c1_i32_165 : i32 to vector<16x16xi32>
    %184 = arith.cmpi sge, %180, %183 : vector<16x16xi32>
    %cst_166 = arith.constant 0.000000e+00 : f32
    %185 = vector.broadcast %cst_166 : f32 to vector<16x16xf32>
    %186 = arith.select %184, %182, %185 : vector<16x16xi1>, vector<16x16xf32>
    %c0_167 = arith.constant 0 : index
    %c0_168 = arith.constant 0 : index
    %c0_169 = arith.constant 0 : index
    %c0_170 = arith.constant 0 : index
    %187 = vector.load %arg6[%c0_167, %c0_168, %c0_169, %c0_170] : memref<3x3x16x32xf32, #tpu.memory_space<vmem>>, vector<1x1x16x32xf32>
    %188 = vector.shape_cast %187 : vector<1x1x16x32xf32> to vector<16x32xf32>
    %cst_171 = arith.constant dense<0.000000e+00> : vector<16x32xf32>
    %189 = tpu.matmul %186, %188, %cst_171 {dimension_numbers = #tpu.dot_dimension_numbers<[1], [0], [0], [1], [0, 0, 1, 1], [], []>} : vector<16x16xf32>, vector<16x32xf32>, vector<16x32xf32> -> vector<16x32xf32>
    %190 = arith.addf %181, %189 : vector<16x32xf32>
    %c4 = arith.constant 4 : index
    %c0_172 = arith.constant 0 : index
    %191 = vector.load %arg13[%c4, %c0_172] : memref<32x16xf32, #tpu.memory_space<vmem>>, vector<16x16xf32>
    %c0_173 = arith.constant 0 : index
    %c1_174 = arith.constant 1 : index
    %c0_175 = arith.constant 0 : index
    %c0_176 = arith.constant 0 : index
    %192 = vector.load %arg6[%c0_173, %c1_174, %c0_175, %c0_176] : memref<3x3x16x32xf32, #tpu.memory_space<vmem>>, vector<1x1x16x32xf32>
    %193 = vector.shape_cast %192 : vector<1x1x16x32xf32> to vector<16x32xf32>
    %cst_177 = arith.constant dense<0.000000e+00> : vector<16x32xf32>
    %194 = tpu.matmul %191, %193, %cst_177 {dimension_numbers = #tpu.dot_dimension_numbers<[1], [0], [0], [1], [0, 0, 1, 1], [], []>} : vector<16x16xf32>, vector<16x32xf32>, vector<16x32xf32> -> vector<16x32xf32>
    %195 = arith.addf %190, %194 : vector<16x32xf32>
    %c5 = arith.constant 5 : index
    %c0_178 = arith.constant 0 : index
    %196 = vector.load %arg13[%c5, %c0_178] : memref<32x16xf32, #tpu.memory_space<vmem>>, vector<16x16xf32>
    %c2_i32 = arith.constant 2 : i32
    %197 = vector.broadcast %c2_i32 : i32 to vector<16x16xi32>
    %198 = arith.cmpi sle, %180, %197 : vector<16x16xi32>
    %cst_179 = arith.constant 0.000000e+00 : f32
    %199 = vector.broadcast %cst_179 : f32 to vector<16x16xf32>
    %200 = arith.select %198, %196, %199 : vector<16x16xi1>, vector<16x16xf32>
    %c0_180 = arith.constant 0 : index
    %c2_181 = arith.constant 2 : index
    %c0_182 = arith.constant 0 : index
    %c0_183 = arith.constant 0 : index
    %201 = vector.load %arg6[%c0_180, %c2_181, %c0_182, %c0_183] : memref<3x3x16x32xf32, #tpu.memory_space<vmem>>, vector<1x1x16x32xf32>
    %202 = vector.shape_cast %201 : vector<1x1x16x32xf32> to vector<16x32xf32>
    %cst_184 = arith.constant dense<0.000000e+00> : vector<16x32xf32>
    %203 = tpu.matmul %200, %202, %cst_184 {dimension_numbers = #tpu.dot_dimension_numbers<[1], [0], [0], [1], [0, 0, 1, 1], [], []>} : vector<16x16xf32>, vector<16x32xf32>, vector<16x32xf32> -> vector<16x32xf32>
    %204 = arith.addf %195, %203 : vector<16x32xf32>
    %c7_185 = arith.constant 7 : index
    %c0_186 = arith.constant 0 : index
    %205 = vector.load %arg13[%c7_185, %c0_186] : memref<32x16xf32, #tpu.memory_space<vmem>>, vector<16x16xf32>
    %c1_i32_187 = arith.constant 1 : i32
    %206 = vector.broadcast %c1_i32_187 : i32 to vector<16x16xi32>
    %207 = arith.cmpi sge, %180, %206 : vector<16x16xi32>
    %cst_188 = arith.constant 0.000000e+00 : f32
    %208 = vector.broadcast %cst_188 : f32 to vector<16x16xf32>
    %209 = arith.select %207, %205, %208 : vector<16x16xi1>, vector<16x16xf32>
    %c1_189 = arith.constant 1 : index
    %c0_190 = arith.constant 0 : index
    %c0_191 = arith.constant 0 : index
    %c0_192 = arith.constant 0 : index
    %210 = vector.load %arg6[%c1_189, %c0_190, %c0_191, %c0_192] : memref<3x3x16x32xf32, #tpu.memory_space<vmem>>, vector<1x1x16x32xf32>
    %211 = vector.shape_cast %210 : vector<1x1x16x32xf32> to vector<16x32xf32>
    %cst_193 = arith.constant dense<0.000000e+00> : vector<16x32xf32>
    %212 = tpu.matmul %209, %211, %cst_193 {dimension_numbers = #tpu.dot_dimension_numbers<[1], [0], [0], [1], [0, 0, 1, 1], [], []>} : vector<16x16xf32>, vector<16x32xf32>, vector<16x32xf32> -> vector<16x32xf32>
    %213 = arith.addf %204, %212 : vector<16x32xf32>
    %c8_194 = arith.constant 8 : index
    %c0_195 = arith.constant 0 : index
    %214 = vector.load %arg13[%c8_194, %c0_195] : memref<32x16xf32, #tpu.memory_space<vmem>>, vector<16x16xf32>
    %c1_196 = arith.constant 1 : index
    %c1_197 = arith.constant 1 : index
    %c0_198 = arith.constant 0 : index
    %c0_199 = arith.constant 0 : index
    %215 = vector.load %arg6[%c1_196, %c1_197, %c0_198, %c0_199] : memref<3x3x16x32xf32, #tpu.memory_space<vmem>>, vector<1x1x16x32xf32>
    %216 = vector.shape_cast %215 : vector<1x1x16x32xf32> to vector<16x32xf32>
    %cst_200 = arith.constant dense<0.000000e+00> : vector<16x32xf32>
    %217 = tpu.matmul %214, %216, %cst_200 {dimension_numbers = #tpu.dot_dimension_numbers<[1], [0], [0], [1], [0, 0, 1, 1], [], []>} : vector<16x16xf32>, vector<16x32xf32>, vector<16x32xf32> -> vector<16x32xf32>
    %218 = arith.addf %213, %217 : vector<16x32xf32>
    %c9_201 = arith.constant 9 : index
    %c0_202 = arith.constant 0 : index
    %219 = vector.load %arg13[%c9_201, %c0_202] : memref<32x16xf32, #tpu.memory_space<vmem>>, vector<16x16xf32>
    %c2_i32_203 = arith.constant 2 : i32
    %220 = vector.broadcast %c2_i32_203 : i32 to vector<16x16xi32>
    %221 = arith.cmpi sle, %180, %220 : vector<16x16xi32>
    %cst_204 = arith.constant 0.000000e+00 : f32
    %222 = vector.broadcast %cst_204 : f32 to vector<16x16xf32>
    %223 = arith.select %221, %219, %222 : vector<16x16xi1>, vector<16x16xf32>
    %c1_205 = arith.constant 1 : index
    %c2_206 = arith.constant 2 : index
    %c0_207 = arith.constant 0 : index
    %c0_208 = arith.constant 0 : index
    %224 = vector.load %arg6[%c1_205, %c2_206, %c0_207, %c0_208] : memref<3x3x16x32xf32, #tpu.memory_space<vmem>>, vector<1x1x16x32xf32>
    %225 = vector.shape_cast %224 : vector<1x1x16x32xf32> to vector<16x32xf32>
    %cst_209 = arith.constant dense<0.000000e+00> : vector<16x32xf32>
    %226 = tpu.matmul %223, %225, %cst_209 {dimension_numbers = #tpu.dot_dimension_numbers<[1], [0], [0], [1], [0, 0, 1, 1], [], []>} : vector<16x16xf32>, vector<16x32xf32>, vector<16x32xf32> -> vector<16x32xf32>
    %227 = arith.addf %218, %226 : vector<16x32xf32>
    %c11 = arith.constant 11 : index
    %c0_210 = arith.constant 0 : index
    %228 = vector.load %arg13[%c11, %c0_210] : memref<32x16xf32, #tpu.memory_space<vmem>>, vector<16x16xf32>
    %c1_i32_211 = arith.constant 1 : i32
    %229 = vector.broadcast %c1_i32_211 : i32 to vector<16x16xi32>
    %230 = arith.cmpi sge, %180, %229 : vector<16x16xi32>
    %cst_212 = arith.constant 0.000000e+00 : f32
    %231 = vector.broadcast %cst_212 : f32 to vector<16x16xf32>
    %232 = arith.select %230, %228, %231 : vector<16x16xi1>, vector<16x16xf32>
    %c2_213 = arith.constant 2 : index
    %c0_214 = arith.constant 0 : index
    %c0_215 = arith.constant 0 : index
    %c0_216 = arith.constant 0 : index
    %233 = vector.load %arg6[%c2_213, %c0_214, %c0_215, %c0_216] : memref<3x3x16x32xf32, #tpu.memory_space<vmem>>, vector<1x1x16x32xf32>
    %234 = vector.shape_cast %233 : vector<1x1x16x32xf32> to vector<16x32xf32>
    %cst_217 = arith.constant dense<0.000000e+00> : vector<16x32xf32>
    %235 = tpu.matmul %232, %234, %cst_217 {dimension_numbers = #tpu.dot_dimension_numbers<[1], [0], [0], [1], [0, 0, 1, 1], [], []>} : vector<16x16xf32>, vector<16x32xf32>, vector<16x32xf32> -> vector<16x32xf32>
    %236 = arith.addf %227, %235 : vector<16x32xf32>
    %c12 = arith.constant 12 : index
    %c0_218 = arith.constant 0 : index
    %237 = vector.load %arg13[%c12, %c0_218] : memref<32x16xf32, #tpu.memory_space<vmem>>, vector<16x16xf32>
    %c2_219 = arith.constant 2 : index
    %c1_220 = arith.constant 1 : index
    %c0_221 = arith.constant 0 : index
    %c0_222 = arith.constant 0 : index
    %238 = vector.load %arg6[%c2_219, %c1_220, %c0_221, %c0_222] : memref<3x3x16x32xf32, #tpu.memory_space<vmem>>, vector<1x1x16x32xf32>
    %239 = vector.shape_cast %238 : vector<1x1x16x32xf32> to vector<16x32xf32>
    %cst_223 = arith.constant dense<0.000000e+00> : vector<16x32xf32>
    %240 = tpu.matmul %237, %239, %cst_223 {dimension_numbers = #tpu.dot_dimension_numbers<[1], [0], [0], [1], [0, 0, 1, 1], [], []>} : vector<16x16xf32>, vector<16x32xf32>, vector<16x32xf32> -> vector<16x32xf32>
    %241 = arith.addf %236, %240 : vector<16x32xf32>
    %c13 = arith.constant 13 : index
    %c0_224 = arith.constant 0 : index
    %242 = vector.load %arg13[%c13, %c0_224] : memref<32x16xf32, #tpu.memory_space<vmem>>, vector<16x16xf32>
    %c2_i32_225 = arith.constant 2 : i32
    %243 = vector.broadcast %c2_i32_225 : i32 to vector<16x16xi32>
    %244 = arith.cmpi sle, %180, %243 : vector<16x16xi32>
    %cst_226 = arith.constant 0.000000e+00 : f32
    %245 = vector.broadcast %cst_226 : f32 to vector<16x16xf32>
    %246 = arith.select %244, %242, %245 : vector<16x16xi1>, vector<16x16xf32>
    %c2_227 = arith.constant 2 : index
    %c2_228 = arith.constant 2 : index
    %c0_229 = arith.constant 0 : index
    %c0_230 = arith.constant 0 : index
    %247 = vector.load %arg6[%c2_227, %c2_228, %c0_229, %c0_230] : memref<3x3x16x32xf32, #tpu.memory_space<vmem>>, vector<1x1x16x32xf32>
    %248 = vector.shape_cast %247 : vector<1x1x16x32xf32> to vector<16x32xf32>
    %cst_231 = arith.constant dense<0.000000e+00> : vector<16x32xf32>
    %249 = tpu.matmul %246, %248, %cst_231 {dimension_numbers = #tpu.dot_dimension_numbers<[1], [0], [0], [1], [0, 0, 1, 1], [], []>} : vector<16x16xf32>, vector<16x32xf32>, vector<16x32xf32> -> vector<16x32xf32>
    %250 = arith.addf %241, %249 : vector<16x32xf32>
    %c0_232 = arith.constant 0 : index
    %c0_233 = arith.constant 0 : index
    %251 = vector.load %arg7[%c0_232, %c0_233] : memref<1x32xf32, #tpu.memory_space<vmem>>, vector<1x32xf32>
    %252 = vector.broadcast %251 : vector<1x32xf32> to vector<16x32xf32>
    %253 = arith.addf %250, %252 : vector<16x32xf32>
    %cst_234 = arith.constant 0.000000e+00 : f32
    %254 = vector.broadcast %cst_234 : f32 to vector<16x32xf32>
    %255 = arith.maximumf %253, %254 : vector<16x32xf32>
    %256 = vector.shape_cast %255 : vector<16x32xf32> to vector<4x2x2x32xf32>
    %cst_235 = arith.constant dense<0xFF800000> : vector<4x2x32xf32>
    %257 = vector.multi_reduction <maximumf>, %256, %cst_235 [2] : vector<4x2x2x32xf32> to vector<4x2x32xf32>
    %258 = vector.shape_cast %257 : vector<4x2x32xf32> to vector<2x2x2x32xf32>
    %cst_236 = arith.constant dense<0xFF800000> : vector<2x2x32xf32>
    %259 = vector.multi_reduction <maximumf>, %258, %cst_236 [1] : vector<2x2x2x32xf32> to vector<2x2x32xf32>
    %260 = vector.shape_cast %259 : vector<2x2x32xf32> to vector<4x32xf32>
    %c0_237 = arith.constant 0 : index
    %c0_238 = arith.constant 0 : index
    %261 = vector.load %arg9[%c0_237, %c0_238] : memref<1x10xf32, #tpu.memory_space<vmem>>, vector<1x10xf32>
    %262 = vector.extract_strided_slice %260 {offsets = [0, 0], sizes = [1, 32], strides = [1, 1]} : vector<4x32xf32> to vector<1x32xf32>
    %c0_239 = arith.constant 0 : index
    %c0_240 = arith.constant 0 : index
    %c0_241 = arith.constant 0 : index
    %263 = vector.load %arg8[%c0_239, %c0_240, %c0_241] : memref<4x32x10xf32, #tpu.memory_space<vmem>>, vector<1x32x10xf32>
    %264 = vector.shape_cast %263 : vector<1x32x10xf32> to vector<32x10xf32>
    %cst_242 = arith.constant dense<0.000000e+00> : vector<1x10xf32>
    %265 = tpu.matmul %262, %264, %cst_242 {dimension_numbers = #tpu.dot_dimension_numbers<[1], [0], [0], [1], [0, 0, 1, 1], [], []>} : vector<1x32xf32>, vector<32x10xf32>, vector<1x10xf32> -> vector<1x10xf32>
    %266 = arith.addf %261, %265 : vector<1x10xf32>
    %267 = vector.extract_strided_slice %260 {offsets = [1, 0], sizes = [1, 32], strides = [1, 1]} : vector<4x32xf32> to vector<1x32xf32>
    %c1_243 = arith.constant 1 : index
    %c0_244 = arith.constant 0 : index
    %c0_245 = arith.constant 0 : index
    %268 = vector.load %arg8[%c1_243, %c0_244, %c0_245] : memref<4x32x10xf32, #tpu.memory_space<vmem>>, vector<1x32x10xf32>
    %269 = vector.shape_cast %268 : vector<1x32x10xf32> to vector<32x10xf32>
    %cst_246 = arith.constant dense<0.000000e+00> : vector<1x10xf32>
    %270 = tpu.matmul %267, %269, %cst_246 {dimension_numbers = #tpu.dot_dimension_numbers<[1], [0], [0], [1], [0, 0, 1, 1], [], []>} : vector<1x32xf32>, vector<32x10xf32>, vector<1x10xf32> -> vector<1x10xf32>
    %271 = arith.addf %266, %270 : vector<1x10xf32>
    %272 = vector.extract_strided_slice %260 {offsets = [2, 0], sizes = [1, 32], strides = [1, 1]} : vector<4x32xf32> to vector<1x32xf32>
    %c2_247 = arith.constant 2 : index
    %c0_248 = arith.constant 0 : index
    %c0_249 = arith.constant 0 : index
    %273 = vector.load %arg8[%c2_247, %c0_248, %c0_249] : memref<4x32x10xf32, #tpu.memory_space<vmem>>, vector<1x32x10xf32>
    %274 = vector.shape_cast %273 : vector<1x32x10xf32> to vector<32x10xf32>
    %cst_250 = arith.constant dense<0.000000e+00> : vector<1x10xf32>
    %275 = tpu.matmul %272, %274, %cst_250 {dimension_numbers = #tpu.dot_dimension_numbers<[1], [0], [0], [1], [0, 0, 1, 1], [], []>} : vector<1x32xf32>, vector<32x10xf32>, vector<1x10xf32> -> vector<1x10xf32>
    %276 = arith.addf %271, %275 : vector<1x10xf32>
    %277 = vector.extract_strided_slice %260 {offsets = [3, 0], sizes = [1, 32], strides = [1, 1]} : vector<4x32xf32> to vector<1x32xf32>
    %c3_251 = arith.constant 3 : index
    %c0_252 = arith.constant 0 : index
    %c0_253 = arith.constant 0 : index
    %278 = vector.load %arg8[%c3_251, %c0_252, %c0_253] : memref<4x32x10xf32, #tpu.memory_space<vmem>>, vector<1x32x10xf32>
    %279 = vector.shape_cast %278 : vector<1x32x10xf32> to vector<32x10xf32>
    %cst_254 = arith.constant dense<0.000000e+00> : vector<1x10xf32>
    %280 = tpu.matmul %277, %279, %cst_254 {dimension_numbers = #tpu.dot_dimension_numbers<[1], [0], [0], [1], [0, 0, 1, 1], [], []>} : vector<1x32xf32>, vector<32x10xf32>, vector<1x10xf32> -> vector<1x10xf32>
    %281 = arith.addf %276, %280 : vector<1x10xf32>
    %c0_255 = arith.constant 0 : index
    %c0_256 = arith.constant 0 : index
    %c0_257 = arith.constant 0 : index
    %282 = vector.load %arg10[%c0_255, %c0_256, %c0_257] : memref<1x1x10xf32, #tpu.memory_space<vmem>>, vector<1x1x10xf32>
    %283 = vector.shape_cast %282 : vector<1x1x10xf32> to vector<1x10xf32>
    %284 = vector.shape_cast %281 : vector<1x10xf32> to vector<1x1x10xf32>
    tpu.vector_store %arg10[%c0_255, %c0_256, %c0_257], %284 {strides = array<i32>} : memref<1x1x10xf32, #tpu.memory_space<vmem>>, vector<1x1x10xf32>,
    return
  }
  func.func @transform_0(%arg0: i32) -> (i32, i32, i32, i32) {
    %c0_i32 = arith.constant 0 : i32
    %c0_i32_0 = arith.constant 0 : i32
    %c0_i32_1 = arith.constant 0 : i32
    %c0_i32_2 = arith.constant 0 : i32
    return %arg0, %c0_i32, %c0_i32_0, %c0_i32_1 : i32, i32, i32, i32
  }
  func.func @transform_1(%arg0: i32) -> (i32, i32, i32, i32) {
    %c0_i32 = arith.constant 0 : i32
    %c0_i32_0 = arith.constant 0 : i32
    %c0_i32_1 = arith.constant 0 : i32
    %c0_i32_2 = arith.constant 0 : i32
    %c0_i32_3 = arith.constant 0 : i32
    return %c0_i32, %c0_i32_0, %c0_i32_1, %c0_i32_2 : i32, i32, i32, i32
  }
  func.func @transform_2(%arg0: i32) -> (i32, i32) {
    %c0_i32 = arith.constant 0 : i32
    %c0_i32_0 = arith.constant 0 : i32
    %c0_i32_1 = arith.constant 0 : i32
    return %c0_i32, %c0_i32_0 : i32, i32
  }
  func.func @transform_3(%arg0: i32) -> (i32, i32, i32, i32) {
    %c0_i32 = arith.constant 0 : i32
    %c0_i32_0 = arith.constant 0 : i32
    %c0_i32_1 = arith.constant 0 : i32
    %c0_i32_2 = arith.constant 0 : i32
    %c0_i32_3 = arith.constant 0 : i32
    return %c0_i32, %c0_i32_0, %c0_i32_1, %c0_i32_2 : i32, i32, i32, i32
  }
  func.func @transform_4(%arg0: i32) -> (i32, i32) {
    %c0_i32 = arith.constant 0 : i32
    %c0_i32_0 = arith.constant 0 : i32
    %c0_i32_1 = arith.constant 0 : i32
    return %c0_i32, %c0_i32_0 : i32, i32
  }
  func.func @transform_5(%arg0: i32) -> (i32, i32, i32, i32) {
    %c0_i32 = arith.constant 0 : i32
    %c0_i32_0 = arith.constant 0 : i32
    %c0_i32_1 = arith.constant 0 : i32
    %c0_i32_2 = arith.constant 0 : i32
    %c0_i32_3 = arith.constant 0 : i32
    return %c0_i32, %c0_i32_0, %c0_i32_1, %c0_i32_2 : i32, i32, i32, i32
  }
  func.func @transform_6(%arg0: i32) -> (i32, i32) {
    %c0_i32 = arith.constant 0 : i32
    %c0_i32_0 = arith.constant 0 : i32
    %c0_i32_1 = arith.constant 0 : i32
    return %c0_i32, %c0_i32_0 : i32, i32
  }
  func.func @transform_7(%arg0: i32) -> (i32, i32, i32) {
    %c0_i32 = arith.constant 0 : i32
    %c0_i32_0 = arith.constant 0 : i32
    %c0_i32_1 = arith.constant 0 : i32
    %c0_i32_2 = arith.constant 0 : i32
    return %c0_i32, %c0_i32_0, %c0_i32_1 : i32, i32, i32
  }
  func.func @transform_8(%arg0: i32) -> (i32, i32) {
    %c0_i32 = arith.constant 0 : i32
    %c0_i32_0 = arith.constant 0 : i32
    %c0_i32_1 = arith.constant 0 : i32
    return %c0_i32, %c0_i32_0 : i32, i32
  }
  func.func @transform_9(%arg0: i32) -> (i32, i32, i32) {
    %c0_i32 = arith.constant 0 : i32
    %c0_i32_0 = arith.constant 0 : i32
    %c0_i32_1 = arith.constant 0 : i32
    return %arg0, %c0_i32, %c0_i32_0 : i32, i32, i32
  }
}

</mosaic_0001>

<llo_original>
// kernel: network_classification_forward.1
$region0: #{network_classification_forward.1}
  #allocation0 [shape = 'u32[]', space=smem, size = 0x4, offset = 0x4, fixed_abs, tag = 'smem constant byte address 0x4 - core index']
  #allocation1 [shape = 'u32[72,128]{1,0:T(1,128)}', space=vmem, size = 0x9000, scoped, tag = 'internal scratch']
  #allocation2 [shape = 'f32[320,4]{1,0:T(8,128)}', space=vmem, size = 0x28000, scoped, tag = 'scratch operand']
  #allocation3 [shape = 'f32[96,8]{1,0:T(8,128)}', space=vmem, size = 0xc000, scoped, tag = 'scratch operand']
  #allocation4 [shape = 'f32[32,16]{1,0:T(8,128)}', space=vmem, size = 0x4000, scoped, tag = 'scratch operand']
  %s0 = inlined_call_operand.vmem [shape: f32[2,16,16,4], index: 0, kind: input, shape index: {}]
  %s1 = inlined_call_operand.vmem [shape: f32[3,3,4,8], index: 1, kind: input, shape index: {}]
  %s2 = inlined_call_operand.vmem [shape: f32[1,8], index: 2, kind: input, shape index: {}]
  %s3 = inlined_call_operand.vmem [shape: f32[3,3,8,16], index: 3, kind: input, shape index: {}]
  %s4 = inlined_call_operand.vmem [shape: f32[1,16], index: 4, kind: input, shape index: {}]
  %s5 = inlined_call_operand.vmem [shape: f32[3,3,16,32], index: 5, kind: input, shape index: {}]
  %s6 = inlined_call_operand.vmem [shape: f32[1,32], index: 6, kind: input, shape index: {}]
  %s7 = inlined_call_operand.vmem [shape: f32[4,32,10], index: 7, kind: input, shape index: {}]
  %s8 = inlined_call_operand.vmem [shape: f32[1,10], index: 8, kind: input, shape index: {}]
  %s9 = inlined_call_operand.hbm [shape: f32[2,1,10], index: 9, kind: output, shape index: {}]
  %s10 = sld [smem:[#allocation0]]
  $region69: #{network_classification_forward.1} parent=0
    _
  %s12 = ssub.s32 1, %s10
  %s13 = scalar_select 0, %s12, %s10
  $region1: #{network_classification_forward.1} parent=0
    #allocation5 [shape = 'u8[1024]{0}', space=vmem, size = 0x400, scoped, tag = 'output window, operand 0']
    #allocation6 [shape = 's32[2]{0}', space=sflag, size = 0x8, scoped, tag = 'scoped memory for network_classification_forward.1']
    %14 = vsyncpa [#allocation6], 0
    %s15 = scalar_lea.sflag [#allocation6], 1
    %16 = vsyncpa %s15, 0
    loop: start=0, step=1, limit=4
    $region2: #{network_classification_forward.1} parent=1 // loop_pre_header
      _
    $region3: #{network_classification_forward.1} parent=1 // loop_header
      %s18 = sphi 0, %s22
      %p19 = scmp.ge.s32.totalorder %s18, 4
      %s28 = sphi 0, %s30
      %s31 = sphi 0, %s28
      %s32 = sphi 0, %s31
      %s48 = sphi 0, %s32
      %s52 = sphi 0, %s52
      %s54 = sphi 0, %s52
      %s55 = sphi 0, %s54
      %s69 = sphi 0, %s55
      %s73 = sphi 0, %s73
      %s75 = sphi 0, %s73
      %s76 = sphi 0, %s75
      %s90 = sphi 0, %s76
      %s94 = sphi 0, %s94
      %s96 = sphi 0, %s94
      %s97 = sphi 0, %s96
      %s111 = sphi 0, %s97
      %s115 = sphi 0, %s115
      %s117 = sphi 0, %s115
      %s118 = sphi 0, %s117
      %s132 = sphi 0, %s118
      %s136 = sphi 0, %s136
      %s138 = sphi 0, %s136
      %s139 = sphi 0, %s138
      %s153 = sphi 0, %s139
      %s157 = sphi 0, %s157
      %s159 = sphi 0, %s157
      %s160 = sphi 0, %s159
      %s174 = sphi 0, %s160
      %s178 = sphi 0, %s178
      %s180 = sphi 0, %s178
      %s181 = sphi 0, %s180
      %s195 = sphi 0, %s181
      %s199 = sphi 0, %s199
      %s201 = sphi 0, %s199
      %s202 = sphi 0, %s201
      %s216 = sphi 0, %s202
      %s222 = sphi 0, %s224
      %s225 = sphi 0, %s222
      %s226 = sphi 0, %s225
      %s242 = sphi 0, %s226
    $region4: #{network_classification_forward.1} parent=1 // loop_header_branch
      %21 = sbr.rel (%p19) target = $region8
    $region5: #{network_classification_forward.1} parent=1 // loop_body
      %s23 = ssub.s32 %s18, 1
      %s24 = ssub.s32 %s18, 2
      %s25 = sadd.s32 %s18, 1
      %s26 = ssub.s32 %s18, %s25
      %p27 = scmp.eq.s32.totalorder %s26, 0
      %s29 = sadd.s32 %s28, 1
      %s30 = scalar_select %p27, %s28, %s29
      %p33 = pneg %p27
      %p34 = scmp.eq.s32.totalorder %s18, 1
      %p35 = por %p33, %p34
      %p36 = scmp.ne.s32.totalorder %s28, %s31
      %p37 = scmp.eq.s32.totalorder %s18, 0
      %p38 = por %p36, %p37
      %p39 = scmp.ne.s32.totalorder %s28, %s31
      %p40 = scmp.eq.s32.totalorder %s23, 1
      %p41 = por %p39, %p40
      %p42 = scmp.ne.s32.totalorder %s31, %s32
      %p43 = scmp.eq.s32.totalorder %s23, 0
      %p44 = por %p42, %p43
      %p45 = scmp.ne.s32.totalorder %s31, %s32
      %p46 = scmp.eq.s32.totalorder %s24, 1
      %p47 = por %p45, %p46
      %p49 = scmp.ne.s32.totalorder %s32, %s48
      %p50 = scmp.eq.s32.totalorder %s24, 0
      %p51 = por %p49, %p50
      %s53 = sadd.s32 %s52, 1
      %p56 = scmp.eq.s32.totalorder %s18, 1
      %p57 = scmp.ne.s32.totalorder %s52, %s54
      %p58 = scmp.eq.s32.totalorder %s18, 0
      %p59 = por %p57, %p58
      %p60 = scmp.ne.s32.totalorder %s52, %s54
      %p61 = scmp.eq.s32.totalorder %s23, 1
      %p62 = por %p60, %p61
      %p63 = scmp.ne.s32.totalorder %s54, %s55
      %p64 = scmp.eq.s32.totalorder %s23, 0
      %p65 = por %p63, %p64
      %p66 = scmp.ne.s32.totalorder %s54, %s55
      %p67 = scmp.eq.s32.totalorder %s24, 1
      %p68 = por %p66, %p67
      %p70 = scmp.ne.s32.totalorder %s55, %s69
      %p71 = scmp.eq.s32.totalorder %s24, 0
      %p72 = por %p70, %p71
      %s74 = sadd.s32 %s73, 1
      %p77 = scmp.eq.s32.totalorder %s18, 1
      %p78 = scmp.ne.s32.totalorder %s73, %s75
      %p79 = scmp.eq.s32.totalorder %s18, 0
      %p80 = por %p78, %p79
      %p81 = scmp.ne.s32.totalorder %s73, %s75
      %p82 = scmp.eq.s32.totalorder %s23, 1
      %p83 = por %p81, %p82
      %p84 = scmp.ne.s32.totalorder %s75, %s76
      %p85 = scmp.eq.s32.totalorder %s23, 0
      %p86 = por %p84, %p85
      %p87 = scmp.ne.s32.totalorder %s75, %s76
      %p88 = scmp.eq.s32.totalorder %s24, 1
      %p89 = por %p87, %p88
      %p91 = scmp.ne.s32.totalorder %s76, %s90
      %p92 = scmp.eq.s32.totalorder %s24, 0
      %p93 = por %p91, %p92
      %s95 = sadd.s32 %s94, 1
      %p98 = scmp.eq.s32.totalorder %s18, 1
      %p99 = scmp.ne.s32.totalorder %s94, %s96
      %p100 = scmp.eq.s32.totalorder %s18, 0
      %p101 = por %p99, %p100
      %p102 = scmp.ne.s32.totalorder %s94, %s96
      %p103 = scmp.eq.s32.totalorder %s23, 1
      %p104 = por %p102, %p103
      %p105 = scmp.ne.s32.totalorder %s96, %s97
      %p106 = scmp.eq.s32.totalorder %s23, 0
      %p107 = por %p105, %p106
      %p108 = scmp.ne.s32.totalorder %s96, %s97
      %p109 = scmp.eq.s32.totalorder %s24, 1
      %p110 = por %p108, %p109
      %p112 = scmp.ne.s32.totalorder %s97, %s111
      %p113 = scmp.eq.s32.totalorder %s24, 0
      %p114 = por %p112, %p113
      %s116 = sadd.s32 %s115, 1
      %p119 = scmp.eq.s32.totalorder %s18, 1
      %p120 = scmp.ne.s32.totalorder %s115, %s117
      %p121 = scmp.eq.s32.totalorder %s18, 0
      %p122 = por %p120, %p121
      %p123 = scmp.ne.s32.totalorder %s115, %s117
      %p124 = scmp.eq.s32.totalorder %s23, 1
      %p125 = por %p123, %p124
      %p126 = scmp.ne.s32.totalorder %s117, %s118
      %p127 = scmp.eq.s32.totalorder %s23, 0
      %p128 = por %p126, %p127
      %p129 = scmp.ne.s32.totalorder %s117, %s118
      %p130 = scmp.eq.s32.totalorder %s24, 1
      %p131 = por %p129, %p130
      %p133 = scmp.ne.s32.totalorder %s118, %s132
      %p134 = scmp.eq.s32.totalorder %s24, 0
      %p135 = por %p133, %p134
      %s137 = sadd.s32 %s136, 1
      %p140 = scmp.eq.s32.totalorder %s18, 1
      %p141 = scmp.ne.s32.totalorder %s136, %s138
      %p142 = scmp.eq.s32.totalorder %s18, 0
      %p143 = por %p141, %p142
      %p144 = scmp.ne.s32.totalorder %s136, %s138
      %p145 = scmp.eq.s32.totalorder %s23, 1
      %p146 = por %p144, %p145
      %p147 = scmp.ne.s32.totalorder %s138, %s139
      %p148 = scmp.eq.s32.totalorder %s23, 0
      %p149 = por %p147, %p148
      %p150 = scmp.ne.s32.totalorder %s138, %s139
      %p151 = scmp.eq.s32.totalorder %s24, 1
      %p152 = por %p150, %p151
      %p154 = scmp.ne.s32.totalorder %s139, %s153
      %p155 = scmp.eq.s32.totalorder %s24, 0
      %p156 = por %p154, %p155
      %s158 = sadd.s32 %s157, 1
      %p161 = scmp.eq.s32.totalorder %s18, 1
      %p162 = scmp.ne.s32.totalorder %s157, %s159
      %p163 = scmp.eq.s32.totalorder %s18, 0
      %p164 = por %p162, %p163
      %p165 = scmp.ne.s32.totalorder %s157, %s159
      %p166 = scmp.eq.s32.totalorder %s23, 1
      %p167 = por %p165, %p166
      %p168 = scmp.ne.s32.totalorder %s159, %s160
      %p169 = scmp.eq.s32.totalorder %s23, 0
      %p170 = por %p168, %p169
      %p171 = scmp.ne.s32.totalorder %s159, %s160
      %p172 = scmp.eq.s32.totalorder %s24, 1
      %p173 = por %p171, %p172
      %p175 = scmp.ne.s32.totalorder %s160, %s174
      %p176 = scmp.eq.s32.totalorder %s24, 0
      %p177 = por %p175, %p176
      %s179 = sadd.s32 %s178, 1
      %p182 = scmp.eq.s32.totalorder %s18, 1
      %p183 = scmp.ne.s32.totalorder %s178, %s180
      %p184 = scmp.eq.s32.totalorder %s18, 0
      %p185 = por %p183, %p184
      %p186 = scmp.ne.s32.totalorder %s178, %s180
      %p187 = scmp.eq.s32.totalorder %s23, 1
      %p188 = por %p186, %p187
      %p189 = scmp.ne.s32.totalorder %s180, %s181
      %p190 = scmp.eq.s32.totalorder %s23, 0
      %p191 = por %p189, %p190
      %p192 = scmp.ne.s32.totalorder %s180, %s181
      %p193 = scmp.eq.s32.totalorder %s24, 1
      %p194 = por %p192, %p193
      %p196 = scmp.ne.s32.totalorder %s181, %s195
      %p197 = scmp.eq.s32.totalorder %s24, 0
      %p198 = por %p196, %p197
      %s200 = sadd.s32 %s199, 1
      %p203 = scmp.eq.s32.totalorder %s18, 1
      %p204 = scmp.ne.s32.totalorder %s199, %s201
      %p205 = scmp.eq.s32.totalorder %s18, 0
      %p206 = por %p204, %p205
      %p207 = scmp.ne.s32.totalorder %s199, %s201
      %p208 = scmp.eq.s32.totalorder %s23, 1
      %p209 = por %p207, %p208
      %p210 = scmp.ne.s32.totalorder %s201, %s202
      %p211 = scmp.eq.s32.totalorder %s23, 0
      %p212 = por %p210, %p211
      %p213 = scmp.ne.s32.totalorder %s201, %s202
      %p214 = scmp.eq.s32.totalorder %s24, 1
      %p215 = por %p213, %p214
      %p217 = scmp.ne.s32.totalorder %s202, %s216
      %p218 = scmp.eq.s32.totalorder %s24, 0
      %p219 = por %p217, %p218
      %s220 = ssub.s32 %s18, %s25
      %p221 = scmp.eq.s32.totalorder %s220, 0
      %s223 = sadd.s32 %s222, 1
      %s224 = scalar_select %p221, %s222, %s223
      %p227 = pneg %p221
      %p228 = scmp.eq.s32.totalorder %s18, 1
      %p229 = por %p227, %p228
      %p230 = scmp.ne.s32.totalorder %s222, %s225
      %p231 = scmp.eq.s32.totalorder %s18, 0
      %p232 = por %p230, %p231
      %p233 = scmp.ne.s32.totalorder %s222, %s225
      %p234 = scmp.eq.s32.totalorder %s23, 1
      %p235 = por %p233, %p234
      %p236 = scmp.ne.s32.totalorder %s225, %s226
      %p237 = scmp.eq.s32.totalorder %s23, 0
      %p238 = por %p236, %p237
      %p239 = scmp.ne.s32.totalorder %s225, %s226
      %p240 = scmp.eq.s32.totalorder %s24, 1
      %p241 = por %p239, %p240
      %p243 = scmp.ne.s32.totalorder %s226, %s242
      %p244 = scmp.eq.s32.totalorder %s24, 0
      %p245 = por %p243, %p244
      %p246 = scmp.le.s32.totalorder 1, %s18
      %p247 = scmp.lt.s32.totalorder %s18, 3
      %p248 = pnand %p246, %p247
      %p249 = pneg %p248
      // Predicated region
      $region9: #{network_classification_forward.1} parent=5 // pred_check
        _
      $region10: #{network_classification_forward.1} parent=5 // pred_check_branch
        %251 = sbr.rel (%p248) target = $region12
      $region11: #{network_classification_forward.1} parent=5 // pred_region
        %s252 = ssub.s32 %s18, 1
        // Predicated region
        $region13: #{network_classification_forward.1} parent=11 // pred_check
          %p253 = pneg %p65
        $region14: #{network_classification_forward.1} parent=11 // pred_check_branch
          %255 = sbr.rel (%p253) target = $region16
        $region15: #{network_classification_forward.1} parent=11 // pred_region
          _
        $region16: #{network_classification_forward.1} parent=11 // pred_fallthru
          _
        // Predicated region
        $region17: #{network_classification_forward.1} parent=11 // pred_check
          %p256 = pneg %p86
        $region18: #{network_classification_forward.1} parent=11 // pred_check_branch
          %258 = sbr.rel (%p256) target = $region20
        $region19: #{network_classification_forward.1} parent=11 // pred_region
          _
        $region20: #{network_classification_forward.1} parent=11 // pred_fallthru
          _
        // Predicated region
        $region21: #{network_classification_forward.1} parent=11 // pred_check
          %p259 = pneg %p107
        $region22: #{network_classification_forward.1} parent=11 // pred_check_branch
          %261 = sbr.rel (%p259) target = $region24
        $region23: #{network_classification_forward.1} parent=11 // pred_region
          _
        $region24: #{network_classification_forward.1} parent=11 // pred_fallthru
          _
        // Predicated region
        $region25: #{network_classification_forward.1} parent=11 // pred_check
          %p262 = pneg %p128
        $region26: #{network_classification_forward.1} parent=11 // pred_check_branch
          %264 = sbr.rel (%p262) target = $region28
        $region27: #{network_classification_forward.1} parent=11 // pred_region
          _
        $region28: #{network_classification_forward.1} parent=11 // pred_fallthru
          _
        // Predicated region
        $region29: #{network_classification_forward.1} parent=11 // pred_check
          %p265 = pneg %p149
        $region30: #{network_classification_forward.1} parent=11 // pred_check_branch
          %267 = sbr.rel (%p265) target = $region32
        $region31: #{network_classification_forward.1} parent=11 // pred_region
          _
        $region32: #{network_classification_forward.1} parent=11 // pred_fallthru
          _
        // Predicated region
        $region33: #{network_classification_forward.1} parent=11 // pred_check
          %p268 = pneg %p170
        $region34: #{network_classification_forward.1} parent=11 // pred_check_branch
          %270 = sbr.rel (%p268) target = $region36
        $region35: #{network_classification_forward.1} parent=11 // pred_region
          _
        $region36: #{network_classification_forward.1} parent=11 // pred_fallthru
          _
        // Predicated region
        $region37: #{network_classification_forward.1} parent=11 // pred_check
          %p271 = pneg %p191
        $region38: #{network_classification_forward.1} parent=11 // pred_check_branch
          %273 = sbr.rel (%p271) target = $region40
        $region39: #{network_classification_forward.1} parent=11 // pred_region
          _
        $region40: #{network_classification_forward.1} parent=11 // pred_fallthru
          _
        // Predicated region
        $region41: #{network_classification_forward.1} parent=11 // pred_check
          %p274 = pneg %p212
        $region42: #{network_classification_forward.1} parent=11 // pred_check_branch
          %276 = sbr.rel (%p274) target = $region44
        $region43: #{network_classification_forward.1} parent=11 // pred_region
          _
        $region44: #{network_classification_forward.1} parent=11 // pred_fallthru
          _
      $region12: #{network_classification_forward.1} parent=5 // pred_fallthru
        _
      %p277 = scmp.lt.s32.totalorder %s18, 2
      // Predicated region
      $region45: #{network_classification_forward.1} parent=5 // pred_check
        %p278 = pneg %p277
      $region46: #{network_classification_forward.1} parent=5 // pred_check_branch
        %280 = sbr.rel (%p278) target = $region48
      $region47: #{network_classification_forward.1} parent=5 // pred_region
        // Predicated region
        $region49: #{network_classification_forward.1} parent=47 // pred_check
          %p281 = pneg %p38
        $region50: #{network_classification_forward.1} parent=47 // pred_check_branch
          %283 = sbr.rel (%p281) target = $region52
        $region51: #{network_classification_forward.1} parent=47 // pred_region
          %p284 = scmp.lt.s32.totalorder %s18, 1
          %s285 = scalar_select %p284, %s18, 1
          %s286 = smul.addr %s285, 32
          %s287 = smul.addr %s286, 8
          %s288 = scalar_lea.vmem %s0, %s287
        $region52: #{network_classification_forward.1} parent=47 // pred_fallthru
          _
      $region48: #{network_classification_forward.1} parent=5 // pred_fallthru
        _
      %p289 = scmp.le.s32.totalorder 1, %s18
      %p290 = scmp.lt.s32.totalorder %s18, 3
      %p291 = pnand %p289, %p290
      %p292 = pneg %p291
      // Predicated region
      $region53: #{network_classification_forward.1} parent=5 // pred_check
        _
      $region54: #{network_classification_forward.1} parent=5 // pred_check_branch
        %294 = sbr.rel (%p291) target = $region56
      $region55: #{network_classification_forward.1} parent=5 // pred_region
        %s295 = ssub.s32 %s18, 1
        %p296 = scmp.lt.s32.totalorder %s23, 1
        %s297 = scalar_select %p296, %s23, 1
        %s298 = smul.addr %s297, 32
        %s299 = smul.addr %s298, 8
        %s300 = scalar_lea.vmem %s0, %s299
        %p301 = pneg %p44
        %p302 = pneg %p41
        %p303 = pneg %p65
        %p304 = pneg %p62
        %p305 = pneg %p86
        %p306 = pneg %p83
        %p307 = pneg %p107
        %p308 = pneg %p104
        %p309 = pneg %p128
        %p310 = pneg %p125
        %p311 = pneg %p149
        %p312 = pneg %p146
        %p313 = pneg %p170
        %p314 = pneg %p167
        %p315 = pneg %p191
        %p316 = pneg %p188
        %p317 = pneg %p212
        %p318 = pneg %p209
        %p319 = pneg %p238
        %p320 = pneg %p235
        %s321 = sand.u32 %s225, 1
        %s322 = scalar_lea.sflag [#allocation6], %s321
        %s323 = sand.u32 %s225, 1
        %s324 = scalar_lea.vmem [#allocation5], %s323
        %p325 = scmp.lt.s32.totalorder %s23, 1
        %s326 = scalar_select %p325, %s23, 1
        %s327 = smul.addr %s326, 32
        %s328 = smul.addr %s327, 8
        %s329 = scalar_lea.vmem %s0, %s328
        %v330 = vld [vmem:[%s329] sm:$0xff]
        %v331 = vld [vmem:[%s329 + $0x8] sm:$0xff]
        %v332 = vld [vmem:[%s329 + $0x10] sm:$0xff]
        %v333 = vld [vmem:[%s329 + $0x18] sm:$0xff]
        %v334 = vld [vmem:[%s329 + $0x20] sm:$0xff]
        %v335 = vld [vmem:[%s329 + $0x28] sm:$0xff]
        %v336 = vld [vmem:[%s329 + $0x30] sm:$0xff]
        %v337 = vld [vmem:[%s329 + $0x38] sm:$0xff]
        %v338 = vld [vmem:[%s329 + $0x40] sm:$0xff]
        %v339 = vld [vmem:[%s329 + $0x48] sm:$0xff]
        %v340 = vld [vmem:[%s329 + $0x50] sm:$0xff]
        %v341 = vld [vmem:[%s329 + $0x58] sm:$0xff]
        %v342 = vld [vmem:[%s329 + $0x60] sm:$0xff]
        %v343 = vld [vmem:[%s329 + $0x68] sm:$0xff]
        %v344 = vld [vmem:[%s329 + $0x70] sm:$0xff]
        %v345 = vld [vmem:[%s329 + $0x78] sm:$0xff]
        %v346 = vld [vmem:[%s329 + $0x80] sm:$0xff]
        %v347 = vld [vmem:[%s329 + $0x88] sm:$0xff]
        %v348 = vld [vmem:[%s329 + $0x90] sm:$0xff]
        %v349 = vld [vmem:[%s329 + $0x98] sm:$0xff]
        %v350 = vld [vmem:[%s329 + $0xa0] sm:$0xff]
        %v351 = vld [vmem:[%s329 + $0xa8] sm:$0xff]
        %v352 = vld [vmem:[%s329 + $0xb0] sm:$0xff]
        %v353 = vld [vmem:[%s329 + $0xb8] sm:$0xff]
        %v354 = vld [vmem:[%s329 + $0xc0] sm:$0xff]
        %v355 = vld [vmem:[%s329 + $0xc8] sm:$0xff]
        %v356 = vld [vmem:[%s329 + $0xd0] sm:$0xff]
        %v357 = vld [vmem:[%s329 + $0xd8] sm:$0xff]
        %v358 = vld [vmem:[%s329 + $0xe0] sm:$0xff]
        %v359 = vld [vmem:[%s329 + $0xe8] sm:$0xff]
        %v360 = vld [vmem:[%s329 + $0xf0] sm:$0xff]
        %v361 = vld [vmem:[%s329 + $0xf8] sm:$0xff]
        %vm362 = vcmask 31744
        %363 = vst.msk [vmem:[#allocation2] sm:$0xff] %vm362, 0.0
        %364 = vst.msk [vmem:[#allocation2 + $0x8] sm:$0xff] %vm362, 0.0
        %365 = vst.msk [vmem:[#allocation2 + $0x10] sm:$0xff] %vm362, 0.0
        %366 = vst.msk [vmem:[#allocation2 + $0x18] sm:$0xff] %vm362, 0.0
        %367 = vst.msk [vmem:[#allocation2 + $0x20] sm:$0xff] %vm362, %v330
        %368 = vst.msk [vmem:[#allocation2 + $0x28] sm:$0xff] %vm362, %v331
        %369 = vst.msk [vmem:[#allocation2 + $0x30] sm:$0xff] %vm362, %v332
        %370 = vst.msk [vmem:[#allocation2 + $0x38] sm:$0xff] %vm362, %v333
        %371 = vst.msk [vmem:[#allocation2 + $0x40] sm:$0xff] %vm362, %v334
        %372 = vst.msk [vmem:[#allocation2 + $0x48] sm:$0xff] %vm362, %v335
        %373 = vst.msk [vmem:[#allocation2 + $0x50] sm:$0xff] %vm362, %v336
        %374 = vst.msk [vmem:[#allocation2 + $0x58] sm:$0xff] %vm362, %v337
        %375 = vst.msk [vmem:[#allocation2 + $0x60] sm:$0xff] %vm362, %v338
        %376 = vst.msk [vmem:[#allocation2 + $0x68] sm:$0xff] %vm362, %v339
        %377 = vst.msk [vmem:[#allocation2 + $0x70] sm:$0xff] %vm362, %v340
        %378 = vst.msk [vmem:[#allocation2 + $0x78] sm:$0xff] %vm362, %v341
        %379 = vst.msk [vmem:[#allocation2 + $0x80] sm:$0xff] %vm362, %v342
        %380 = vst.msk [vmem:[#allocation2 + $0x88] sm:$0xff] %vm362, %v343
        %381 = vst.msk [vmem:[#allocation2 + $0x90] sm:$0xff] %vm362, %v344
        %382 = vst.msk [vmem:[#allocation2 + $0x98] sm:$0xff] %vm362, %v345
        %383 = vst.msk [vmem:[#allocation2 + $0xa0] sm:$0xff] %vm362, %v346
        %384 = vst.msk [vmem:[#allocation2 + $0xa8] sm:$0xff] %vm362, %v347
        %385 = vst.msk [vmem:[#allocation2 + $0xb0] sm:$0xff] %vm362, %v348
        %386 = vst.msk [vmem:[#allocation2 + $0xb8] sm:$0xff] %vm362, %v349
        %387 = vst.msk [vmem:[#allocation2 + $0xc0] sm:$0xff] %vm362, %v350
        %388 = vst.msk [vmem:[#allocation2 + $0xc8] sm:$0xff] %vm362, %v351
        %389 = vst.msk [vmem:[#allocation2 + $0xd0] sm:$0xff] %vm362, %v352
        %390 = vst.msk [vmem:[#allocation2 + $0xd8] sm:$0xff] %vm362, %v353
        %391 = vst.msk [vmem:[#allocation2 + $0xe0] sm:$0xff] %vm362, %v354
        %392 = vst.msk [vmem:[#allocation2 + $0xe8] sm:$0xff] %vm362, %v355
        %393 = vst.msk [vmem:[#allocation2 + $0xf0] sm:$0xff] %vm362, %v356
        %394 = vst.msk [vmem:[#allocation2 + $0xf8] sm:$0xff] %vm362, %v357
        %395 = vst.msk [vmem:[#allocation2 + $0x100] sm:$0xff] %vm362, %v358
        %396 = vst.msk [vmem:[#allocation2 + $0x108] sm:$0xff] %vm362, %v359
        %397 = vst.msk [vmem:[#allocation2 + $0x110] sm:$0xff] %vm362, %v360
        %398 = vst.msk [vmem:[#allocation2 + $0x118] sm:$0xff] %vm362, %v361
        %399 = vst.msk [vmem:[#allocation2 + $0x120] sm:$0xff] %vm362, 0.0
        %400 = vst.msk [vmem:[#allocation2 + $0x128] sm:$0xff] %vm362, 0.0
        %401 = vst.msk [vmem:[#allocation2 + $0x130] sm:$0xff] %vm362, 0.0
        %402 = vst.msk [vmem:[#allocation2 + $0x138] sm:$0xff] %vm362, 0.0
        %v403 = vlaneseq
        %v404 = vshrl.u32 %v403, 7
        %v405 = vadd.s32 %v404, 8
        %v406 = vld [vmem:[#allocation2 + $0xf] sm:$0xff]
        %v407 = vld [vmem:[#allocation2 + $0x17] sm:$0xff]
        %v408 = vld [vmem:[#allocation2 + $0x1f] sm:$0xff]
        %v409 = vld [vmem:[#allocation2 + $0x27] sm:$0xff]
        %v410 = vld [vmem:[#allocation2 + $0x2f] sm:$0xff]
        %v411 = vld [vmem:[#allocation2 + $0x37] sm:$0xff]
        %v412 = vld [vmem:[#allocation2 + $0x3f] sm:$0xff]
        %v413 = vld [vmem:[#allocation2 + $0x47] sm:$0xff]
        %v414 = vld [vmem:[#allocation2 + $0x4f] sm:$0xff]
        %v415 = vld [vmem:[#allocation2 + $0x57] sm:$0xff]
        %v416 = vld [vmem:[#allocation2 + $0x5f] sm:$0xff]
        %v417 = vld [vmem:[#allocation2 + $0x67] sm:$0xff]
        %v418 = vld [vmem:[#allocation2 + $0x6f] sm:$0xff]
        %v419 = vld [vmem:[#allocation2 + $0x77] sm:$0xff]
        %v420 = vld [vmem:[#allocation2 + $0x7f] sm:$0xff]
        %v421 = vld [vmem:[#allocation2 + $0x87] sm:$0xff]
        %v422 = vld [vmem:[#allocation2 + $0x8f] sm:$0xff]
        %v423 = vld [vmem:[#allocation2 + $0x97] sm:$0xff]
        %v424 = vld [vmem:[#allocation2 + $0x9f] sm:$0xff]
        %v425 = vld [vmem:[#allocation2 + $0xa7] sm:$0xff]
        %v426 = vld [vmem:[#allocation2 + $0xaf] sm:$0xff]
        %v427 = vld [vmem:[#allocation2 + $0xb7] sm:$0xff]
        %v428 = vld [vmem:[#allocation2 + $0xbf] sm:$0xff]
        %v429 = vld [vmem:[#allocation2 + $0xc7] sm:$0xff]
        %v430 = vld [vmem:[#allocation2 + $0xcf] sm:$0xff]
        %v431 = vld [vmem:[#allocation2 + $0xd7] sm:$0xff]
        %v432 = vld [vmem:[#allocation2 + $0xdf] sm:$0xff]
        %v433 = vld [vmem:[#allocation2 + $0xe7] sm:$0xff]
        %v434 = vld [vmem:[#allocation2 + $0xef] sm:$0xff]
        %v435 = vld [vmem:[#allocation2 + $0xf7] sm:$0xff]
        %v436 = vld [vmem:[#allocation2 + $0xff] sm:$0xff]
        %v437 = vld [vmem:[#allocation2 + $0x107] sm:$0xff]
        %vm438 = vcmp.ge.s32.totalorder %v404, 1
        %vm439 = vcmp.ge.s32.totalorder %v405, 1
        %v440 = vsel %vm438, %v406, 0.0
        %v441 = vsel %vm439, %v407, 0.0
        %v442 = vsel %vm438, %v408, 0.0
        %v443 = vsel %vm439, %v409, 0.0
        %v444 = vsel %vm438, %v410, 0.0
        %v445 = vsel %vm439, %v411, 0.0
        %v446 = vsel %vm438, %v412, 0.0
        %v447 = vsel %vm439, %v413, 0.0
        %v448 = vsel %vm438, %v414, 0.0
        %v449 = vsel %vm439, %v415, 0.0
        %v450 = vsel %vm438, %v416, 0.0
        %v451 = vsel %vm439, %v417, 0.0
        %v452 = vsel %vm438, %v418, 0.0
        %v453 = vsel %vm439, %v419, 0.0
        %v454 = vsel %vm438, %v420, 0.0
        %v455 = vsel %vm439, %v421, 0.0
        %v456 = vsel %vm438, %v422, 0.0
        %v457 = vsel %vm439, %v423, 0.0
        %v458 = vsel %vm438, %v424, 0.0
        %v459 = vsel %vm439, %v425, 0.0
        %v460 = vsel %vm438, %v426, 0.0
        %v461 = vsel %vm439, %v427, 0.0
        %v462 = vsel %vm438, %v428, 0.0
        %v463 = vsel %vm439, %v429, 0.0
        %v464 = vsel %vm438, %v430, 0.0
        %v465 = vsel %vm439, %v431, 0.0
        %v466 = vsel %vm438, %v432, 0.0
        %v467 = vsel %vm439, %v433, 0.0
        %v468 = vsel %vm438, %v434, 0.0
        %v469 = vsel %vm439, %v435, 0.0
        %v470 = vsel %vm438, %v436, 0.0
        %v471 = vsel %vm439, %v437, 0.0
        %v472 = vld [vmem:[%s1] sm:$0xf]
        %v473 = vld [vmem:[#allocation2 + $0x10] sm:$0xff]
        %v474 = vld [vmem:[#allocation2 + $0x18] sm:$0xff]
        %v475 = vld [vmem:[#allocation2 + $0x20] sm:$0xff]
        %v476 = vld [vmem:[#allocation2 + $0x28] sm:$0xff]
        %v477 = vld [vmem:[#allocation2 + $0x30] sm:$0xff]
        %v478 = vld [vmem:[#allocation2 + $0x38] sm:$0xff]
        %v479 = vld [vmem:[#allocation2 + $0x40] sm:$0xff]
        %v480 = vld [vmem:[#allocation2 + $0x48] sm:$0xff]
        %v481 = vld [vmem:[#allocation2 + $0x50] sm:$0xff]
        %v482 = vld [vmem:[#allocation2 + $0x58] sm:$0xff]
        %v483 = vld [vmem:[#allocation2 + $0x60] sm:$0xff]
        %v484 = vld [vmem:[#allocation2 + $0x68] sm:$0xff]
        %v485 = vld [vmem:[#allocation2 + $0x70] sm:$0xff]
        %v486 = vld [vmem:[#allocation2 + $0x78] sm:$0xff]
        %v487 = vld [vmem:[#allocation2 + $0x80] sm:$0xff]
        %v488 = vld [vmem:[#allocation2 + $0x88] sm:$0xff]
        %v489 = vld [vmem:[#allocation2 + $0x90] sm:$0xff]
        %v490 = vld [vmem:[#allocation2 + $0x98] sm:$0xff]
        %v491 = vld [vmem:[#allocation2 + $0xa0] sm:$0xff]
        %v492 = vld [vmem:[#allocation2 + $0xa8] sm:$0xff]
        %v493 = vld [vmem:[#allocation2 + $0xb0] sm:$0xff]
        %v494 = vld [vmem:[#allocation2 + $0xb8] sm:$0xff]
        %v495 = vld [vmem:[#allocation2 + $0xc0] sm:$0xff]
        %v496 = vld [vmem:[#allocation2 + $0xc8] sm:$0xff]
        %v497 = vld [vmem:[#allocation2 + $0xd0] sm:$0xff]
        %v498 = vld [vmem:[#allocation2 + $0xd8] sm:$0xff]
        %v499 = vld [vmem:[#allocation2 + $0xe0] sm:$0xff]
        %v500 = vld [vmem:[#allocation2 + $0xe8] sm:$0xff]
        %v501 = vld [vmem:[#allocation2 + $0xf0] sm:$0xff]
        %v502 = vld [vmem:[#allocation2 + $0xf8] sm:$0xff]
        %v503 = vld [vmem:[#allocation2 + $0x100] sm:$0xff]
        %v504 = vld [vmem:[#allocation2 + $0x108] sm:$0xff]
        %s505 = scalar_lea.vmem %s1, 4
        %v506 = vld [vmem:[%s505] sm:$0xf]
        %v508 = vsel %vm362, %v473, 0
        %v511 = vsel %vm362, %v474, 0
        %v514 = vsel %vm362, %v475, 0
        %v517 = vsel %vm362, %v476, 0
        %v520 = vsel %vm362, %v477, 0
        %v523 = vsel %vm362, %v478, 0
        %v526 = vsel %vm362, %v479, 0
        %v529 = vsel %vm362, %v480, 0
        %v532 = vsel %vm362, %v481, 0
        %v535 = vsel %vm362, %v482, 0
        %v538 = vsel %vm362, %v483, 0
        %v541 = vsel %vm362, %v484, 0
        %v544 = vsel %vm362, %v485, 0
        %v547 = vsel %vm362, %v486, 0
        %v550 = vsel %vm362, %v487, 0
        %v553 = vsel %vm362, %v488, 0
        %v556 = vsel %vm362, %v489, 0
        %v559 = vsel %vm362, %v490, 0
        %v562 = vsel %vm362, %v491, 0
        %v565 = vsel %vm362, %v492, 0
        %v568 = vsel %vm362, %v493, 0
        %v571 = vsel %vm362, %v494, 0
        %v574 = vsel %vm362, %v495, 0
        %v577 = vsel %vm362, %v496, 0
        %v580 = vsel %vm362, %v497, 0
        %v583 = vsel %vm362, %v498, 0
        %v586 = vsel %vm362, %v499, 0
        %v589 = vsel %vm362, %v500, 0
        %v592 = vsel %vm362, %v501, 0
        %v595 = vsel %vm362, %v502, 0
        %v598 = vsel %vm362, %v503, 0
        %v601 = vsel %vm362, %v504, 0
        %vm603 = vcmask 1043456
        %v605 = vsel %vm603, %v506, 0
        %607 = vmatpush.msra.mxu0 0.0
        %608 = vmatpush.msra.mxu0 0.0
        %609 = vmatpush.msra.mxu0 0.0
        %610 = vmatpush.msra.mxu0 0.0
        %611 = vmatpush.msra.mxu0 0.0
        %612 = vmatpush.msra.mxu0 0.0
        %613 = vmatpush.msra.mxu0 0.0
        %614 = vmatpush.msra.mxu0 0.0
        %615 = vmatpush.msra.mxu0 0.0
        %616 = vmatpush.msra.mxu0 0.0
        %617 = vmatpush.msra.mxu0 0.0
        %618 = vmatpush.msra.mxu0 0.0
        %619 = vmatpush.msra.mxu0 0.0
        %620 = vmatpush.msra.mxu0 0.0
        %621 = vmatpush.msra.mxu0 0.0
        %622 = vmatpush.msra.mxu0 %v605
        %623 = vmatmul.f32.gmra.mxu0 %v508
        %v624 = vpop.f32.mrf.mxu0
        %v625 = vadd.f32 0.0, %v624
        %626 = vmatmul.f32.gmra.mxu0 %v511
        %v627 = vpop.f32.mrf.mxu0
        %v628 = vadd.f32 0.0, %v627
        %629 = vmatmul.f32.gmra.mxu0 %v514
        %v630 = vpop.f32.mrf.mxu0
        %v631 = vadd.f32 0.0, %v630
        %632 = vmatmul.f32.gmra.mxu0 %v517
        %v633 = vpop.f32.mrf.mxu0
        %v634 = vadd.f32 0.0, %v633
        %635 = vmatmul.f32.gmra.mxu0 %v520
        %v636 = vpop.f32.mrf.mxu0
        %v637 = vadd.f32 0.0, %v636
        %638 = vmatmul.f32.gmra.mxu0 %v523
        %v639 = vpop.f32.mrf.mxu0
        %v640 = vadd.f32 0.0, %v639
        %641 = vmatmul.f32.gmra.mxu0 %v526
        %v642 = vpop.f32.mrf.mxu0
        %v643 = vadd.f32 0.0, %v642
        %644 = vmatmul.f32.gmra.mxu0 %v529
        %v645 = vpop.f32.mrf.mxu0
        %v646 = vadd.f32 0.0, %v645
        %647 = vmatmul.f32.gmra.mxu0 %v532
        %v648 = vpop.f32.mrf.mxu0
        %v649 = vadd.f32 0.0, %v648
        %650 = vmatmul.f32.gmra.mxu0 %v535
        %v651 = vpop.f32.mrf.mxu0
        %v652 = vadd.f32 0.0, %v651
        %653 = vmatmul.f32.gmra.mxu0 %v538
        %v654 = vpop.f32.mrf.mxu0
        %v655 = vadd.f32 0.0, %v654
        %656 = vmatmul.f32.gmra.mxu0 %v541
        %v657 = vpop.f32.mrf.mxu0
        %v658 = vadd.f32 0.0, %v657
        %659 = vmatmul.f32.gmra.mxu0 %v544
        %v660 = vpop.f32.mrf.mxu0
        %v661 = vadd.f32 0.0, %v660
        %662 = vmatmul.f32.gmra.mxu0 %v547
        %v663 = vpop.f32.mrf.mxu0
        %v664 = vadd.f32 0.0, %v663
        %665 = vmatmul.f32.gmra.mxu0 %v550
        %v666 = vpop.f32.mrf.mxu0
        %v667 = vadd.f32 0.0, %v666
        %668 = vmatmul.f32.gmra.mxu0 %v553
        %v669 = vpop.f32.mrf.mxu0
        %v670 = vadd.f32 0.0, %v669
        %671 = vmatmul.f32.gmra.mxu0 %v556
        %v672 = vpop.f32.mrf.mxu0
        %v673 = vadd.f32 0.0, %v672
        %674 = vmatmul.f32.gmra.mxu0 %v559
        %v675 = vpop.f32.mrf.mxu0
        %v676 = vadd.f32 0.0, %v675
        %677 = vmatmul.f32.gmra.mxu0 %v562
        %v678 = vpop.f32.mrf.mxu0
        %v679 = vadd.f32 0.0, %v678
        %680 = vmatmul.f32.gmra.mxu0 %v565
        %v681 = vpop.f32.mrf.mxu0
        %v682 = vadd.f32 0.0, %v681
        %683 = vmatmul.f32.gmra.mxu0 %v568
        %v684 = vpop.f32.mrf.mxu0
        %v685 = vadd.f32 0.0, %v684
        %686 = vmatmul.f32.gmra.mxu0 %v571
        %v687 = vpop.f32.mrf.mxu0
        %v688 = vadd.f32 0.0, %v687
        %689 = vmatmul.f32.gmra.mxu0 %v574
        %v690 = vpop.f32.mrf.mxu0
        %v691 = vadd.f32 0.0, %v690
        %692 = vmatmul.f32.gmra.mxu0 %v577
        %v693 = vpop.f32.mrf.mxu0
        %v694 = vadd.f32 0.0, %v693
        %695 = vmatmul.f32.gmra.mxu0 %v580
        %v696 = vpop.f32.mrf.mxu0
        %v697 = vadd.f32 0.0, %v696
        %698 = vmatmul.f32.gmra.mxu0 %v583
        %v699 = vpop.f32.mrf.mxu0
        %v700 = vadd.f32 0.0, %v699
        %701 = vmatmul.f32.gmra.mxu0 %v586
        %v702 = vpop.f32.mrf.mxu0
        %v703 = vadd.f32 0.0, %v702
        %704 = vmatmul.f32.gmra.mxu0 %v589
        %v705 = vpop.f32.mrf.mxu0
        %v706 = vadd.f32 0.0, %v705
        %707 = vmatmul.f32.gmra.mxu0 %v592
        %v708 = vpop.f32.mrf.mxu0
        %v709 = vadd.f32 0.0, %v708
        %710 = vmatmul.f32.gmra.mxu0 %v595
        %v711 = vpop.f32.mrf.mxu0
        %v712 = vadd.f32 0.0, %v711
        %713 = vmatmul.f32.gmra.mxu0 %v598
        %v714 = vpop.f32.mrf.mxu0
        %v715 = vadd.f32 0.0, %v714
        %716 = vmatmul.f32.gmra.mxu0 %v601
        %v717 = vpop.f32.mrf.mxu0
        %v718 = vadd.f32 0.0, %v717
        %719 = vdwg.mxu0
        %v721 = vsel %vm362, %v440, 0
        %v724 = vsel %vm362, %v441, 0
        %v727 = vsel %vm362, %v442, 0
        %v730 = vsel %vm362, %v443, 0
        %v733 = vsel %vm362, %v444, 0
        %v736 = vsel %vm362, %v445, 0
        %v739 = vsel %vm362, %v446, 0
        %v742 = vsel %vm362, %v447, 0
        %v745 = vsel %vm362, %v448, 0
        %v748 = vsel %vm362, %v449, 0
        %v751 = vsel %vm362, %v450, 0
        %v754 = vsel %vm362, %v451, 0
        %v757 = vsel %vm362, %v452, 0
        %v760 = vsel %vm362, %v453, 0
        %v763 = vsel %vm362, %v454, 0
        %v766 = vsel %vm362, %v455, 0
        %v769 = vsel %vm362, %v456, 0
        %v772 = vsel %vm362, %v457, 0
        %v775 = vsel %vm362, %v458, 0
        %v778 = vsel %vm362, %v459, 0
        %v781 = vsel %vm362, %v460, 0
        %v784 = vsel %vm362, %v461, 0
        %v787 = vsel %vm362, %v462, 0
        %v790 = vsel %vm362, %v463, 0
        %v793 = vsel %vm362, %v464, 0
        %v796 = vsel %vm362, %v465, 0
        %v799 = vsel %vm362, %v466, 0
        %v802 = vsel %vm362, %v467, 0
        %v805 = vsel %vm362, %v468, 0
        %v808 = vsel %vm362, %v469, 0
        %v811 = vsel %vm362, %v470, 0
        %v814 = vsel %vm362, %v471, 0
        %v817 = vsel %vm603, %v472, 0
        %819 = vmatpush.msra.mxu0 0.0
        %820 = vmatpush.msra.mxu0 0.0
        %821 = vmatpush.msra.mxu0 0.0
        %822 = vmatpush.msra.mxu0 0.0
        %823 = vmatpush.msra.mxu0 0.0
        %824 = vmatpush.msra.mxu0 0.0
        %825 = vmatpush.msra.mxu0 0.0
        %826 = vmatpush.msra.mxu0 0.0
        %827 = vmatpush.msra.mxu0 0.0
        %828 = vmatpush.msra.mxu0 0.0
        %829 = vmatpush.msra.mxu0 0.0
        %830 = vmatpush.msra.mxu0 0.0
        %831 = vmatpush.msra.mxu0 0.0
        %832 = vmatpush.msra.mxu0 0.0
        %833 = vmatpush.msra.mxu0 0.0
        %834 = vmatpush.msra.mxu0 %v817
        %835 = vmatmul.f32.gmra.mxu0 %v721
        %v836 = vpop.f32.mrf.mxu0
        %v837 = vadd.f32 %v625, %v836
        %838 = vmatmul.f32.gmra.mxu0 %v724
        %v839 = vpop.f32.mrf.mxu0
        %v840 = vadd.f32 %v628, %v839
        %841 = vmatmul.f32.gmra.mxu0 %v727
        %v842 = vpop.f32.mrf.mxu0
        %v843 = vadd.f32 %v631, %v842
        %844 = vmatmul.f32.gmra.mxu0 %v730
        %v845 = vpop.f32.mrf.mxu0
        %v846 = vadd.f32 %v634, %v845
        %847 = vmatmul.f32.gmra.mxu0 %v733
        %v848 = vpop.f32.mrf.mxu0
        %v849 = vadd.f32 %v637, %v848
        %850 = vmatmul.f32.gmra.mxu0 %v736
        %v851 = vpop.f32.mrf.mxu0
        %v852 = vadd.f32 %v640, %v851
        %853 = vmatmul.f32.gmra.mxu0 %v739
        %v854 = vpop.f32.mrf.mxu0
        %v855 = vadd.f32 %v643, %v854
        %856 = vmatmul.f32.gmra.mxu0 %v742
        %v857 = vpop.f32.mrf.mxu0
        %v858 = vadd.f32 %v646, %v857
        %859 = vmatmul.f32.gmra.mxu0 %v745
        %v860 = vpop.f32.mrf.mxu0
        %v861 = vadd.f32 %v649, %v860
        %862 = vmatmul.f32.gmra.mxu0 %v748
        %v863 = vpop.f32.mrf.mxu0
        %v864 = vadd.f32 %v652, %v863
        %865 = vmatmul.f32.gmra.mxu0 %v751
        %v866 = vpop.f32.mrf.mxu0
        %v867 = vadd.f32 %v655, %v866
        %868 = vmatmul.f32.gmra.mxu0 %v754
        %v869 = vpop.f32.mrf.mxu0
        %v870 = vadd.f32 %v658, %v869
        %871 = vmatmul.f32.gmra.mxu0 %v757
        %v872 = vpop.f32.mrf.mxu0
        %v873 = vadd.f32 %v661, %v872
        %874 = vmatmul.f32.gmra.mxu0 %v760
        %v875 = vpop.f32.mrf.mxu0
        %v876 = vadd.f32 %v664, %v875
        %877 = vmatmul.f32.gmra.mxu0 %v763
        %v878 = vpop.f32.mrf.mxu0
        %v879 = vadd.f32 %v667, %v878
        %880 = vmatmul.f32.gmra.mxu0 %v766
        %v881 = vpop.f32.mrf.mxu0
        %v882 = vadd.f32 %v670, %v881
        %883 = vmatmul.f32.gmra.mxu0 %v769
        %v884 = vpop.f32.mrf.mxu0
        %v885 = vadd.f32 %v673, %v884
        %886 = vmatmul.f32.gmra.mxu0 %v772
        %v887 = vpop.f32.mrf.mxu0
        %v888 = vadd.f32 %v676, %v887
        %889 = vmatmul.f32.gmra.mxu0 %v775
        %v890 = vpop.f32.mrf.mxu0
        %v891 = vadd.f32 %v679, %v890
        %892 = vmatmul.f32.gmra.mxu0 %v778
        %v893 = vpop.f32.mrf.mxu0
        %v894 = vadd.f32 %v682, %v893
        %895 = vmatmul.f32.gmra.mxu0 %v781
        %v896 = vpop.f32.mrf.mxu0
        %v897 = vadd.f32 %v685, %v896
        %898 = vmatmul.f32.gmra.mxu0 %v784
        %v899 = vpop.f32.mrf.mxu0
        %v900 = vadd.f32 %v688, %v899
        %901 = vmatmul.f32.gmra.mxu0 %v787
        %v902 = vpop.f32.mrf.mxu0
        %v903 = vadd.f32 %v691, %v902
        %904 = vmatmul.f32.gmra.mxu0 %v790
        %v905 = vpop.f32.mrf.mxu0
        %v906 = vadd.f32 %v694, %v905
        %907 = vmatmul.f32.gmra.mxu0 %v793
        %v908 = vpop.f32.mrf.mxu0
        %v909 = vadd.f32 %v697, %v908
        %910 = vmatmul.f32.gmra.mxu0 %v796
        %v911 = vpop.f32.mrf.mxu0
        %v912 = vadd.f32 %v700, %v911
        %913 = vmatmul.f32.gmra.mxu0 %v799
        %v914 = vpop.f32.mrf.mxu0
        %v915 = vadd.f32 %v703, %v914
        %916 = vmatmul.f32.gmra.mxu0 %v802
        %v917 = vpop.f32.mrf.mxu0
        %v918 = vadd.f32 %v706, %v917
        %919 = vmatmul.f32.gmra.mxu0 %v805
        %v920 = vpop.f32.mrf.mxu0
        %v921 = vadd.f32 %v709, %v920
        %922 = vmatmul.f32.gmra.mxu0 %v808
        %v923 = vpop.f32.mrf.mxu0
        %v924 = vadd.f32 %v712, %v923
        %925 = vmatmul.f32.gmra.mxu0 %v811
        %v926 = vpop.f32.mrf.mxu0
        %v927 = vadd.f32 %v715, %v926
        %928 = vmatmul.f32.gmra.mxu0 %v814
        %v929 = vpop.f32.mrf.mxu0
        %v930 = vadd.f32 %v718, %v929
        %931 = vdwg.mxu0
        %v932 = vld [vmem:[#allocation2 + $0x11] sm:$0xff]
        %v933 = vld [vmem:[#allocation2 + $0x19] sm:$0xff]
        %v934 = vld [vmem:[#allocation2 + $0x21] sm:$0xff]
        %v935 = vld [vmem:[#allocation2 + $0x29] sm:$0xff]
        %v936 = vld [vmem:[#allocation2 + $0x31] sm:$0xff]
        %v937 = vld [vmem:[#allocation2 + $0x39] sm:$0xff]
        %v938 = vld [vmem:[#allocation2 + $0x41] sm:$0xff]
        %v939 = vld [vmem:[#allocation2 + $0x49] sm:$0xff]
        %v940 = vld [vmem:[#allocation2 + $0x51] sm:$0xff]
        %v941 = vld [vmem:[#allocation2 + $0x59] sm:$0xff]
        %v942 = vld [vmem:[#allocation2 + $0x61] sm:$0xff]
        %v943 = vld [vmem:[#allocation2 + $0x69] sm:$0xff]
        %v944 = vld [vmem:[#allocation2 + $0x71] sm:$0xff]
        %v945 = vld [vmem:[#allocation2 + $0x79] sm:$0xff]
        %v946 = vld [vmem:[#allocation2 + $0x81] sm:$0xff]
        %v947 = vld [vmem:[#allocation2 + $0x89] sm:$0xff]
        %v948 = vld [vmem:[#allocation2 + $0x91] sm:$0xff]
        %v949 = vld [vmem:[#allocation2 + $0x99] sm:$0xff]
        %v950 = vld [vmem:[#allocation2 + $0xa1] sm:$0xff]
        %v951 = vld [vmem:[#allocation2 + $0xa9] sm:$0xff]
        %v952 = vld [vmem:[#allocation2 + $0xb1] sm:$0xff]
        %v953 = vld [vmem:[#allocation2 + $0xb9] sm:$0xff]
        %v954 = vld [vmem:[#allocation2 + $0xc1] sm:$0xff]
        %v955 = vld [vmem:[#allocation2 + $0xc9] sm:$0xff]
        %v956 = vld [vmem:[#allocation2 + $0xd1] sm:$0xff]
        %v957 = vld [vmem:[#allocation2 + $0xd9] sm:$0xff]
        %v958 = vld [vmem:[#allocation2 + $0xe1] sm:$0xff]
        %v959 = vld [vmem:[#allocation2 + $0xe9] sm:$0xff]
        %v960 = vld [vmem:[#allocation2 + $0xf1] sm:$0xff]
        %v961 = vld [vmem:[#allocation2 + $0xf9] sm:$0xff]
        %v962 = vld [vmem:[#allocation2 + $0x101] sm:$0xff]
        %v963 = vld [vmem:[#allocation2 + $0x109] sm:$0xff]
        %vm964 = vcmp.le.s32.totalorder %v404, 14
        %vm965 = vcmp.le.s32.totalorder %v405, 14
        %v966 = vsel %vm964, %v932, 0.0
        %v967 = vsel %vm965, %v933, 0.0
        %v968 = vsel %vm964, %v934, 0.0
        %v969 = vsel %vm965, %v935, 0.0
        %v970 = vsel %vm964, %v936, 0.0
        %v971 = vsel %vm965, %v937, 0.0
        %v972 = vsel %vm964, %v938, 0.0
        %v973 = vsel %vm965, %v939, 0.0
        %v974 = vsel %vm964, %v940, 0.0
        %v975 = vsel %vm965, %v941, 0.0
        %v976 = vsel %vm964, %v942, 0.0
        %v977 = vsel %vm965, %v943, 0.0
        %v978 = vsel %vm964, %v944, 0.0
        %v979 = vsel %vm965, %v945, 0.0
        %v980 = vsel %vm964, %v946, 0.0
        %v981 = vsel %vm965, %v947, 0.0
        %v982 = vsel %vm964, %v948, 0.0
        %v983 = vsel %vm965, %v949, 0.0
        %v984 = vsel %vm964, %v950, 0.0
        %v985 = vsel %vm965, %v951, 0.0
        %v986 = vsel %vm964, %v952, 0.0
        %v987 = vsel %vm965, %v953, 0.0
        %v988 = vsel %vm964, %v954, 0.0
        %v989 = vsel %vm965, %v955, 0.0
        %v990 = vsel %vm964, %v956, 0.0
        %v991 = vsel %vm965, %v957, 0.0
        %v992 = vsel %vm964, %v958, 0.0
        %v993 = vsel %vm965, %v959, 0.0
        %v994 = vsel %vm964, %v960, 0.0
        %v995 = vsel %vm965, %v961, 0.0
        %v996 = vsel %vm964, %v962, 0.0
        %v997 = vsel %vm965, %v963, 0.0
        %s998 = scalar_lea.vmem %s1, 8
        %v999 = vld [vmem:[%s998] sm:$0xf]
        %v1001 = vsel %vm362, %v966, 0
        %v1004 = vsel %vm362, %v967, 0
        %v1007 = vsel %vm362, %v968, 0
        %v1010 = vsel %vm362, %v969, 0
        %v1013 = vsel %vm362, %v970, 0
        %v1016 = vsel %vm362, %v971, 0
        %v1019 = vsel %vm362, %v972, 0
        %v1022 = vsel %vm362, %v973, 0
        %v1025 = vsel %vm362, %v974, 0
        %v1028 = vsel %vm362, %v975, 0
        %v1031 = vsel %vm362, %v976, 0
        %v1034 = vsel %vm362, %v977, 0
        %v1037 = vsel %vm362, %v978, 0
        %v1040 = vsel %vm362, %v979, 0
        %v1043 = vsel %vm362, %v980, 0
        %v1046 = vsel %vm362, %v981, 0
        %v1049 = vsel %vm362, %v982, 0
        %v1052 = vsel %vm362, %v983, 0
        %v1055 = vsel %vm362, %v984, 0
        %v1058 = vsel %vm362, %v985, 0
        %v1061 = vsel %vm362, %v986, 0
        %v1064 = vsel %vm362, %v987, 0
        %v1067 = vsel %vm362, %v988, 0
        %v1070 = vsel %vm362, %v989, 0
        %v1073 = vsel %vm362, %v990, 0
        %v1076 = vsel %vm362, %v991, 0
        %v1079 = vsel %vm362, %v992, 0
        %v1082 = vsel %vm362, %v993, 0
        %v1085 = vsel %vm362, %v994, 0
        %v1088 = vsel %vm362, %v995, 0
        %v1091 = vsel %vm362, %v996, 0
        %v1094 = vsel %vm362, %v997, 0
        %v1097 = vsel %vm603, %v999, 0
        %1099 = vmatpush.msra.mxu0 0.0
        %1100 = vmatpush.msra.mxu0 0.0
        %1101 = vmatpush.msra.mxu0 0.0
        %1102 = vmatpush.msra.mxu0 0.0
        %1103 = vmatpush.msra.mxu0 0.0
        %1104 = vmatpush.msra.mxu0 0.0
        %1105 = vmatpush.msra.mxu0 0.0
        %1106 = vmatpush.msra.mxu0 0.0
        %1107 = vmatpush.msra.mxu0 0.0
        %1108 = vmatpush.msra.mxu0 0.0
        %1109 = vmatpush.msra.mxu0 0.0
        %1110 = vmatpush.msra.mxu0 0.0
        %1111 = vmatpush.msra.mxu0 0.0
        %1112 = vmatpush.msra.mxu0 0.0
        %1113 = vmatpush.msra.mxu0 0.0
        %1114 = vmatpush.msra.mxu0 %v1097
        %1115 = vmatmul.f32.gmra.mxu0 %v1001
        %v1116 = vpop.f32.mrf.mxu0
        %v1117 = vadd.f32 0.0, %v1116
        %1118 = vmatmul.f32.gmra.mxu0 %v1004
        %v1119 = vpop.f32.mrf.mxu0
        %v1120 = vadd.f32 0.0, %v1119
        %1121 = vmatmul.f32.gmra.mxu0 %v1007
        %v1122 = vpop.f32.mrf.mxu0
        %v1123 = vadd.f32 0.0, %v1122
        %1124 = vmatmul.f32.gmra.mxu0 %v1010
        %v1125 = vpop.f32.mrf.mxu0
        %v1126 = vadd.f32 0.0, %v1125
        %1127 = vmatmul.f32.gmra.mxu0 %v1013
        %v1128 = vpop.f32.mrf.mxu0
        %v1129 = vadd.f32 0.0, %v1128
        %1130 = vmatmul.f32.gmra.mxu0 %v1016
        %v1131 = vpop.f32.mrf.mxu0
        %v1132 = vadd.f32 0.0, %v1131
        %1133 = vmatmul.f32.gmra.mxu0 %v1019
        %v1134 = vpop.f32.mrf.mxu0
        %v1135 = vadd.f32 0.0, %v1134
        %1136 = vmatmul.f32.gmra.mxu0 %v1022
        %v1137 = vpop.f32.mrf.mxu0
        %v1138 = vadd.f32 0.0, %v1137
        %1139 = vmatmul.f32.gmra.mxu0 %v1025
        %v1140 = vpop.f32.mrf.mxu0
        %v1141 = vadd.f32 0.0, %v1140
        %1142 = vmatmul.f32.gmra.mxu0 %v1028
        %v1143 = vpop.f32.mrf.mxu0
        %v1144 = vadd.f32 0.0, %v1143
        %1145 = vmatmul.f32.gmra.mxu0 %v1031
        %v1146 = vpop.f32.mrf.mxu0
        %v1147 = vadd.f32 0.0, %v1146
        %1148 = vmatmul.f32.gmra.mxu0 %v1034
        %v1149 = vpop.f32.mrf.mxu0
        %v1150 = vadd.f32 0.0, %v1149
        %1151 = vmatmul.f32.gmra.mxu0 %v1037
        %v1152 = vpop.f32.mrf.mxu0
        %v1153 = vadd.f32 0.0, %v1152
        %1154 = vmatmul.f32.gmra.mxu0 %v1040
        %v1155 = vpop.f32.mrf.mxu0
        %v1156 = vadd.f32 0.0, %v1155
        %1157 = vmatmul.f32.gmra.mxu0 %v1043
        %v1158 = vpop.f32.mrf.mxu0
        %v1159 = vadd.f32 0.0, %v1158
        %1160 = vmatmul.f32.gmra.mxu0 %v1046
        %v1161 = vpop.f32.mrf.mxu0
        %v1162 = vadd.f32 0.0, %v1161
        %1163 = vmatmul.f32.gmra.mxu0 %v1049
        %v1164 = vpop.f32.mrf.mxu0
        %v1165 = vadd.f32 0.0, %v1164
        %1166 = vmatmul.f32.gmra.mxu0 %v1052
        %v1167 = vpop.f32.mrf.mxu0
        %v1168 = vadd.f32 0.0, %v1167
        %1169 = vmatmul.f32.gmra.mxu0 %v1055
        %v1170 = vpop.f32.mrf.mxu0
        %v1171 = vadd.f32 0.0, %v1170
        %1172 = vmatmul.f32.gmra.mxu0 %v1058
        %v1173 = vpop.f32.mrf.mxu0
        %v1174 = vadd.f32 0.0, %v1173
        %1175 = vmatmul.f32.gmra.mxu0 %v1061
        %v1176 = vpop.f32.mrf.mxu0
        %v1177 = vadd.f32 0.0, %v1176
        %1178 = vmatmul.f32.gmra.mxu0 %v1064
        %v1179 = vpop.f32.mrf.mxu0
        %v1180 = vadd.f32 0.0, %v1179
        %1181 = vmatmul.f32.gmra.mxu0 %v1067
        %v1182 = vpop.f32.mrf.mxu0
        %v1183 = vadd.f32 0.0, %v1182
        %1184 = vmatmul.f32.gmra.mxu0 %v1070
        %v1185 = vpop.f32.mrf.mxu0
        %v1186 = vadd.f32 0.0, %v1185
        %1187 = vmatmul.f32.gmra.mxu0 %v1073
        %v1188 = vpop.f32.mrf.mxu0
        %v1189 = vadd.f32 0.0, %v1188
        %1190 = vmatmul.f32.gmra.mxu0 %v1076
        %v1191 = vpop.f32.mrf.mxu0
        %v1192 = vadd.f32 0.0, %v1191
        %1193 = vmatmul.f32.gmra.mxu0 %v1079
        %v1194 = vpop.f32.mrf.mxu0
        %v1195 = vadd.f32 0.0, %v1194
        %1196 = vmatmul.f32.gmra.mxu0 %v1082
        %v1197 = vpop.f32.mrf.mxu0
        %v1198 = vadd.f32 0.0, %v1197
        %1199 = vmatmul.f32.gmra.mxu0 %v1085
        %v1200 = vpop.f32.mrf.mxu0
        %v1201 = vadd.f32 0.0, %v1200
        %1202 = vmatmul.f32.gmra.mxu0 %v1088
        %v1203 = vpop.f32.mrf.mxu0
        %v1204 = vadd.f32 0.0, %v1203
        %1205 = vmatmul.f32.gmra.mxu0 %v1091
        %v1206 = vpop.f32.mrf.mxu0
        %v1207 = vadd.f32 0.0, %v1206
        %1208 = vmatmul.f32.gmra.mxu0 %v1094
        %v1209 = vpop.f32.mrf.mxu0
        %v1210 = vadd.f32 0.0, %v1209
        %1211 = vdwg.mxu0
        %v1212 = vadd.f32 %v837, %v1117
        %v1213 = vadd.f32 %v840, %v1120
        %v1214 = vadd.f32 %v843, %v1123
        %v1215 = vadd.f32 %v846, %v1126
        %v1216 = vadd.f32 %v849, %v1129
        %v1217 = vadd.f32 %v852, %v1132
        %v1218 = vadd.f32 %v855, %v1135
        %v1219 = vadd.f32 %v858, %v1138
        %v1220 = vadd.f32 %v861, %v1141
        %v1221 = vadd.f32 %v864, %v1144
        %v1222 = vadd.f32 %v867, %v1147
        %v1223 = vadd.f32 %v870, %v1150
        %v1224 = vadd.f32 %v873, %v1153
        %v1225 = vadd.f32 %v876, %v1156
        %v1226 = vadd.f32 %v879, %v1159
        %v1227 = vadd.f32 %v882, %v1162
        %v1228 = vadd.f32 %v885, %v1165
        %v1229 = vadd.f32 %v888, %v1168
        %v1230 = vadd.f32 %v891, %v1171
        %v1231 = vadd.f32 %v894, %v1174
        %v1232 = vadd.f32 %v897, %v1177
        %v1233 = vadd.f32 %v900, %v1180
        %v1234 = vadd.f32 %v903, %v1183
        %v1235 = vadd.f32 %v906, %v1186
        %v1236 = vadd.f32 %v909, %v1189
        %v1237 = vadd.f32 %v912, %v1192
        %v1238 = vadd.f32 %v915, %v1195
        %v1239 = vadd.f32 %v918, %v1198
        %v1240 = vadd.f32 %v921, %v1201
        %v1241 = vadd.f32 %v924, %v1204
        %v1242 = vadd.f32 %v927, %v1207
        %v1243 = vadd.f32 %v930, %v1210
        %v1244 = vld [vmem:[#allocation2 + $0x1f] sm:$0xff]
        %v1245 = vld [vmem:[#allocation2 + $0x27] sm:$0xff]
        %v1246 = vld [vmem:[#allocation2 + $0x2f] sm:$0xff]
        %v1247 = vld [vmem:[#allocation2 + $0x37] sm:$0xff]
        %v1248 = vld [vmem:[#allocation2 + $0x3f] sm:$0xff]
        %v1249 = vld [vmem:[#allocation2 + $0x47] sm:$0xff]
        %v1250 = vld [vmem:[#allocation2 + $0x4f] sm:$0xff]
        %v1251 = vld [vmem:[#allocation2 + $0x57] sm:$0xff]
        %v1252 = vld [vmem:[#allocation2 + $0x5f] sm:$0xff]
        %v1253 = vld [vmem:[#allocation2 + $0x67] sm:$0xff]
        %v1254 = vld [vmem:[#allocation2 + $0x6f] sm:$0xff]
        %v1255 = vld [vmem:[#allocation2 + $0x77] sm:$0xff]
        %v1256 = vld [vmem:[#allocation2 + $0x7f] sm:$0xff]
        %v1257 = vld [vmem:[#allocation2 + $0x87] sm:$0xff]
        %v1258 = vld [vmem:[#allocation2 + $0x8f] sm:$0xff]
        %v1259 = vld [vmem:[#allocation2 + $0x97] sm:$0xff]
        %v1260 = vld [vmem:[#allocation2 + $0x9f] sm:$0xff]
        %v1261 = vld [vmem:[#allocation2 + $0xa7] sm:$0xff]
        %v1262 = vld [vmem:[#allocation2 + $0xaf] sm:$0xff]
        %v1263 = vld [vmem:[#allocation2 + $0xb7] sm:$0xff]
        %v1264 = vld [vmem:[#allocation2 + $0xbf] sm:$0xff]
        %v1265 = vld [vmem:[#allocation2 + $0xc7] sm:$0xff]
        %v1266 = vld [vmem:[#allocation2 + $0xcf] sm:$0xff]
        %v1267 = vld [vmem:[#allocation2 + $0xd7] sm:$0xff]
        %v1268 = vld [vmem:[#allocation2 + $0xdf] sm:$0xff]
        %v1269 = vld [vmem:[#allocation2 + $0xe7] sm:$0xff]
        %v1270 = vld [vmem:[#allocation2 + $0xef] sm:$0xff]
        %v1271 = vld [vmem:[#allocation2 + $0xf7] sm:$0xff]
        %v1272 = vld [vmem:[#allocation2 + $0xff] sm:$0xff]
        %v1273 = vld [vmem:[#allocation2 + $0x107] sm:$0xff]
        %v1274 = vld [vmem:[#allocation2 + $0x10f] sm:$0xff]
        %v1275 = vld [vmem:[#allocation2 + $0x117] sm:$0xff]
        %v1276 = vsel %vm438, %v1244, 0.0
        %v1277 = vsel %vm439, %v1245, 0.0
        %v1278 = vsel %vm438, %v1246, 0.0
        %v1279 = vsel %vm439, %v1247, 0.0
        %v1280 = vsel %vm438, %v1248, 0.0
        %v1281 = vsel %vm439, %v1249, 0.0
        %v1282 = vsel %vm438, %v1250, 0.0
        %v1283 = vsel %vm439, %v1251, 0.0
        %v1284 = vsel %vm438, %v1252, 0.0
        %v1285 = vsel %vm439, %v1253, 0.0
        %v1286 = vsel %vm438, %v1254, 0.0
        %v1287 = vsel %vm439, %v1255, 0.0
        %v1288 = vsel %vm438, %v1256, 0.0
        %v1289 = vsel %vm439, %v1257, 0.0
        %v1290 = vsel %vm438, %v1258, 0.0
        %v1291 = vsel %vm439, %v1259, 0.0
        %v1292 = vsel %vm438, %v1260, 0.0
        %v1293 = vsel %vm439, %v1261, 0.0
        %v1294 = vsel %vm438, %v1262, 0.0
        %v1295 = vsel %vm439, %v1263, 0.0
        %v1296 = vsel %vm438, %v1264, 0.0
        %v1297 = vsel %vm439, %v1265, 0.0
        %v1298 = vsel %vm438, %v1266, 0.0
        %v1299 = vsel %vm439, %v1267, 0.0
        %v1300 = vsel %vm438, %v1268, 0.0
        %v1301 = vsel %vm439, %v1269, 0.0
        %v1302 = vsel %vm438, %v1270, 0.0
        %v1303 = vsel %vm439, %v1271, 0.0
        %v1304 = vsel %vm438, %v1272, 0.0
        %v1305 = vsel %vm439, %v1273, 0.0
        %v1306 = vsel %vm438, %v1274, 0.0
        %v1307 = vsel %vm439, %v1275, 0.0
        %s1308 = scalar_lea.vmem %s1, 12
        %v1309 = vld [vmem:[%s1308] sm:$0xf]
        %v1311 = vsel %vm362, %v1276, 0
        %v1314 = vsel %vm362, %v1277, 0
        %v1317 = vsel %vm362, %v1278, 0
        %v1320 = vsel %vm362, %v1279, 0
        %v1323 = vsel %vm362, %v1280, 0
        %v1326 = vsel %vm362, %v1281, 0
        %v1329 = vsel %vm362, %v1282, 0
        %v1332 = vsel %vm362, %v1283, 0
        %v1335 = vsel %vm362, %v1284, 0
        %v1338 = vsel %vm362, %v1285, 0
        %v1341 = vsel %vm362, %v1286, 0
        %v1344 = vsel %vm362, %v1287, 0
        %v1347 = vsel %vm362, %v1288, 0
        %v1350 = vsel %vm362, %v1289, 0
        %v1353 = vsel %vm362, %v1290, 0
        %v1356 = vsel %vm362, %v1291, 0
        %v1359 = vsel %vm362, %v1292, 0
        %v1362 = vsel %vm362, %v1293, 0
        %v1365 = vsel %vm362, %v1294, 0
        %v1368 = vsel %vm362, %v1295, 0
        %v1371 = vsel %vm362, %v1296, 0
        %v1374 = vsel %vm362, %v1297, 0
        %v1377 = vsel %vm362, %v1298, 0
        %v1380 = vsel %vm362, %v1299, 0
        %v1383 = vsel %vm362, %v1300, 0
        %v1386 = vsel %vm362, %v1301, 0
        %v1389 = vsel %vm362, %v1302, 0
        %v1392 = vsel %vm362, %v1303, 0
        %v1395 = vsel %vm362, %v1304, 0
        %v1398 = vsel %vm362, %v1305, 0
        %v1401 = vsel %vm362, %v1306, 0
        %v1404 = vsel %vm362, %v1307, 0
        %v1407 = vsel %vm603, %v1309, 0
        %1409 = vmatpush.msra.mxu0 0.0
        %1410 = vmatpush.msra.mxu0 0.0
        %1411 = vmatpush.msra.mxu0 0.0
        %1412 = vmatpush.msra.mxu0 0.0
        %1413 = vmatpush.msra.mxu0 0.0
        %1414 = vmatpush.msra.mxu0 0.0
        %1415 = vmatpush.msra.mxu0 0.0
        %1416 = vmatpush.msra.mxu0 0.0
        %1417 = vmatpush.msra.mxu0 0.0
        %1418 = vmatpush.msra.mxu0 0.0
        %1419 = vmatpush.msra.mxu0 0.0
        %1420 = vmatpush.msra.mxu0 0.0
        %1421 = vmatpush.msra.mxu0 0.0
        %1422 = vmatpush.msra.mxu0 0.0
        %1423 = vmatpush.msra.mxu0 0.0
        %1424 = vmatpush.msra.mxu0 %v1407
        %1425 = vmatmul.f32.gmra.mxu0 %v1311
        %v1426 = vpop.f32.mrf.mxu0
        %v1427 = vadd.f32 0.0, %v1426
        %1428 = vmatmul.f32.gmra.mxu0 %v1314
        %v1429 = vpop.f32.mrf.mxu0
        %v1430 = vadd.f32 0.0, %v1429
        %1431 = vmatmul.f32.gmra.mxu0 %v1317
        %v1432 = vpop.f32.mrf.mxu0
        %v1433 = vadd.f32 0.0, %v1432
        %1434 = vmatmul.f32.gmra.mxu0 %v1320
        %v1435 = vpop.f32.mrf.mxu0
        %v1436 = vadd.f32 0.0, %v1435
        %1437 = vmatmul.f32.gmra.mxu0 %v1323
        %v1438 = vpop.f32.mrf.mxu0
        %v1439 = vadd.f32 0.0, %v1438
        %1440 = vmatmul.f32.gmra.mxu0 %v1326
        %v1441 = vpop.f32.mrf.mxu0
        %v1442 = vadd.f32 0.0, %v1441
        %1443 = vmatmul.f32.gmra.mxu0 %v1329
        %v1444 = vpop.f32.mrf.mxu0
        %v1445 = vadd.f32 0.0, %v1444
        %1446 = vmatmul.f32.gmra.mxu0 %v1332
        %v1447 = vpop.f32.mrf.mxu0
        %v1448 = vadd.f32 0.0, %v1447
        %1449 = vmatmul.f32.gmra.mxu0 %v1335
        %v1450 = vpop.f32.mrf.mxu0
        %v1451 = vadd.f32 0.0, %v1450
        %1452 = vmatmul.f32.gmra.mxu0 %v1338
        %v1453 = vpop.f32.mrf.mxu0
        %v1454 = vadd.f32 0.0, %v1453
        %1455 = vmatmul.f32.gmra.mxu0 %v1341
        %v1456 = vpop.f32.mrf.mxu0
        %v1457 = vadd.f32 0.0, %v1456
        %1458 = vmatmul.f32.gmra.mxu0 %v1344
        %v1459 = vpop.f32.mrf.mxu0
        %v1460 = vadd.f32 0.0, %v1459
        %1461 = vmatmul.f32.gmra.mxu0 %v1347
        %v1462 = vpop.f32.mrf.mxu0
        %v1463 = vadd.f32 0.0, %v1462
        %1464 = vmatmul.f32.gmra.mxu0 %v1350
        %v1465 = vpop.f32.mrf.mxu0
        %v1466 = vadd.f32 0.0, %v1465
        %1467 = vmatmul.f32.gmra.mxu0 %v1353
        %v1468 = vpop.f32.mrf.mxu0
        %v1469 = vadd.f32 0.0, %v1468
        %1470 = vmatmul.f32.gmra.mxu0 %v1356
        %v1471 = vpop.f32.mrf.mxu0
        %v1472 = vadd.f32 0.0, %v1471
        %1473 = vmatmul.f32.gmra.mxu0 %v1359
        %v1474 = vpop.f32.mrf.mxu0
        %v1475 = vadd.f32 0.0, %v1474
        %1476 = vmatmul.f32.gmra.mxu0 %v1362
        %v1477 = vpop.f32.mrf.mxu0
        %v1478 = vadd.f32 0.0, %v1477
        %1479 = vmatmul.f32.gmra.mxu0 %v1365
        %v1480 = vpop.f32.mrf.mxu0
        %v1481 = vadd.f32 0.0, %v1480
        %1482 = vmatmul.f32.gmra.mxu0 %v1368
        %v1483 = vpop.f32.mrf.mxu0
        %v1484 = vadd.f32 0.0, %v1483
        %1485 = vmatmul.f32.gmra.mxu0 %v1371
        %v1486 = vpop.f32.mrf.mxu0
        %v1487 = vadd.f32 0.0, %v1486
        %1488 = vmatmul.f32.gmra.mxu0 %v1374
        %v1489 = vpop.f32.mrf.mxu0
        %v1490 = vadd.f32 0.0, %v1489
        %1491 = vmatmul.f32.gmra.mxu0 %v1377
        %v1492 = vpop.f32.mrf.mxu0
        %v1493 = vadd.f32 0.0, %v1492
        %1494 = vmatmul.f32.gmra.mxu0 %v1380
        %v1495 = vpop.f32.mrf.mxu0
        %v1496 = vadd.f32 0.0, %v1495
        %1497 = vmatmul.f32.gmra.mxu0 %v1383
        %v1498 = vpop.f32.mrf.mxu0
        %v1499 = vadd.f32 0.0, %v1498
        %1500 = vmatmul.f32.gmra.mxu0 %v1386
        %v1501 = vpop.f32.mrf.mxu0
        %v1502 = vadd.f32 0.0, %v1501
        %1503 = vmatmul.f32.gmra.mxu0 %v1389
        %v1504 = vpop.f32.mrf.mxu0
        %v1505 = vadd.f32 0.0, %v1504
        %1506 = vmatmul.f32.gmra.mxu0 %v1392
        %v1507 = vpop.f32.mrf.mxu0
        %v1508 = vadd.f32 0.0, %v1507
        %1509 = vmatmul.f32.gmra.mxu0 %v1395
        %v1510 = vpop.f32.mrf.mxu0
        %v1511 = vadd.f32 0.0, %v1510
        %1512 = vmatmul.f32.gmra.mxu0 %v1398
        %v1513 = vpop.f32.mrf.mxu0
        %v1514 = vadd.f32 0.0, %v1513
        %1515 = vmatmul.f32.gmra.mxu0 %v1401
        %v1516 = vpop.f32.mrf.mxu0
        %v1517 = vadd.f32 0.0, %v1516
        %1518 = vmatmul.f32.gmra.mxu0 %v1404
        %v1519 = vpop.f32.mrf.mxu0
        %v1520 = vadd.f32 0.0, %v1519
        %1521 = vdwg.mxu0
        %v1522 = vadd.f32 %v1212, %v1427
        %v1523 = vadd.f32 %v1213, %v1430
        %v1524 = vadd.f32 %v1214, %v1433
        %v1525 = vadd.f32 %v1215, %v1436
        %v1526 = vadd.f32 %v1216, %v1439
        %v1527 = vadd.f32 %v1217, %v1442
        %v1528 = vadd.f32 %v1218, %v1445
        %v1529 = vadd.f32 %v1219, %v1448
        %v1530 = vadd.f32 %v1220, %v1451
        %v1531 = vadd.f32 %v1221, %v1454
        %v1532 = vadd.f32 %v1222, %v1457
        %v1533 = vadd.f32 %v1223, %v1460
        %v1534 = vadd.f32 %v1224, %v1463
        %v1535 = vadd.f32 %v1225, %v1466
        %v1536 = vadd.f32 %v1226, %v1469
        %v1537 = vadd.f32 %v1227, %v1472
        %v1538 = vadd.f32 %v1228, %v1475
        %v1539 = vadd.f32 %v1229, %v1478
        %v1540 = vadd.f32 %v1230, %v1481
        %v1541 = vadd.f32 %v1231, %v1484
        %v1542 = vadd.f32 %v1232, %v1487
        %v1543 = vadd.f32 %v1233, %v1490
        %v1544 = vadd.f32 %v1234, %v1493
        %v1545 = vadd.f32 %v1235, %v1496
        %v1546 = vadd.f32 %v1236, %v1499
        %v1547 = vadd.f32 %v1237, %v1502
        %v1548 = vadd.f32 %v1238, %v1505
        %v1549 = vadd.f32 %v1239, %v1508
        %v1550 = vadd.f32 %v1240, %v1511
        %v1551 = vadd.f32 %v1241, %v1514
        %v1552 = vadd.f32 %v1242, %v1517
        %v1553 = vadd.f32 %v1243, %v1520
        %v1554 = vld [vmem:[#allocation2 + $0x20] sm:$0xff]
        %v1555 = vld [vmem:[#allocation2 + $0x28] sm:$0xff]
        %v1556 = vld [vmem:[#allocation2 + $0x30] sm:$0xff]
        %v1557 = vld [vmem:[#allocation2 + $0x38] sm:$0xff]
        %v1558 = vld [vmem:[#allocation2 + $0x40] sm:$0xff]
        %v1559 = vld [vmem:[#allocation2 + $0x48] sm:$0xff]
        %v1560 = vld [vmem:[#allocation2 + $0x50] sm:$0xff]
        %v1561 = vld [vmem:[#allocation2 + $0x58] sm:$0xff]
        %v1562 = vld [vmem:[#allocation2 + $0x60] sm:$0xff]
        %v1563 = vld [vmem:[#allocation2 + $0x68] sm:$0xff]
        %v1564 = vld [vmem:[#allocation2 + $0x70] sm:$0xff]
        %v1565 = vld [vmem:[#allocation2 + $0x78] sm:$0xff]
        %v1566 = vld [vmem:[#allocation2 + $0x80] sm:$0xff]
        %v1567 = vld [vmem:[#allocation2 + $0x88] sm:$0xff]
        %v1568 = vld [vmem:[#allocation2 + $0x90] sm:$0xff]
        %v1569 = vld [vmem:[#allocation2 + $0x98] sm:$0xff]
        %v1570 = vld [vmem:[#allocation2 + $0xa0] sm:$0xff]
        %v1571 = vld [vmem:[#allocation2 + $0xa8] sm:$0xff]
        %v1572 = vld [vmem:[#allocation2 + $0xb0] sm:$0xff]
        %v1573 = vld [vmem:[#allocation2 + $0xb8] sm:$0xff]
        %v1574 = vld [vmem:[#allocation2 + $0xc0] sm:$0xff]
        %v1575 = vld [vmem:[#allocation2 + $0xc8] sm:$0xff]
        %v1576 = vld [vmem:[#allocation2 + $0xd0] sm:$0xff]
        %v1577 = vld [vmem:[#allocation2 + $0xd8] sm:$0xff]
        %v1578 = vld [vmem:[#allocation2 + $0xe0] sm:$0xff]
        %v1579 = vld [vmem:[#allocation2 + $0xe8] sm:$0xff]
        %v1580 = vld [vmem:[#allocation2 + $0xf0] sm:$0xff]
        %v1581 = vld [vmem:[#allocation2 + $0xf8] sm:$0xff]
        %v1582 = vld [vmem:[#allocation2 + $0x100] sm:$0xff]
        %v1583 = vld [vmem:[#allocation2 + $0x108] sm:$0xff]
        %v1584 = vld [vmem:[#allocation2 + $0x110] sm:$0xff]
        %v1585 = vld [vmem:[#allocation2 + $0x118] sm:$0xff]
        %s1586 = scalar_lea.vmem %s1, 16
        %v1587 = vld [vmem:[%s1586] sm:$0xf]
        %v1589 = vsel %vm362, %v1554, 0
        %v1592 = vsel %vm362, %v1555, 0
        %v1595 = vsel %vm362, %v1556, 0
        %v1598 = vsel %vm362, %v1557, 0
        %v1601 = vsel %vm362, %v1558, 0
        %v1604 = vsel %vm362, %v1559, 0
        %v1607 = vsel %vm362, %v1560, 0
        %v1610 = vsel %vm362, %v1561, 0
        %v1613 = vsel %vm362, %v1562, 0
        %v1616 = vsel %vm362, %v1563, 0
        %v1619 = vsel %vm362, %v1564, 0
        %v1622 = vsel %vm362, %v1565, 0
        %v1625 = vsel %vm362, %v1566, 0
        %v1628 = vsel %vm362, %v1567, 0
        %v1631 = vsel %vm362, %v1568, 0
        %v1634 = vsel %vm362, %v1569, 0
        %v1637 = vsel %vm362, %v1570, 0
        %v1640 = vsel %vm362, %v1571, 0
        %v1643 = vsel %vm362, %v1572, 0
        %v1646 = vsel %vm362, %v1573, 0
        %v1649 = vsel %vm362, %v1574, 0
        %v1652 = vsel %vm362, %v1575, 0
        %v1655 = vsel %vm362, %v1576, 0
        %v1658 = vsel %vm362, %v1577, 0
        %v1661 = vsel %vm362, %v1578, 0
        %v1664 = vsel %vm362, %v1579, 0
        %v1667 = vsel %vm362, %v1580, 0
        %v1670 = vsel %vm362, %v1581, 0
        %v1673 = vsel %vm362, %v1582, 0
        %v1676 = vsel %vm362, %v1583, 0
        %v1679 = vsel %vm362, %v1584, 0
        %v1682 = vsel %vm362, %v1585, 0
        %v1685 = vsel %vm603, %v1587, 0
        %1687 = vmatpush.msra.mxu0 0.0
        %1688 = vmatpush.msra.mxu0 0.0
        %1689 = vmatpush.msra.mxu0 0.0
        %1690 = vmatpush.msra.mxu0 0.0
        %1691 = vmatpush.msra.mxu0 0.0
        %1692 = vmatpush.msra.mxu0 0.0
        %1693 = vmatpush.msra.mxu0 0.0
        %1694 = vmatpush.msra.mxu0 0.0
        %1695 = vmatpush.msra.mxu0 0.0
        %1696 = vmatpush.msra.mxu0 0.0
        %1697 = vmatpush.msra.mxu0 0.0
        %1698 = vmatpush.msra.mxu0 0.0
        %1699 = vmatpush.msra.mxu0 0.0
        %1700 = vmatpush.msra.mxu0 0.0
        %1701 = vmatpush.msra.mxu0 0.0
        %1702 = vmatpush.msra.mxu0 %v1685
        %1703 = vmatmul.f32.gmra.mxu0 %v1589
        %v1704 = vpop.f32.mrf.mxu0
        %v1705 = vadd.f32 0.0, %v1704
        %1706 = vmatmul.f32.gmra.mxu0 %v1592
        %v1707 = vpop.f32.mrf.mxu0
        %v1708 = vadd.f32 0.0, %v1707
        %1709 = vmatmul.f32.gmra.mxu0 %v1595
        %v1710 = vpop.f32.mrf.mxu0
        %v1711 = vadd.f32 0.0, %v1710
        %1712 = vmatmul.f32.gmra.mxu0 %v1598
        %v1713 = vpop.f32.mrf.mxu0
        %v1714 = vadd.f32 0.0, %v1713
        %1715 = vmatmul.f32.gmra.mxu0 %v1601
        %v1716 = vpop.f32.mrf.mxu0
        %v1717 = vadd.f32 0.0, %v1716
        %1718 = vmatmul.f32.gmra.mxu0 %v1604
        %v1719 = vpop.f32.mrf.mxu0
        %v1720 = vadd.f32 0.0, %v1719
        %1721 = vmatmul.f32.gmra.mxu0 %v1607
        %v1722 = vpop.f32.mrf.mxu0
        %v1723 = vadd.f32 0.0, %v1722
        %1724 = vmatmul.f32.gmra.mxu0 %v1610
        %v1725 = vpop.f32.mrf.mxu0
        %v1726 = vadd.f32 0.0, %v1725
        %1727 = vmatmul.f32.gmra.mxu0 %v1613
        %v1728 = vpop.f32.mrf.mxu0
        %v1729 = vadd.f32 0.0, %v1728
        %1730 = vmatmul.f32.gmra.mxu0 %v1616
        %v1731 = vpop.f32.mrf.mxu0
        %v1732 = vadd.f32 0.0, %v1731
        %1733 = vmatmul.f32.gmra.mxu0 %v1619
        %v1734 = vpop.f32.mrf.mxu0
        %v1735 = vadd.f32 0.0, %v1734
        %1736 = vmatmul.f32.gmra.mxu0 %v1622
        %v1737 = vpop.f32.mrf.mxu0
        %v1738 = vadd.f32 0.0, %v1737
        %1739 = vmatmul.f32.gmra.mxu0 %v1625
        %v1740 = vpop.f32.mrf.mxu0
        %v1741 = vadd.f32 0.0, %v1740
        %1742 = vmatmul.f32.gmra.mxu0 %v1628
        %v1743 = vpop.f32.mrf.mxu0
        %v1744 = vadd.f32 0.0, %v1743
        %1745 = vmatmul.f32.gmra.mxu0 %v1631
        %v1746 = vpop.f32.mrf.mxu0
        %v1747 = vadd.f32 0.0, %v1746
        %1748 = vmatmul.f32.gmra.mxu0 %v1634
        %v1749 = vpop.f32.mrf.mxu0
        %v1750 = vadd.f32 0.0, %v1749
        %1751 = vmatmul.f32.gmra.mxu0 %v1637
        %v1752 = vpop.f32.mrf.mxu0
        %v1753 = vadd.f32 0.0, %v1752
        %1754 = vmatmul.f32.gmra.mxu0 %v1640
        %v1755 = vpop.f32.mrf.mxu0
        %v1756 = vadd.f32 0.0, %v1755
        %1757 = vmatmul.f32.gmra.mxu0 %v1643
        %v1758 = vpop.f32.mrf.mxu0
        %v1759 = vadd.f32 0.0, %v1758
        %1760 = vmatmul.f32.gmra.mxu0 %v1646
        %v1761 = vpop.f32.mrf.mxu0
        %v1762 = vadd.f32 0.0, %v1761
        %1763 = vmatmul.f32.gmra.mxu0 %v1649
        %v1764 = vpop.f32.mrf.mxu0
        %v1765 = vadd.f32 0.0, %v1764
        %1766 = vmatmul.f32.gmra.mxu0 %v1652
        %v1767 = vpop.f32.mrf.mxu0
        %v1768 = vadd.f32 0.0, %v1767
        %1769 = vmatmul.f32.gmra.mxu0 %v1655
        %v1770 = vpop.f32.mrf.mxu0
        %v1771 = vadd.f32 0.0, %v1770
        %1772 = vmatmul.f32.gmra.mxu0 %v1658
        %v1773 = vpop.f32.mrf.mxu0
        %v1774 = vadd.f32 0.0, %v1773
        %1775 = vmatmul.f32.gmra.mxu0 %v1661
        %v1776 = vpop.f32.mrf.mxu0
        %v1777 = vadd.f32 0.0, %v1776
        %1778 = vmatmul.f32.gmra.mxu0 %v1664
        %v1779 = vpop.f32.mrf.mxu0
        %v1780 = vadd.f32 0.0, %v1779
        %1781 = vmatmul.f32.gmra.mxu0 %v1667
        %v1782 = vpop.f32.mrf.mxu0
        %v1783 = vadd.f32 0.0, %v1782
        %1784 = vmatmul.f32.gmra.mxu0 %v1670
        %v1785 = vpop.f32.mrf.mxu0
        %v1786 = vadd.f32 0.0, %v1785
        %1787 = vmatmul.f32.gmra.mxu0 %v1673
        %v1788 = vpop.f32.mrf.mxu0
        %v1789 = vadd.f32 0.0, %v1788
        %1790 = vmatmul.f32.gmra.mxu0 %v1676
        %v1791 = vpop.f32.mrf.mxu0
        %v1792 = vadd.f32 0.0, %v1791
        %1793 = vmatmul.f32.gmra.mxu0 %v1679
        %v1794 = vpop.f32.mrf.mxu0
        %v1795 = vadd.f32 0.0, %v1794
        %1796 = vmatmul.f32.gmra.mxu0 %v1682
        %v1797 = vpop.f32.mrf.mxu0
        %v1798 = vadd.f32 0.0, %v1797
        %1799 = vdwg.mxu0
        %v1800 = vadd.f32 %v1522, %v1705
        %v1801 = vadd.f32 %v1523, %v1708
        %v1802 = vadd.f32 %v1524, %v1711
        %v1803 = vadd.f32 %v1525, %v1714
        %v1804 = vadd.f32 %v1526, %v1717
        %v1805 = vadd.f32 %v1527, %v1720
        %v1806 = vadd.f32 %v1528, %v1723
        %v1807 = vadd.f32 %v1529, %v1726
        %v1808 = vadd.f32 %v1530, %v1729
        %v1809 = vadd.f32 %v1531, %v1732
        %v1810 = vadd.f32 %v1532, %v1735
        %v1811 = vadd.f32 %v1533, %v1738
        %v1812 = vadd.f32 %v1534, %v1741
        %v1813 = vadd.f32 %v1535, %v1744
        %v1814 = vadd.f32 %v1536, %v1747
        %v1815 = vadd.f32 %v1537, %v1750
        %v1816 = vadd.f32 %v1538, %v1753
        %v1817 = vadd.f32 %v1539, %v1756
        %v1818 = vadd.f32 %v1540, %v1759
        %v1819 = vadd.f32 %v1541, %v1762
        %v1820 = vadd.f32 %v1542, %v1765
        %v1821 = vadd.f32 %v1543, %v1768
        %v1822 = vadd.f32 %v1544, %v1771
        %v1823 = vadd.f32 %v1545, %v1774
        %v1824 = vadd.f32 %v1546, %v1777
        %v1825 = vadd.f32 %v1547, %v1780
        %v1826 = vadd.f32 %v1548, %v1783
        %v1827 = vadd.f32 %v1549, %v1786
        %v1828 = vadd.f32 %v1550, %v1789
        %v1829 = vadd.f32 %v1551, %v1792
        %v1830 = vadd.f32 %v1552, %v1795
        %v1831 = vadd.f32 %v1553, %v1798
        %v1832 = vld [vmem:[#allocation2 + $0x21] sm:$0xff]
        %v1833 = vld [vmem:[#allocation2 + $0x29] sm:$0xff]
        %v1834 = vld [vmem:[#allocation2 + $0x31] sm:$0xff]
        %v1835 = vld [vmem:[#allocation2 + $0x39] sm:$0xff]
        %v1836 = vld [vmem:[#allocation2 + $0x41] sm:$0xff]
        %v1837 = vld [vmem:[#allocation2 + $0x49] sm:$0xff]
        %v1838 = vld [vmem:[#allocation2 + $0x51] sm:$0xff]
        %v1839 = vld [vmem:[#allocation2 + $0x59] sm:$0xff]
        %v1840 = vld [vmem:[#allocation2 + $0x61] sm:$0xff]
        %v1841 = vld [vmem:[#allocation2 + $0x69] sm:$0xff]
        %v1842 = vld [vmem:[#allocation2 + $0x71] sm:$0xff]
        %v1843 = vld [vmem:[#allocation2 + $0x79] sm:$0xff]
        %v1844 = vld [vmem:[#allocation2 + $0x81] sm:$0xff]
        %v1845 = vld [vmem:[#allocation2 + $0x89] sm:$0xff]
        %v1846 = vld [vmem:[#allocation2 + $0x91] sm:$0xff]
        %v1847 = vld [vmem:[#allocation2 + $0x99] sm:$0xff]
        %v1848 = vld [vmem:[#allocation2 + $0xa1] sm:$0xff]
        %v1849 = vld [vmem:[#allocation2 + $0xa9] sm:$0xff]
        %v1850 = vld [vmem:[#allocation2 + $0xb1] sm:$0xff]
        %v1851 = vld [vmem:[#allocation2 + $0xb9] sm:$0xff]
        %v1852 = vld [vmem:[#allocation2 + $0xc1] sm:$0xff]
        %v1853 = vld [vmem:[#allocation2 + $0xc9] sm:$0xff]
        %v1854 = vld [vmem:[#allocation2 + $0xd1] sm:$0xff]
        %v1855 = vld [vmem:[#allocation2 + $0xd9] sm:$0xff]
        %v1856 = vld [vmem:[#allocation2 + $0xe1] sm:$0xff]
        %v1857 = vld [vmem:[#allocation2 + $0xe9] sm:$0xff]
        %v1858 = vld [vmem:[#allocation2 + $0xf1] sm:$0xff]
        %v1859 = vld [vmem:[#allocation2 + $0xf9] sm:$0xff]
        %v1860 = vld [vmem:[#allocation2 + $0x101] sm:$0xff]
        %v1861 = vld [vmem:[#allocation2 + $0x109] sm:$0xff]
        %v1862 = vld [vmem:[#allocation2 + $0x111] sm:$0xff]
        %v1863 = vld [vmem:[#allocation2 + $0x119] sm:$0xff]
        %v1864 = vsel %vm964, %v1832, 0.0
        %v1865 = vsel %vm965, %v1833, 0.0
        %v1866 = vsel %vm964, %v1834, 0.0
        %v1867 = vsel %vm965, %v1835, 0.0
        %v1868 = vsel %vm964, %v1836, 0.0
        %v1869 = vsel %vm965, %v1837, 0.0
        %v1870 = vsel %vm964, %v1838, 0.0
        %v1871 = vsel %vm965, %v1839, 0.0
        %v1872 = vsel %vm964, %v1840, 0.0
        %v1873 = vsel %vm965, %v1841, 0.0
        %v1874 = vsel %vm964, %v1842, 0.0
        %v1875 = vsel %vm965, %v1843, 0.0
        %v1876 = vsel %vm964, %v1844, 0.0
        %v1877 = vsel %vm965, %v1845, 0.0
        %v1878 = vsel %vm964, %v1846, 0.0
        %v1879 = vsel %vm965, %v1847, 0.0
        %v1880 = vsel %vm964, %v1848, 0.0
        %v1881 = vsel %vm965, %v1849, 0.0
        %v1882 = vsel %vm964, %v1850, 0.0
        %v1883 = vsel %vm965, %v1851, 0.0
        %v1884 = vsel %vm964, %v1852, 0.0
        %v1885 = vsel %vm965, %v1853, 0.0
        %v1886 = vsel %vm964, %v1854, 0.0
        %v1887 = vsel %vm965, %v1855, 0.0
        %v1888 = vsel %vm964, %v1856, 0.0
        %v1889 = vsel %vm965, %v1857, 0.0
        %v1890 = vsel %vm964, %v1858, 0.0
        %v1891 = vsel %vm965, %v1859, 0.0
        %v1892 = vsel %vm964, %v1860, 0.0
        %v1893 = vsel %vm965, %v1861, 0.0
        %v1894 = vsel %vm964, %v1862, 0.0
        %v1895 = vsel %vm965, %v1863, 0.0
        %s1896 = scalar_lea.vmem %s1, 20
        %v1897 = vld [vmem:[%s1896] sm:$0xf]
        %v1899 = vsel %vm362, %v1864, 0
        %v1902 = vsel %vm362, %v1865, 0
        %v1905 = vsel %vm362, %v1866, 0
        %v1908 = vsel %vm362, %v1867, 0
        %v1911 = vsel %vm362, %v1868, 0
        %v1914 = vsel %vm362, %v1869, 0
        %v1917 = vsel %vm362, %v1870, 0
        %v1920 = vsel %vm362, %v1871, 0
        %v1923 = vsel %vm362, %v1872, 0
        %v1926 = vsel %vm362, %v1873, 0
        %v1929 = vsel %vm362, %v1874, 0
        %v1932 = vsel %vm362, %v1875, 0
        %v1935 = vsel %vm362, %v1876, 0
        %v1938 = vsel %vm362, %v1877, 0
        %v1941 = vsel %vm362, %v1878, 0
        %v1944 = vsel %vm362, %v1879, 0
        %v1947 = vsel %vm362, %v1880, 0
        %v1950 = vsel %vm362, %v1881, 0
        %v1953 = vsel %vm362, %v1882, 0
        %v1956 = vsel %vm362, %v1883, 0
        %v1959 = vsel %vm362, %v1884, 0
        %v1962 = vsel %vm362, %v1885, 0
        %v1965 = vsel %vm362, %v1886, 0
        %v1968 = vsel %vm362, %v1887, 0
        %v1971 = vsel %vm362, %v1888, 0
        %v1974 = vsel %vm362, %v1889, 0
        %v1977 = vsel %vm362, %v1890, 0
        %v1980 = vsel %vm362, %v1891, 0
        %v1983 = vsel %vm362, %v1892, 0
        %v1986 = vsel %vm362, %v1893, 0
        %v1989 = vsel %vm362, %v1894, 0
        %v1992 = vsel %vm362, %v1895, 0
        %v1995 = vsel %vm603, %v1897, 0
        %1997 = vmatpush.msra.mxu0 0.0
        %1998 = vmatpush.msra.mxu0 0.0
        %1999 = vmatpush.msra.mxu0 0.0
        %2000 = vmatpush.msra.mxu0 0.0
        %2001 = vmatpush.msra.mxu0 0.0
        %2002 = vmatpush.msra.mxu0 0.0
        %2003 = vmatpush.msra.mxu0 0.0
        %2004 = vmatpush.msra.mxu0 0.0
        %2005 = vmatpush.msra.mxu0 0.0
        %2006 = vmatpush.msra.mxu0 0.0
        %2007 = vmatpush.msra.mxu0 0.0
        %2008 = vmatpush.msra.mxu0 0.0
        %2009 = vmatpush.msra.mxu0 0.0
        %2010 = vmatpush.msra.mxu0 0.0
        %2011 = vmatpush.msra.mxu0 0.0
        %2012 = vmatpush.msra.mxu0 %v1995
        %2013 = vmatmul.f32.gmra.mxu0 %v1899
        %v2014 = vpop.f32.mrf.mxu0
        %v2015 = vadd.f32 0.0, %v2014
        %2016 = vmatmul.f32.gmra.mxu0 %v1902
        %v2017 = vpop.f32.mrf.mxu0
        %v2018 = vadd.f32 0.0, %v2017
        %2019 = vmatmul.f32.gmra.mxu0 %v1905
        %v2020 = vpop.f32.mrf.mxu0
        %v2021 = vadd.f32 0.0, %v2020
        %2022 = vmatmul.f32.gmra.mxu0 %v1908
        %v2023 = vpop.f32.mrf.mxu0
        %v2024 = vadd.f32 0.0, %v2023
        %2025 = vmatmul.f32.gmra.mxu0 %v1911
        %v2026 = vpop.f32.mrf.mxu0
        %v2027 = vadd.f32 0.0, %v2026
        %2028 = vmatmul.f32.gmra.mxu0 %v1914
        %v2029 = vpop.f32.mrf.mxu0
        %v2030 = vadd.f32 0.0, %v2029
        %2031 = vmatmul.f32.gmra.mxu0 %v1917
        %v2032 = vpop.f32.mrf.mxu0
        %v2033 = vadd.f32 0.0, %v2032
        %2034 = vmatmul.f32.gmra.mxu0 %v1920
        %v2035 = vpop.f32.mrf.mxu0
        %v2036 = vadd.f32 0.0, %v2035
        %2037 = vmatmul.f32.gmra.mxu0 %v1923
        %v2038 = vpop.f32.mrf.mxu0
        %v2039 = vadd.f32 0.0, %v2038
        %2040 = vmatmul.f32.gmra.mxu0 %v1926
        %v2041 = vpop.f32.mrf.mxu0
        %v2042 = vadd.f32 0.0, %v2041
        %2043 = vmatmul.f32.gmra.mxu0 %v1929
        %v2044 = vpop.f32.mrf.mxu0
        %v2045 = vadd.f32 0.0, %v2044
        %2046 = vmatmul.f32.gmra.mxu0 %v1932
        %v2047 = vpop.f32.mrf.mxu0
        %v2048 = vadd.f32 0.0, %v2047
        %2049 = vmatmul.f32.gmra.mxu0 %v1935
        %v2050 = vpop.f32.mrf.mxu0
        %v2051 = vadd.f32 0.0, %v2050
        %2052 = vmatmul.f32.gmra.mxu0 %v1938
        %v2053 = vpop.f32.mrf.mxu0
        %v2054 = vadd.f32 0.0, %v2053
        %2055 = vmatmul.f32.gmra.mxu0 %v1941
        %v2056 = vpop.f32.mrf.mxu0
        %v2057 = vadd.f32 0.0, %v2056
        %2058 = vmatmul.f32.gmra.mxu0 %v1944
        %v2059 = vpop.f32.mrf.mxu0
        %v2060 = vadd.f32 0.0, %v2059
        %2061 = vmatmul.f32.gmra.mxu0 %v1947
        %v2062 = vpop.f32.mrf.mxu0
        %v2063 = vadd.f32 0.0, %v2062
        %2064 = vmatmul.f32.gmra.mxu0 %v1950
        %v2065 = vpop.f32.mrf.mxu0
        %v2066 = vadd.f32 0.0, %v2065
        %2067 = vmatmul.f32.gmra.mxu0 %v1953
        %v2068 = vpop.f32.mrf.mxu0
        %v2069 = vadd.f32 0.0, %v2068
        %2070 = vmatmul.f32.gmra.mxu0 %v1956
        %v2071 = vpop.f32.mrf.mxu0
        %v2072 = vadd.f32 0.0, %v2071
        %2073 = vmatmul.f32.gmra.mxu0 %v1959
        %v2074 = vpop.f32.mrf.mxu0
        %v2075 = vadd.f32 0.0, %v2074
        %2076 = vmatmul.f32.gmra.mxu0 %v1962
        %v2077 = vpop.f32.mrf.mxu0
        %v2078 = vadd.f32 0.0, %v2077
        %2079 = vmatmul.f32.gmra.mxu0 %v1965
        %v2080 = vpop.f32.mrf.mxu0
        %v2081 = vadd.f32 0.0, %v2080
        %2082 = vmatmul.f32.gmra.mxu0 %v1968
        %v2083 = vpop.f32.mrf.mxu0
        %v2084 = vadd.f32 0.0, %v2083
        %2085 = vmatmul.f32.gmra.mxu0 %v1971
        %v2086 = vpop.f32.mrf.mxu0
        %v2087 = vadd.f32 0.0, %v2086
        %2088 = vmatmul.f32.gmra.mxu0 %v1974
        %v2089 = vpop.f32.mrf.mxu0
        %v2090 = vadd.f32 0.0, %v2089
        %2091 = vmatmul.f32.gmra.mxu0 %v1977
        %v2092 = vpop.f32.mrf.mxu0
        %v2093 = vadd.f32 0.0, %v2092
        %2094 = vmatmul.f32.gmra.mxu0 %v1980
        %v2095 = vpop.f32.mrf.mxu0
        %v2096 = vadd.f32 0.0, %v2095
        %2097 = vmatmul.f32.gmra.mxu0 %v1983
        %v2098 = vpop.f32.mrf.mxu0
        %v2099 = vadd.f32 0.0, %v2098
        %2100 = vmatmul.f32.gmra.mxu0 %v1986
        %v2101 = vpop.f32.mrf.mxu0
        %v2102 = vadd.f32 0.0, %v2101
        %2103 = vmatmul.f32.gmra.mxu0 %v1989
        %v2104 = vpop.f32.mrf.mxu0
        %v2105 = vadd.f32 0.0, %v2104
        %2106 = vmatmul.f32.gmra.mxu0 %v1992
        %v2107 = vpop.f32.mrf.mxu0
        %v2108 = vadd.f32 0.0, %v2107
        %2109 = vdwg.mxu0
        %v2110 = vadd.f32 %v1800, %v2015
        %v2111 = vadd.f32 %v1801, %v2018
        %v2112 = vadd.f32 %v1802, %v2021
        %v2113 = vadd.f32 %v1803, %v2024
        %v2114 = vadd.f32 %v1804, %v2027
        %v2115 = vadd.f32 %v1805, %v2030
        %v2116 = vadd.f32 %v1806, %v2033
        %v2117 = vadd.f32 %v1807, %v2036
        %v2118 = vadd.f32 %v1808, %v2039
        %v2119 = vadd.f32 %v1809, %v2042
        %v2120 = vadd.f32 %v1810, %v2045
        %v2121 = vadd.f32 %v1811, %v2048
        %v2122 = vadd.f32 %v1812, %v2051
        %v2123 = vadd.f32 %v1813, %v2054
        %v2124 = vadd.f32 %v1814, %v2057
        %v2125 = vadd.f32 %v1815, %v2060
        %v2126 = vadd.f32 %v1816, %v2063
        %v2127 = vadd.f32 %v1817, %v2066
        %v2128 = vadd.f32 %v1818, %v2069
        %v2129 = vadd.f32 %v1819, %v2072
        %v2130 = vadd.f32 %v1820, %v2075
        %v2131 = vadd.f32 %v1821, %v2078
        %v2132 = vadd.f32 %v1822, %v2081
        %v2133 = vadd.f32 %v1823, %v2084
        %v2134 = vadd.f32 %v1824, %v2087
        %v2135 = vadd.f32 %v1825, %v2090
        %v2136 = vadd.f32 %v1826, %v2093
        %v2137 = vadd.f32 %v1827, %v2096
        %v2138 = vadd.f32 %v1828, %v2099
        %v2139 = vadd.f32 %v1829, %v2102
        %v2140 = vadd.f32 %v1830, %v2105
        %v2141 = vadd.f32 %v1831, %v2108
        %v2142 = vld [vmem:[#allocation2 + $0x2f] sm:$0xff]
        %v2143 = vld [vmem:[#allocation2 + $0x37] sm:$0xff]
        %v2144 = vld [vmem:[#allocation2 + $0x3f] sm:$0xff]
        %v2145 = vld [vmem:[#allocation2 + $0x47] sm:$0xff]
        %v2146 = vld [vmem:[#allocation2 + $0x4f] sm:$0xff]
        %v2147 = vld [vmem:[#allocation2 + $0x57] sm:$0xff]
        %v2148 = vld [vmem:[#allocation2 + $0x5f] sm:$0xff]
        %v2149 = vld [vmem:[#allocation2 + $0x67] sm:$0xff]
        %v2150 = vld [vmem:[#allocation2 + $0x6f] sm:$0xff]
        %v2151 = vld [vmem:[#allocation2 + $0x77] sm:$0xff]
        %v2152 = vld [vmem:[#allocation2 + $0x7f] sm:$0xff]
        %v2153 = vld [vmem:[#allocation2 + $0x87] sm:$0xff]
        %v2154 = vld [vmem:[#allocation2 + $0x8f] sm:$0xff]
        %v2155 = vld [vmem:[#allocation2 + $0x97] sm:$0xff]
        %v2156 = vld [vmem:[#allocation2 + $0x9f] sm:$0xff]
        %v2157 = vld [vmem:[#allocation2 + $0xa7] sm:$0xff]
        %v2158 = vld [vmem:[#allocation2 + $0xaf] sm:$0xff]
        %v2159 = vld [vmem:[#allocation2 + $0xb7] sm:$0xff]
        %v2160 = vld [vmem:[#allocation2 + $0xbf] sm:$0xff]
        %v2161 = vld [vmem:[#allocation2 + $0xc7] sm:$0xff]
        %v2162 = vld [vmem:[#allocation2 + $0xcf] sm:$0xff]
        %v2163 = vld [vmem:[#allocation2 + $0xd7] sm:$0xff]
        %v2164 = vld [vmem:[#allocation2 + $0xdf] sm:$0xff]
        %v2165 = vld [vmem:[#allocation2 + $0xe7] sm:$0xff]
        %v2166 = vld [vmem:[#allocation2 + $0xef] sm:$0xff]
        %v2167 = vld [vmem:[#allocation2 + $0xf7] sm:$0xff]
        %v2168 = vld [vmem:[#allocation2 + $0xff] sm:$0xff]
        %v2169 = vld [vmem:[#allocation2 + $0x107] sm:$0xff]
        %v2170 = vld [vmem:[#allocation2 + $0x10f] sm:$0xff]
        %v2171 = vld [vmem:[#allocation2 + $0x117] sm:$0xff]
        %v2172 = vld [vmem:[#allocation2 + $0x11f] sm:$0xff]
        %v2173 = vld [vmem:[#allocation2 + $0x127] sm:$0xff]
        %v2174 = vsel %vm438, %v2142, 0.0
        %v2175 = vsel %vm439, %v2143, 0.0
        %v2176 = vsel %vm438, %v2144, 0.0
        %v2177 = vsel %vm439, %v2145, 0.0
        %v2178 = vsel %vm438, %v2146, 0.0
        %v2179 = vsel %vm439, %v2147, 0.0
        %v2180 = vsel %vm438, %v2148, 0.0
        %v2181 = vsel %vm439, %v2149, 0.0
        %v2182 = vsel %vm438, %v2150, 0.0
        %v2183 = vsel %vm439, %v2151, 0.0
        %v2184 = vsel %vm438, %v2152, 0.0
        %v2185 = vsel %vm439, %v2153, 0.0
        %v2186 = vsel %vm438, %v2154, 0.0
        %v2187 = vsel %vm439, %v2155, 0.0
        %v2188 = vsel %vm438, %v2156, 0.0
        %v2189 = vsel %vm439, %v2157, 0.0
        %v2190 = vsel %vm438, %v2158, 0.0
        %v2191 = vsel %vm439, %v2159, 0.0
        %v2192 = vsel %vm438, %v2160, 0.0
        %v2193 = vsel %vm439, %v2161, 0.0
        %v2194 = vsel %vm438, %v2162, 0.0
        %v2195 = vsel %vm439, %v2163, 0.0
        %v2196 = vsel %vm438, %v2164, 0.0
        %v2197 = vsel %vm439, %v2165, 0.0
        %v2198 = vsel %vm438, %v2166, 0.0
        %v2199 = vsel %vm439, %v2167, 0.0
        %v2200 = vsel %vm438, %v2168, 0.0
        %v2201 = vsel %vm439, %v2169, 0.0
        %v2202 = vsel %vm438, %v2170, 0.0
        %v2203 = vsel %vm439, %v2171, 0.0
        %v2204 = vsel %vm438, %v2172, 0.0
        %v2205 = vsel %vm439, %v2173, 0.0
        %s2206 = scalar_lea.vmem %s1, 24
        %v2207 = vld [vmem:[%s2206] sm:$0xf]
        %v2209 = vsel %vm362, %v2174, 0
        %v2212 = vsel %vm362, %v2175, 0
        %v2215 = vsel %vm362, %v2176, 0
        %v2218 = vsel %vm362, %v2177, 0
        %v2221 = vsel %vm362, %v2178, 0
        %v2224 = vsel %vm362, %v2179, 0
        %v2227 = vsel %vm362, %v2180, 0
        %v2230 = vsel %vm362, %v2181, 0
        %v2233 = vsel %vm362, %v2182, 0
        %v2236 = vsel %vm362, %v2183, 0
        %v2239 = vsel %vm362, %v2184, 0
        %v2242 = vsel %vm362, %v2185, 0
        %v2245 = vsel %vm362, %v2186, 0
        %v2248 = vsel %vm362, %v2187, 0
        %v2251 = vsel %vm362, %v2188, 0
        %v2254 = vsel %vm362, %v2189, 0
        %v2257 = vsel %vm362, %v2190, 0
        %v2260 = vsel %vm362, %v2191, 0
        %v2263 = vsel %vm362, %v2192, 0
        %v2266 = vsel %vm362, %v2193, 0
        %v2269 = vsel %vm362, %v2194, 0
        %v2272 = vsel %vm362, %v2195, 0
        %v2275 = vsel %vm362, %v2196, 0
        %v2278 = vsel %vm362, %v2197, 0
        %v2281 = vsel %vm362, %v2198, 0
        %v2284 = vsel %vm362, %v2199, 0
        %v2287 = vsel %vm362, %v2200, 0
        %v2290 = vsel %vm362, %v2201, 0
        %v2293 = vsel %vm362, %v2202, 0
        %v2296 = vsel %vm362, %v2203, 0
        %v2299 = vsel %vm362, %v2204, 0
        %v2302 = vsel %vm362, %v2205, 0
        %v2305 = vsel %vm603, %v2207, 0
        %2307 = vmatpush.msra.mxu0 0.0
        %2308 = vmatpush.msra.mxu0 0.0
        %2309 = vmatpush.msra.mxu0 0.0
        %2310 = vmatpush.msra.mxu0 0.0
        %2311 = vmatpush.msra.mxu0 0.0
        %2312 = vmatpush.msra.mxu0 0.0
        %2313 = vmatpush.msra.mxu0 0.0
        %2314 = vmatpush.msra.mxu0 0.0
        %2315 = vmatpush.msra.mxu0 0.0
        %2316 = vmatpush.msra.mxu0 0.0
        %2317 = vmatpush.msra.mxu0 0.0
        %2318 = vmatpush.msra.mxu0 0.0
        %2319 = vmatpush.msra.mxu0 0.0
        %2320 = vmatpush.msra.mxu0 0.0
        %2321 = vmatpush.msra.mxu0 0.0
        %2322 = vmatpush.msra.mxu0 %v2305
        %2323 = vmatmul.f32.gmra.mxu0 %v2209
        %v2324 = vpop.f32.mrf.mxu0
        %v2325 = vadd.f32 0.0, %v2324
        %2326 = vmatmul.f32.gmra.mxu0 %v2212
        %v2327 = vpop.f32.mrf.mxu0
        %v2328 = vadd.f32 0.0, %v2327
        %2329 = vmatmul.f32.gmra.mxu0 %v2215
        %v2330 = vpop.f32.mrf.mxu0
        %v2331 = vadd.f32 0.0, %v2330
        %2332 = vmatmul.f32.gmra.mxu0 %v2218
        %v2333 = vpop.f32.mrf.mxu0
        %v2334 = vadd.f32 0.0, %v2333
        %2335 = vmatmul.f32.gmra.mxu0 %v2221
        %v2336 = vpop.f32.mrf.mxu0
        %v2337 = vadd.f32 0.0, %v2336
        %2338 = vmatmul.f32.gmra.mxu0 %v2224
        %v2339 = vpop.f32.mrf.mxu0
        %v2340 = vadd.f32 0.0, %v2339
        %2341 = vmatmul.f32.gmra.mxu0 %v2227
        %v2342 = vpop.f32.mrf.mxu0
        %v2343 = vadd.f32 0.0, %v2342
        %2344 = vmatmul.f32.gmra.mxu0 %v2230
        %v2345 = vpop.f32.mrf.mxu0
        %v2346 = vadd.f32 0.0, %v2345
        %2347 = vmatmul.f32.gmra.mxu0 %v2233
        %v2348 = vpop.f32.mrf.mxu0
        %v2349 = vadd.f32 0.0, %v2348
        %2350 = vmatmul.f32.gmra.mxu0 %v2236
        %v2351 = vpop.f32.mrf.mxu0
        %v2352 = vadd.f32 0.0, %v2351
        %2353 = vmatmul.f32.gmra.mxu0 %v2239
        %v2354 = vpop.f32.mrf.mxu0
        %v2355 = vadd.f32 0.0, %v2354
        %2356 = vmatmul.f32.gmra.mxu0 %v2242
        %v2357 = vpop.f32.mrf.mxu0
        %v2358 = vadd.f32 0.0, %v2357
        %2359 = vmatmul.f32.gmra.mxu0 %v2245
        %v2360 = vpop.f32.mrf.mxu0
        %v2361 = vadd.f32 0.0, %v2360
        %2362 = vmatmul.f32.gmra.mxu0 %v2248
        %v2363 = vpop.f32.mrf.mxu0
        %v2364 = vadd.f32 0.0, %v2363
        %2365 = vmatmul.f32.gmra.mxu0 %v2251
        %v2366 = vpop.f32.mrf.mxu0
        %v2367 = vadd.f32 0.0, %v2366
        %2368 = vmatmul.f32.gmra.mxu0 %v2254
        %v2369 = vpop.f32.mrf.mxu0
        %v2370 = vadd.f32 0.0, %v2369
        %2371 = vmatmul.f32.gmra.mxu0 %v2257
        %v2372 = vpop.f32.mrf.mxu0
        %v2373 = vadd.f32 0.0, %v2372
        %2374 = vmatmul.f32.gmra.mxu0 %v2260
        %v2375 = vpop.f32.mrf.mxu0
        %v2376 = vadd.f32 0.0, %v2375
        %2377 = vmatmul.f32.gmra.mxu0 %v2263
        %v2378 = vpop.f32.mrf.mxu0
        %v2379 = vadd.f32 0.0, %v2378
        %2380 = vmatmul.f32.gmra.mxu0 %v2266
        %v2381 = vpop.f32.mrf.mxu0
        %v2382 = vadd.f32 0.0, %v2381
        %2383 = vmatmul.f32.gmra.mxu0 %v2269
        %v2384 = vpop.f32.mrf.mxu0
        %v2385 = vadd.f32 0.0, %v2384
        %2386 = vmatmul.f32.gmra.mxu0 %v2272
        %v2387 = vpop.f32.mrf.mxu0
        %v2388 = vadd.f32 0.0, %v2387
        %2389 = vmatmul.f32.gmra.mxu0 %v2275
        %v2390 = vpop.f32.mrf.mxu0
        %v2391 = vadd.f32 0.0, %v2390
        %2392 = vmatmul.f32.gmra.mxu0 %v2278
        %v2393 = vpop.f32.mrf.mxu0
        %v2394 = vadd.f32 0.0, %v2393
        %2395 = vmatmul.f32.gmra.mxu0 %v2281
        %v2396 = vpop.f32.mrf.mxu0
        %v2397 = vadd.f32 0.0, %v2396
        %2398 = vmatmul.f32.gmra.mxu0 %v2284
        %v2399 = vpop.f32.mrf.mxu0
        %v2400 = vadd.f32 0.0, %v2399
        %2401 = vmatmul.f32.gmra.mxu0 %v2287
        %v2402 = vpop.f32.mrf.mxu0
        %v2403 = vadd.f32 0.0, %v2402
        %2404 = vmatmul.f32.gmra.mxu0 %v2290
        %v2405 = vpop.f32.mrf.mxu0
        %v2406 = vadd.f32 0.0, %v2405
        %2407 = vmatmul.f32.gmra.mxu0 %v2293
        %v2408 = vpop.f32.mrf.mxu0
        %v2409 = vadd.f32 0.0, %v2408
        %2410 = vmatmul.f32.gmra.mxu0 %v2296
        %v2411 = vpop.f32.mrf.mxu0
        %v2412 = vadd.f32 0.0, %v2411
        %2413 = vmatmul.f32.gmra.mxu0 %v2299
        %v2414 = vpop.f32.mrf.mxu0
        %v2415 = vadd.f32 0.0, %v2414
        %2416 = vmatmul.f32.gmra.mxu0 %v2302
        %v2417 = vpop.f32.mrf.mxu0
        %v2418 = vadd.f32 0.0, %v2417
        %2419 = vdwg.mxu0
        %v2420 = vadd.f32 %v2110, %v2325
        %v2421 = vadd.f32 %v2111, %v2328
        %v2422 = vadd.f32 %v2112, %v2331
        %v2423 = vadd.f32 %v2113, %v2334
        %v2424 = vadd.f32 %v2114, %v2337
        %v2425 = vadd.f32 %v2115, %v2340
        %v2426 = vadd.f32 %v2116, %v2343
        %v2427 = vadd.f32 %v2117, %v2346
        %v2428 = vadd.f32 %v2118, %v2349
        %v2429 = vadd.f32 %v2119, %v2352
        %v2430 = vadd.f32 %v2120, %v2355
        %v2431 = vadd.f32 %v2121, %v2358
        %v2432 = vadd.f32 %v2122, %v2361
        %v2433 = vadd.f32 %v2123, %v2364
        %v2434 = vadd.f32 %v2124, %v2367
        %v2435 = vadd.f32 %v2125, %v2370
        %v2436 = vadd.f32 %v2126, %v2373
        %v2437 = vadd.f32 %v2127, %v2376
        %v2438 = vadd.f32 %v2128, %v2379
        %v2439 = vadd.f32 %v2129, %v2382
        %v2440 = vadd.f32 %v2130, %v2385
        %v2441 = vadd.f32 %v2131, %v2388
        %v2442 = vadd.f32 %v2132, %v2391
        %v2443 = vadd.f32 %v2133, %v2394
        %v2444 = vadd.f32 %v2134, %v2397
        %v2445 = vadd.f32 %v2135, %v2400
        %v2446 = vadd.f32 %v2136, %v2403
        %v2447 = vadd.f32 %v2137, %v2406
        %v2448 = vadd.f32 %v2138, %v2409
        %v2449 = vadd.f32 %v2139, %v2412
        %v2450 = vadd.f32 %v2140, %v2415
        %v2451 = vadd.f32 %v2141, %v2418
        %v2452 = vld [vmem:[#allocation2 + $0x30] sm:$0xff]
        %v2453 = vld [vmem:[#allocation2 + $0x38] sm:$0xff]
        %v2454 = vld [vmem:[#allocation2 + $0x40] sm:$0xff]
        %v2455 = vld [vmem:[#allocation2 + $0x48] sm:$0xff]
        %v2456 = vld [vmem:[#allocation2 + $0x50] sm:$0xff]
        %v2457 = vld [vmem:[#allocation2 + $0x58] sm:$0xff]
        %v2458 = vld [vmem:[#allocation2 + $0x60] sm:$0xff]
        %v2459 = vld [vmem:[#allocation2 + $0x68] sm:$0xff]
        %v2460 = vld [vmem:[#allocation2 + $0x70] sm:$0xff]
        %v2461 = vld [vmem:[#allocation2 + $0x78] sm:$0xff]
        %v2462 = vld [vmem:[#allocation2 + $0x80] sm:$0xff]
        %v2463 = vld [vmem:[#allocation2 + $0x88] sm:$0xff]
        %v2464 = vld [vmem:[#allocation2 + $0x90] sm:$0xff]
        %v2465 = vld [vmem:[#allocation2 + $0x98] sm:$0xff]
        %v2466 = vld [vmem:[#allocation2 + $0xa0] sm:$0xff]
        %v2467 = vld [vmem:[#allocation2 + $0xa8] sm:$0xff]
        %v2468 = vld [vmem:[#allocation2 + $0xb0] sm:$0xff]
        %v2469 = vld [vmem:[#allocation2 + $0xb8] sm:$0xff]
        %v2470 = vld [vmem:[#allocation2 + $0xc0] sm:$0xff]
        %v2471 = vld [vmem:[#allocation2 + $0xc8] sm:$0xff]
        %v2472 = vld [vmem:[#allocation2 + $0xd0] sm:$0xff]
        %v2473 = vld [vmem:[#allocation2 + $0xd8] sm:$0xff]
        %v2474 = vld [vmem:[#allocation2 + $0xe0] sm:$0xff]
        %v2475 = vld [vmem:[#allocation2 + $0xe8] sm:$0xff]
        %v2476 = vld [vmem:[#allocation2 + $0xf0] sm:$0xff]
        %v2477 = vld [vmem:[#allocation2 + $0xf8] sm:$0xff]
        %v2478 = vld [vmem:[#allocation2 + $0x100] sm:$0xff]
        %v2479 = vld [vmem:[#allocation2 + $0x108] sm:$0xff]
        %v2480 = vld [vmem:[#allocation2 + $0x110] sm:$0xff]
        %v2481 = vld [vmem:[#allocation2 + $0x118] sm:$0xff]
        %v2482 = vld [vmem:[#allocation2 + $0x120] sm:$0xff]
        %v2483 = vld [vmem:[#allocation2 + $0x128] sm:$0xff]
        %s2484 = scalar_lea.vmem %s1, 28
        %v2485 = vld [vmem:[%s2484] sm:$0xf]
        %v2487 = vsel %vm362, %v2452, 0
        %v2490 = vsel %vm362, %v2453, 0
        %v2493 = vsel %vm362, %v2454, 0
        %v2496 = vsel %vm362, %v2455, 0
        %v2499 = vsel %vm362, %v2456, 0
        %v2502 = vsel %vm362, %v2457, 0
        %v2505 = vsel %vm362, %v2458, 0
        %v2508 = vsel %vm362, %v2459, 0
        %v2511 = vsel %vm362, %v2460, 0
        %v2514 = vsel %vm362, %v2461, 0
        %v2517 = vsel %vm362, %v2462, 0
        %v2520 = vsel %vm362, %v2463, 0
        %v2523 = vsel %vm362, %v2464, 0
        %v2526 = vsel %vm362, %v2465, 0
        %v2529 = vsel %vm362, %v2466, 0
        %v2532 = vsel %vm362, %v2467, 0
        %v2535 = vsel %vm362, %v2468, 0
        %v2538 = vsel %vm362, %v2469, 0
        %v2541 = vsel %vm362, %v2470, 0
        %v2544 = vsel %vm362, %v2471, 0
        %v2547 = vsel %vm362, %v2472, 0
        %v2550 = vsel %vm362, %v2473, 0
        %v2553 = vsel %vm362, %v2474, 0
        %v2556 = vsel %vm362, %v2475, 0
        %v2559 = vsel %vm362, %v2476, 0
        %v2562 = vsel %vm362, %v2477, 0
        %v2565 = vsel %vm362, %v2478, 0
        %v2568 = vsel %vm362, %v2479, 0
        %v2571 = vsel %vm362, %v2480, 0
        %v2574 = vsel %vm362, %v2481, 0
        %v2577 = vsel %vm362, %v2482, 0
        %v2580 = vsel %vm362, %v2483, 0
        %v2583 = vsel %vm603, %v2485, 0
        %2585 = vmatpush.msra.mxu0 0.0
        %2586 = vmatpush.msra.mxu0 0.0
        %2587 = vmatpush.msra.mxu0 0.0
        %2588 = vmatpush.msra.mxu0 0.0
        %2589 = vmatpush.msra.mxu0 0.0
        %2590 = vmatpush.msra.mxu0 0.0
        %2591 = vmatpush.msra.mxu0 0.0
        %2592 = vmatpush.msra.mxu0 0.0
        %2593 = vmatpush.msra.mxu0 0.0
        %2594 = vmatpush.msra.mxu0 0.0
        %2595 = vmatpush.msra.mxu0 0.0
        %2596 = vmatpush.msra.mxu0 0.0
        %2597 = vmatpush.msra.mxu0 0.0
        %2598 = vmatpush.msra.mxu0 0.0
        %2599 = vmatpush.msra.mxu0 0.0
        %2600 = vmatpush.msra.mxu0 %v2583
        %2601 = vmatmul.f32.gmra.mxu0 %v2487
        %v2602 = vpop.f32.mrf.mxu0
        %v2603 = vadd.f32 0.0, %v2602
        %2604 = vmatmul.f32.gmra.mxu0 %v2490
        %v2605 = vpop.f32.mrf.mxu0
        %v2606 = vadd.f32 0.0, %v2605
        %2607 = vmatmul.f32.gmra.mxu0 %v2493
        %v2608 = vpop.f32.mrf.mxu0
        %v2609 = vadd.f32 0.0, %v2608
        %2610 = vmatmul.f32.gmra.mxu0 %v2496
        %v2611 = vpop.f32.mrf.mxu0
        %v2612 = vadd.f32 0.0, %v2611
        %2613 = vmatmul.f32.gmra.mxu0 %v2499
        %v2614 = vpop.f32.mrf.mxu0
        %v2615 = vadd.f32 0.0, %v2614
        %2616 = vmatmul.f32.gmra.mxu0 %v2502
        %v2617 = vpop.f32.mrf.mxu0
        %v2618 = vadd.f32 0.0, %v2617
        %2619 = vmatmul.f32.gmra.mxu0 %v2505
        %v2620 = vpop.f32.mrf.mxu0
        %v2621 = vadd.f32 0.0, %v2620
        %2622 = vmatmul.f32.gmra.mxu0 %v2508
        %v2623 = vpop.f32.mrf.mxu0
        %v2624 = vadd.f32 0.0, %v2623
        %2625 = vmatmul.f32.gmra.mxu0 %v2511
        %v2626 = vpop.f32.mrf.mxu0
        %v2627 = vadd.f32 0.0, %v2626
        %2628 = vmatmul.f32.gmra.mxu0 %v2514
        %v2629 = vpop.f32.mrf.mxu0
        %v2630 = vadd.f32 0.0, %v2629
        %2631 = vmatmul.f32.gmra.mxu0 %v2517
        %v2632 = vpop.f32.mrf.mxu0
        %v2633 = vadd.f32 0.0, %v2632
        %2634 = vmatmul.f32.gmra.mxu0 %v2520
        %v2635 = vpop.f32.mrf.mxu0
        %v2636 = vadd.f32 0.0, %v2635
        %2637 = vmatmul.f32.gmra.mxu0 %v2523
        %v2638 = vpop.f32.mrf.mxu0
        %v2639 = vadd.f32 0.0, %v2638
        %2640 = vmatmul.f32.gmra.mxu0 %v2526
        %v2641 = vpop.f32.mrf.mxu0
        %v2642 = vadd.f32 0.0, %v2641
        %2643 = vmatmul.f32.gmra.mxu0 %v2529
        %v2644 = vpop.f32.mrf.mxu0
        %v2645 = vadd.f32 0.0, %v2644
        %2646 = vmatmul.f32.gmra.mxu0 %v2532
        %v2647 = vpop.f32.mrf.mxu0
        %v2648 = vadd.f32 0.0, %v2647
        %2649 = vmatmul.f32.gmra.mxu0 %v2535
        %v2650 = vpop.f32.mrf.mxu0
        %v2651 = vadd.f32 0.0, %v2650
        %2652 = vmatmul.f32.gmra.mxu0 %v2538
        %v2653 = vpop.f32.mrf.mxu0
        %v2654 = vadd.f32 0.0, %v2653
        %2655 = vmatmul.f32.gmra.mxu0 %v2541
        %v2656 = vpop.f32.mrf.mxu0
        %v2657 = vadd.f32 0.0, %v2656
        %2658 = vmatmul.f32.gmra.mxu0 %v2544
        %v2659 = vpop.f32.mrf.mxu0
        %v2660 = vadd.f32 0.0, %v2659
        %2661 = vmatmul.f32.gmra.mxu0 %v2547
        %v2662 = vpop.f32.mrf.mxu0
        %v2663 = vadd.f32 0.0, %v2662
        %2664 = vmatmul.f32.gmra.mxu0 %v2550
        %v2665 = vpop.f32.mrf.mxu0
        %v2666 = vadd.f32 0.0, %v2665
        %2667 = vmatmul.f32.gmra.mxu0 %v2553
        %v2668 = vpop.f32.mrf.mxu0
        %v2669 = vadd.f32 0.0, %v2668
        %2670 = vmatmul.f32.gmra.mxu0 %v2556
        %v2671 = vpop.f32.mrf.mxu0
        %v2672 = vadd.f32 0.0, %v2671
        %2673 = vmatmul.f32.gmra.mxu0 %v2559
        %v2674 = vpop.f32.mrf.mxu0
        %v2675 = vadd.f32 0.0, %v2674
        %2676 = vmatmul.f32.gmra.mxu0 %v2562
        %v2677 = vpop.f32.mrf.mxu0
        %v2678 = vadd.f32 0.0, %v2677
        %2679 = vmatmul.f32.gmra.mxu0 %v2565
        %v2680 = vpop.f32.mrf.mxu0
        %v2681 = vadd.f32 0.0, %v2680
        %2682 = vmatmul.f32.gmra.mxu0 %v2568
        %v2683 = vpop.f32.mrf.mxu0
        %v2684 = vadd.f32 0.0, %v2683
        %2685 = vmatmul.f32.gmra.mxu0 %v2571
        %v2686 = vpop.f32.mrf.mxu0
        %v2687 = vadd.f32 0.0, %v2686
        %2688 = vmatmul.f32.gmra.mxu0 %v2574
        %v2689 = vpop.f32.mrf.mxu0
        %v2690 = vadd.f32 0.0, %v2689
        %2691 = vmatmul.f32.gmra.mxu0 %v2577
        %v2692 = vpop.f32.mrf.mxu0
        %v2693 = vadd.f32 0.0, %v2692
        %2694 = vmatmul.f32.gmra.mxu0 %v2580
        %v2695 = vpop.f32.mrf.mxu0
        %v2696 = vadd.f32 0.0, %v2695
        %2697 = vdwg.mxu0
        %v2698 = vadd.f32 %v2420, %v2603
        %v2699 = vadd.f32 %v2421, %v2606
        %v2700 = vadd.f32 %v2422, %v2609
        %v2701 = vadd.f32 %v2423, %v2612
        %v2702 = vadd.f32 %v2424, %v2615
        %v2703 = vadd.f32 %v2425, %v2618
        %v2704 = vadd.f32 %v2426, %v2621
        %v2705 = vadd.f32 %v2427, %v2624
        %v2706 = vadd.f32 %v2428, %v2627
        %v2707 = vadd.f32 %v2429, %v2630
        %v2708 = vadd.f32 %v2430, %v2633
        %v2709 = vadd.f32 %v2431, %v2636
        %v2710 = vadd.f32 %v2432, %v2639
        %v2711 = vadd.f32 %v2433, %v2642
        %v2712 = vadd.f32 %v2434, %v2645
        %v2713 = vadd.f32 %v2435, %v2648
        %v2714 = vadd.f32 %v2436, %v2651
        %v2715 = vadd.f32 %v2437, %v2654
        %v2716 = vadd.f32 %v2438, %v2657
        %v2717 = vadd.f32 %v2439, %v2660
        %v2718 = vadd.f32 %v2440, %v2663
        %v2719 = vadd.f32 %v2441, %v2666
        %v2720 = vadd.f32 %v2442, %v2669
        %v2721 = vadd.f32 %v2443, %v2672
        %v2722 = vadd.f32 %v2444, %v2675
        %v2723 = vadd.f32 %v2445, %v2678
        %v2724 = vadd.f32 %v2446, %v2681
        %v2725 = vadd.f32 %v2447, %v2684
        %v2726 = vadd.f32 %v2448, %v2687
        %v2727 = vadd.f32 %v2449, %v2690
        %v2728 = vadd.f32 %v2450, %v2693
        %v2729 = vadd.f32 %v2451, %v2696
        %v2730 = vld [vmem:[#allocation2 + $0x31] sm:$0xff]
        %v2731 = vld [vmem:[#allocation2 + $0x39] sm:$0xff]
        %v2732 = vld [vmem:[#allocation2 + $0x41] sm:$0xff]
        %v2733 = vld [vmem:[#allocation2 + $0x49] sm:$0xff]
        %v2734 = vld [vmem:[#allocation2 + $0x51] sm:$0xff]
        %v2735 = vld [vmem:[#allocation2 + $0x59] sm:$0xff]
        %v2736 = vld [vmem:[#allocation2 + $0x61] sm:$0xff]
        %v2737 = vld [vmem:[#allocation2 + $0x69] sm:$0xff]
        %v2738 = vld [vmem:[#allocation2 + $0x71] sm:$0xff]
        %v2739 = vld [vmem:[#allocation2 + $0x79] sm:$0xff]
        %v2740 = vld [vmem:[#allocation2 + $0x81] sm:$0xff]
        %v2741 = vld [vmem:[#allocation2 + $0x89] sm:$0xff]
        %v2742 = vld [vmem:[#allocation2 + $0x91] sm:$0xff]
        %v2743 = vld [vmem:[#allocation2 + $0x99] sm:$0xff]
        %v2744 = vld [vmem:[#allocation2 + $0xa1] sm:$0xff]
        %v2745 = vld [vmem:[#allocation2 + $0xa9] sm:$0xff]
        %v2746 = vld [vmem:[#allocation2 + $0xb1] sm:$0xff]
        %v2747 = vld [vmem:[#allocation2 + $0xb9] sm:$0xff]
        %v2748 = vld [vmem:[#allocation2 + $0xc1] sm:$0xff]
        %v2749 = vld [vmem:[#allocation2 + $0xc9] sm:$0xff]
        %v2750 = vld [vmem:[#allocation2 + $0xd1] sm:$0xff]
        %v2751 = vld [vmem:[#allocation2 + $0xd9] sm:$0xff]
        %v2752 = vld [vmem:[#allocation2 + $0xe1] sm:$0xff]
        %v2753 = vld [vmem:[#allocation2 + $0xe9] sm:$0xff]
        %v2754 = vld [vmem:[#allocation2 + $0xf1] sm:$0xff]
        %v2755 = vld [vmem:[#allocation2 + $0xf9] sm:$0xff]
        %v2756 = vld [vmem:[#allocation2 + $0x101] sm:$0xff]
        %v2757 = vld [vmem:[#allocation2 + $0x109] sm:$0xff]
        %v2758 = vld [vmem:[#allocation2 + $0x111] sm:$0xff]
        %v2759 = vld [vmem:[#allocation2 + $0x119] sm:$0xff]
        %v2760 = vld [vmem:[#allocation2 + $0x121] sm:$0xff]
        %v2761 = vld [vmem:[#allocation2 + $0x129] sm:$0xff]
        %v2762 = vsel %vm964, %v2730, 0.0
        %v2763 = vsel %vm965, %v2731, 0.0
        %v2764 = vsel %vm964, %v2732, 0.0
        %v2765 = vsel %vm965, %v2733, 0.0
        %v2766 = vsel %vm964, %v2734, 0.0
        %v2767 = vsel %vm965, %v2735, 0.0
        %v2768 = vsel %vm964, %v2736, 0.0
        %v2769 = vsel %vm965, %v2737, 0.0
        %v2770 = vsel %vm964, %v2738, 0.0
        %v2771 = vsel %vm965, %v2739, 0.0
        %v2772 = vsel %vm964, %v2740, 0.0
        %v2773 = vsel %vm965, %v2741, 0.0
        %v2774 = vsel %vm964, %v2742, 0.0
        %v2775 = vsel %vm965, %v2743, 0.0
        %v2776 = vsel %vm964, %v2744, 0.0
        %v2777 = vsel %vm965, %v2745, 0.0
        %v2778 = vsel %vm964, %v2746, 0.0
        %v2779 = vsel %vm965, %v2747, 0.0
        %v2780 = vsel %vm964, %v2748, 0.0
        %v2781 = vsel %vm965, %v2749, 0.0
        %v2782 = vsel %vm964, %v2750, 0.0
        %v2783 = vsel %vm965, %v2751, 0.0
        %v2784 = vsel %vm964, %v2752, 0.0
        %v2785 = vsel %vm965, %v2753, 0.0
        %v2786 = vsel %vm964, %v2754, 0.0
        %v2787 = vsel %vm965, %v2755, 0.0
        %v2788 = vsel %vm964, %v2756, 0.0
        %v2789 = vsel %vm965, %v2757, 0.0
        %v2790 = vsel %vm964, %v2758, 0.0
        %v2791 = vsel %vm965, %v2759, 0.0
        %v2792 = vsel %vm964, %v2760, 0.0
        %v2793 = vsel %vm965, %v2761, 0.0
        %s2794 = scalar_lea.vmem %s1, 32
        %v2795 = vld [vmem:[%s2794] sm:$0xf]
        %v2797 = vsel %vm362, %v2762, 0
        %v2800 = vsel %vm362, %v2763, 0
        %v2803 = vsel %vm362, %v2764, 0
        %v2806 = vsel %vm362, %v2765, 0
        %v2809 = vsel %vm362, %v2766, 0
        %v2812 = vsel %vm362, %v2767, 0
        %v2815 = vsel %vm362, %v2768, 0
        %v2818 = vsel %vm362, %v2769, 0
        %v2821 = vsel %vm362, %v2770, 0
        %v2824 = vsel %vm362, %v2771, 0
        %v2827 = vsel %vm362, %v2772, 0
        %v2830 = vsel %vm362, %v2773, 0
        %v2833 = vsel %vm362, %v2774, 0
        %v2836 = vsel %vm362, %v2775, 0
        %v2839 = vsel %vm362, %v2776, 0
        %v2842 = vsel %vm362, %v2777, 0
        %v2845 = vsel %vm362, %v2778, 0
        %v2848 = vsel %vm362, %v2779, 0
        %v2851 = vsel %vm362, %v2780, 0
        %v2854 = vsel %vm362, %v2781, 0
        %v2857 = vsel %vm362, %v2782, 0
        %v2860 = vsel %vm362, %v2783, 0
        %v2863 = vsel %vm362, %v2784, 0
        %v2866 = vsel %vm362, %v2785, 0
        %v2869 = vsel %vm362, %v2786, 0
        %v2872 = vsel %vm362, %v2787, 0
        %v2875 = vsel %vm362, %v2788, 0
        %v2878 = vsel %vm362, %v2789, 0
        %v2881 = vsel %vm362, %v2790, 0
        %v2884 = vsel %vm362, %v2791, 0
        %v2887 = vsel %vm362, %v2792, 0
        %v2890 = vsel %vm362, %v2793, 0
        %v2893 = vsel %vm603, %v2795, 0
        %2895 = vmatpush.msra.mxu0 0.0
        %2896 = vmatpush.msra.mxu0 0.0
        %2897 = vmatpush.msra.mxu0 0.0
        %2898 = vmatpush.msra.mxu0 0.0
        %2899 = vmatpush.msra.mxu0 0.0
        %2900 = vmatpush.msra.mxu0 0.0
        %2901 = vmatpush.msra.mxu0 0.0
        %2902 = vmatpush.msra.mxu0 0.0
        %2903 = vmatpush.msra.mxu0 0.0
        %2904 = vmatpush.msra.mxu0 0.0
        %2905 = vmatpush.msra.mxu0 0.0
        %2906 = vmatpush.msra.mxu0 0.0
        %2907 = vmatpush.msra.mxu0 0.0
        %2908 = vmatpush.msra.mxu0 0.0
        %2909 = vmatpush.msra.mxu0 0.0
        %2910 = vmatpush.msra.mxu0 %v2893
        %2911 = vmatmul.f32.gmra.mxu0 %v2797
        %v2912 = vpop.f32.mrf.mxu0
        %v2913 = vadd.f32 0.0, %v2912
        %2914 = vmatmul.f32.gmra.mxu0 %v2800
        %v2915 = vpop.f32.mrf.mxu0
        %v2916 = vadd.f32 0.0, %v2915
        %2917 = vmatmul.f32.gmra.mxu0 %v2803
        %v2918 = vpop.f32.mrf.mxu0
        %v2919 = vadd.f32 0.0, %v2918
        %2920 = vmatmul.f32.gmra.mxu0 %v2806
        %v2921 = vpop.f32.mrf.mxu0
        %v2922 = vadd.f32 0.0, %v2921
        %2923 = vmatmul.f32.gmra.mxu0 %v2809
        %v2924 = vpop.f32.mrf.mxu0
        %v2925 = vadd.f32 0.0, %v2924
        %2926 = vmatmul.f32.gmra.mxu0 %v2812
        %v2927 = vpop.f32.mrf.mxu0
        %v2928 = vadd.f32 0.0, %v2927
        %2929 = vmatmul.f32.gmra.mxu0 %v2815
        %v2930 = vpop.f32.mrf.mxu0
        %v2931 = vadd.f32 0.0, %v2930
        %2932 = vmatmul.f32.gmra.mxu0 %v2818
        %v2933 = vpop.f32.mrf.mxu0
        %v2934 = vadd.f32 0.0, %v2933
        %2935 = vmatmul.f32.gmra.mxu0 %v2821
        %v2936 = vpop.f32.mrf.mxu0
        %v2937 = vadd.f32 0.0, %v2936
        %2938 = vmatmul.f32.gmra.mxu0 %v2824
        %v2939 = vpop.f32.mrf.mxu0
        %v2940 = vadd.f32 0.0, %v2939
        %2941 = vmatmul.f32.gmra.mxu0 %v2827
        %v2942 = vpop.f32.mrf.mxu0
        %v2943 = vadd.f32 0.0, %v2942
        %2944 = vmatmul.f32.gmra.mxu0 %v2830
        %v2945 = vpop.f32.mrf.mxu0
        %v2946 = vadd.f32 0.0, %v2945
        %2947 = vmatmul.f32.gmra.mxu0 %v2833
        %v2948 = vpop.f32.mrf.mxu0
        %v2949 = vadd.f32 0.0, %v2948
        %2950 = vmatmul.f32.gmra.mxu0 %v2836
        %v2951 = vpop.f32.mrf.mxu0
        %v2952 = vadd.f32 0.0, %v2951
        %2953 = vmatmul.f32.gmra.mxu0 %v2839
        %v2954 = vpop.f32.mrf.mxu0
        %v2955 = vadd.f32 0.0, %v2954
        %2956 = vmatmul.f32.gmra.mxu0 %v2842
        %v2957 = vpop.f32.mrf.mxu0
        %v2958 = vadd.f32 0.0, %v2957
        %2959 = vmatmul.f32.gmra.mxu0 %v2845
        %v2960 = vpop.f32.mrf.mxu0
        %v2961 = vadd.f32 0.0, %v2960
        %2962 = vmatmul.f32.gmra.mxu0 %v2848
        %v2963 = vpop.f32.mrf.mxu0
        %v2964 = vadd.f32 0.0, %v2963
        %2965 = vmatmul.f32.gmra.mxu0 %v2851
        %v2966 = vpop.f32.mrf.mxu0
        %v2967 = vadd.f32 0.0, %v2966
        %2968 = vmatmul.f32.gmra.mxu0 %v2854
        %v2969 = vpop.f32.mrf.mxu0
        %v2970 = vadd.f32 0.0, %v2969
        %2971 = vmatmul.f32.gmra.mxu0 %v2857
        %v2972 = vpop.f32.mrf.mxu0
        %v2973 = vadd.f32 0.0, %v2972
        %2974 = vmatmul.f32.gmra.mxu0 %v2860
        %v2975 = vpop.f32.mrf.mxu0
        %v2976 = vadd.f32 0.0, %v2975
        %2977 = vmatmul.f32.gmra.mxu0 %v2863
        %v2978 = vpop.f32.mrf.mxu0
        %v2979 = vadd.f32 0.0, %v2978
        %2980 = vmatmul.f32.gmra.mxu0 %v2866
        %v2981 = vpop.f32.mrf.mxu0
        %v2982 = vadd.f32 0.0, %v2981
        %2983 = vmatmul.f32.gmra.mxu0 %v2869
        %v2984 = vpop.f32.mrf.mxu0
        %v2985 = vadd.f32 0.0, %v2984
        %2986 = vmatmul.f32.gmra.mxu0 %v2872
        %v2987 = vpop.f32.mrf.mxu0
        %v2988 = vadd.f32 0.0, %v2987
        %2989 = vmatmul.f32.gmra.mxu0 %v2875
        %v2990 = vpop.f32.mrf.mxu0
        %v2991 = vadd.f32 0.0, %v2990
        %2992 = vmatmul.f32.gmra.mxu0 %v2878
        %v2993 = vpop.f32.mrf.mxu0
        %v2994 = vadd.f32 0.0, %v2993
        %2995 = vmatmul.f32.gmra.mxu0 %v2881
        %v2996 = vpop.f32.mrf.mxu0
        %v2997 = vadd.f32 0.0, %v2996
        %2998 = vmatmul.f32.gmra.mxu0 %v2884
        %v2999 = vpop.f32.mrf.mxu0
        %v3000 = vadd.f32 0.0, %v2999
        %3001 = vmatmul.f32.gmra.mxu0 %v2887
        %v3002 = vpop.f32.mrf.mxu0
        %v3003 = vadd.f32 0.0, %v3002
        %3004 = vmatmul.f32.gmra.mxu0 %v2890
        %v3005 = vpop.f32.mrf.mxu0
        %v3006 = vadd.f32 0.0, %v3005
        %3007 = vdwg.mxu0
        %v3008 = vadd.f32 %v2698, %v2913
        %v3009 = vadd.f32 %v2699, %v2916
        %v3010 = vadd.f32 %v2700, %v2919
        %v3011 = vadd.f32 %v2701, %v2922
        %v3012 = vadd.f32 %v2702, %v2925
        %v3013 = vadd.f32 %v2703, %v2928
        %v3014 = vadd.f32 %v2704, %v2931
        %v3015 = vadd.f32 %v2705, %v2934
        %v3016 = vadd.f32 %v2706, %v2937
        %v3017 = vadd.f32 %v2707, %v2940
        %v3018 = vadd.f32 %v2708, %v2943
        %v3019 = vadd.f32 %v2709, %v2946
        %v3020 = vadd.f32 %v2710, %v2949
        %v3021 = vadd.f32 %v2711, %v2952
        %v3022 = vadd.f32 %v2712, %v2955
        %v3023 = vadd.f32 %v2713, %v2958
        %v3024 = vadd.f32 %v2714, %v2961
        %v3025 = vadd.f32 %v2715, %v2964
        %v3026 = vadd.f32 %v2716, %v2967
        %v3027 = vadd.f32 %v2717, %v2970
        %v3028 = vadd.f32 %v2718, %v2973
        %v3029 = vadd.f32 %v2719, %v2976
        %v3030 = vadd.f32 %v2720, %v2979
        %v3031 = vadd.f32 %v2721, %v2982
        %v3032 = vadd.f32 %v2722, %v2985
        %v3033 = vadd.f32 %v2723, %v2988
        %v3034 = vadd.f32 %v2724, %v2991
        %v3035 = vadd.f32 %v2725, %v2994
        %v3036 = vadd.f32 %v2726, %v2997
        %v3037 = vadd.f32 %v2727, %v3000
        %v3038 = vadd.f32 %v2728, %v3003
        %v3039 = vadd.f32 %v2729, %v3006
        %v3040 = vld [vmem:[%s2] sm:$0x1]
        %v3042 = vperm.slane %v3040, 0
        %v3044 = vadd.f32 %v3008, %v3042
        %v3045 = vadd.f32 %v3009, %v3042
        %v3046 = vadd.f32 %v3010, %v3042
        %v3047 = vadd.f32 %v3011, %v3042
        %v3048 = vadd.f32 %v3012, %v3042
        %v3049 = vadd.f32 %v3013, %v3042
        %v3050 = vadd.f32 %v3014, %v3042
        %v3051 = vadd.f32 %v3015, %v3042
        %v3052 = vadd.f32 %v3016, %v3042
        %v3053 = vadd.f32 %v3017, %v3042
        %v3054 = vadd.f32 %v3018, %v3042
        %v3055 = vadd.f32 %v3019, %v3042
        %v3056 = vadd.f32 %v3020, %v3042
        %v3057 = vadd.f32 %v3021, %v3042
        %v3058 = vadd.f32 %v3022, %v3042
        %v3059 = vadd.f32 %v3023, %v3042
        %v3060 = vadd.f32 %v3024, %v3042
        %v3061 = vadd.f32 %v3025, %v3042
        %v3062 = vadd.f32 %v3026, %v3042
        %v3063 = vadd.f32 %v3027, %v3042
        %v3064 = vadd.f32 %v3028, %v3042
        %v3065 = vadd.f32 %v3029, %v3042
        %v3066 = vadd.f32 %v3030, %v3042
        %v3067 = vadd.f32 %v3031, %v3042
        %v3068 = vadd.f32 %v3032, %v3042
        %v3069 = vadd.f32 %v3033, %v3042
        %v3070 = vadd.f32 %v3034, %v3042
        %v3071 = vadd.f32 %v3035, %v3042
        %v3072 = vadd.f32 %v3036, %v3042
        %v3073 = vadd.f32 %v3037, %v3042
        %v3074 = vadd.f32 %v3038, %v3042
        %v3075 = vadd.f32 %v3039, %v3042
        %v3076 = vmax.f32 %v3044, 0.0
        %v3077 = vmax.f32 %v3045, 0.0
        %v3078 = vmax.f32 %v3046, 0.0
        %v3079 = vmax.f32 %v3047, 0.0
        %v3080 = vmax.f32 %v3048, 0.0
        %v3081 = vmax.f32 %v3049, 0.0
        %v3082 = vmax.f32 %v3050, 0.0
        %v3083 = vmax.f32 %v3051, 0.0
        %v3084 = vmax.f32 %v3052, 0.0
        %v3085 = vmax.f32 %v3053, 0.0
        %v3086 = vmax.f32 %v3054, 0.0
        %v3087 = vmax.f32 %v3055, 0.0
        %v3088 = vmax.f32 %v3056, 0.0
        %v3089 = vmax.f32 %v3057, 0.0
        %v3090 = vmax.f32 %v3058, 0.0
        %v3091 = vmax.f32 %v3059, 0.0
        %v3092 = vmax.f32 %v3060, 0.0
        %v3093 = vmax.f32 %v3061, 0.0
        %v3094 = vmax.f32 %v3062, 0.0
        %v3095 = vmax.f32 %v3063, 0.0
        %v3096 = vmax.f32 %v3064, 0.0
        %v3097 = vmax.f32 %v3065, 0.0
        %v3098 = vmax.f32 %v3066, 0.0
        %v3099 = vmax.f32 %v3067, 0.0
        %v3100 = vmax.f32 %v3068, 0.0
        %v3101 = vmax.f32 %v3069, 0.0
        %v3102 = vmax.f32 %v3070, 0.0
        %v3103 = vmax.f32 %v3071, 0.0
        %v3104 = vmax.f32 %v3072, 0.0
        %v3105 = vmax.f32 %v3073, 0.0
        %v3106 = vmax.f32 %v3074, 0.0
        %v3107 = vmax.f32 %v3075, 0.0
        %v3140 = vrot.slane %v3076, 2
        %v3141 = vrot.slane %v3076, 4
        %v3142 = vrot.slane %v3076, 6
        %v3143 = vrot.slane %v3077, 2
        %v3144 = vrot.slane %v3077, 4
        %v3145 = vrot.slane %v3077, 6
        %v3146 = vrot.slane %v3078, 2
        %v3147 = vrot.slane %v3078, 4
        %v3148 = vrot.slane %v3078, 6
        %v3149 = vrot.slane %v3079, 2
        %v3150 = vrot.slane %v3079, 4
        %v3151 = vrot.slane %v3079, 6
        %v3152 = vrot.slane %v3080, 2
        %v3153 = vrot.slane %v3080, 4
        %v3154 = vrot.slane %v3080, 6
        %v3155 = vrot.slane %v3081, 2
        %v3156 = vrot.slane %v3081, 4
        %v3157 = vrot.slane %v3081, 6
        %v3158 = vrot.slane %v3082, 2
        %v3159 = vrot.slane %v3082, 4
        %v3160 = vrot.slane %v3082, 6
        %v3161 = vrot.slane %v3083, 2
        %v3162 = vrot.slane %v3083, 4
        %v3163 = vrot.slane %v3083, 6
        %v3164 = vrot.slane %v3084, 2
        %v3165 = vrot.slane %v3084, 4
        %v3166 = vrot.slane %v3084, 6
        %v3167 = vrot.slane %v3085, 2
        %v3168 = vrot.slane %v3085, 4
        %v3169 = vrot.slane %v3085, 6
        %v3170 = vrot.slane %v3086, 2
        %v3171 = vrot.slane %v3086, 4
        %v3172 = vrot.slane %v3086, 6
        %v3173 = vrot.slane %v3087, 2
        %v3174 = vrot.slane %v3087, 4
        %v3175 = vrot.slane %v3087, 6
        %v3176 = vrot.slane %v3088, 2
        %v3177 = vrot.slane %v3088, 4
        %v3178 = vrot.slane %v3088, 6
        %v3179 = vrot.slane %v3089, 2
        %v3180 = vrot.slane %v3089, 4
        %v3181 = vrot.slane %v3089, 6
        %v3182 = vrot.slane %v3090, 2
        %v3183 = vrot.slane %v3090, 4
        %v3184 = vrot.slane %v3090, 6
        %v3185 = vrot.slane %v3091, 2
        %v3186 = vrot.slane %v3091, 4
        %v3187 = vrot.slane %v3091, 6
        %v3188 = vrot.slane %v3092, 2
        %v3189 = vrot.slane %v3092, 4
        %v3190 = vrot.slane %v3092, 6
        %v3191 = vrot.slane %v3093, 2
        %v3192 = vrot.slane %v3093, 4
        %v3193 = vrot.slane %v3093, 6
        %v3194 = vrot.slane %v3094, 2
        %v3195 = vrot.slane %v3094, 4
        %v3196 = vrot.slane %v3094, 6
        %v3197 = vrot.slane %v3095, 2
        %v3198 = vrot.slane %v3095, 4
        %v3199 = vrot.slane %v3095, 6
        %v3200 = vrot.slane %v3096, 2
        %v3201 = vrot.slane %v3096, 4
        %v3202 = vrot.slane %v3096, 6
        %v3203 = vrot.slane %v3097, 2
        %v3204 = vrot.slane %v3097, 4
        %v3205 = vrot.slane %v3097, 6
        %v3206 = vrot.slane %v3098, 2
        %v3207 = vrot.slane %v3098, 4
        %v3208 = vrot.slane %v3098, 6
        %v3209 = vrot.slane %v3099, 2
        %v3210 = vrot.slane %v3099, 4
        %v3211 = vrot.slane %v3099, 6
        %v3212 = vrot.slane %v3100, 2
        %v3213 = vrot.slane %v3100, 4
        %v3214 = vrot.slane %v3100, 6
        %v3215 = vrot.slane %v3101, 2
        %v3216 = vrot.slane %v3101, 4
        %v3217 = vrot.slane %v3101, 6
        %v3218 = vrot.slane %v3102, 2
        %v3219 = vrot.slane %v3102, 4
        %v3220 = vrot.slane %v3102, 6
        %v3221 = vrot.slane %v3103, 2
        %v3222 = vrot.slane %v3103, 4
        %v3223 = vrot.slane %v3103, 6
        %v3224 = vrot.slane %v3104, 2
        %v3225 = vrot.slane %v3104, 4
        %v3226 = vrot.slane %v3104, 6
        %v3227 = vrot.slane %v3105, 2
        %v3228 = vrot.slane %v3105, 4
        %v3229 = vrot.slane %v3105, 6
        %v3230 = vrot.slane %v3106, 2
        %v3231 = vrot.slane %v3106, 4
        %v3232 = vrot.slane %v3106, 6
        %v3233 = vrot.slane %v3107, 2
        %v3234 = vrot.slane %v3107, 4
        %v3235 = vrot.slane %v3107, 6
        %vm3332 = vcmask 58368
        %v3333 = vsel %vm3332, %v3076, -inf
        %v3334 = vrot.slane %v3333, 4
        %v3335 = vmax.f32 %v3333, %v3334
        %v3336 = vrot.slane %v3335, 2
        %v3337 = vmax.f32 %v3335, %v3336
        %v3338 = vrot.slane %v3337, 1
        %v3339 = vmax.f32 %v3337, %v3338
        %v3340 = vsel %vm3332, %v3140, -inf
        %v3341 = vrot.slane %v3340, 4
        %v3342 = vmax.f32 %v3340, %v3341
        %v3343 = vrot.slane %v3342, 2
        %v3344 = vmax.f32 %v3342, %v3343
        %v3345 = vrot.slane %v3344, 1
        %v3346 = vmax.f32 %v3344, %v3345
        %v3347 = vsel %vm3332, %v3141, -inf
        %v3348 = vrot.slane %v3347, 4
        %v3349 = vmax.f32 %v3347, %v3348
        %v3350 = vrot.slane %v3349, 2
        %v3351 = vmax.f32 %v3349, %v3350
        %v3352 = vrot.slane %v3351, 1
        %v3353 = vmax.f32 %v3351, %v3352
        %v3354 = vsel %vm3332, %v3142, -inf
        %v3355 = vrot.slane %v3354, 4
        %v3356 = vmax.f32 %v3354, %v3355
        %v3357 = vrot.slane %v3356, 2
        %v3358 = vmax.f32 %v3356, %v3357
        %v3359 = vrot.slane %v3358, 1
        %v3360 = vmax.f32 %v3358, %v3359
        %v3361 = vsel %vm3332, %v3077, -inf
        %v3362 = vrot.slane %v3361, 4
        %v3363 = vmax.f32 %v3361, %v3362
        %v3364 = vrot.slane %v3363, 2
        %v3365 = vmax.f32 %v3363, %v3364
        %v3366 = vrot.slane %v3365, 1
        %v3367 = vmax.f32 %v3365, %v3366
        %v3368 = vsel %vm3332, %v3143, -inf
        %v3369 = vrot.slane %v3368, 4
        %v3370 = vmax.f32 %v3368, %v3369
        %v3371 = vrot.slane %v3370, 2
        %v3372 = vmax.f32 %v3370, %v3371
        %v3373 = vrot.slane %v3372, 1
        %v3374 = vmax.f32 %v3372, %v3373
        %v3375 = vsel %vm3332, %v3144, -inf
        %v3376 = vrot.slane %v3375, 4
        %v3377 = vmax.f32 %v3375, %v3376
        %v3378 = vrot.slane %v3377, 2
        %v3379 = vmax.f32 %v3377, %v3378
        %v3380 = vrot.slane %v3379, 1
        %v3381 = vmax.f32 %v3379, %v3380
        %v3382 = vsel %vm3332, %v3145, -inf
        %v3383 = vrot.slane %v3382, 4
        %v3384 = vmax.f32 %v3382, %v3383
        %v3385 = vrot.slane %v3384, 2
        %v3386 = vmax.f32 %v3384, %v3385
        %v3387 = vrot.slane %v3386, 1
        %v3388 = vmax.f32 %v3386, %v3387
        %v3389 = vsel %vm3332, %v3078, -inf
        %v3390 = vrot.slane %v3389, 4
        %v3391 = vmax.f32 %v3389, %v3390
        %v3392 = vrot.slane %v3391, 2
        %v3393 = vmax.f32 %v3391, %v3392
        %v3394 = vrot.slane %v3393, 1
        %v3395 = vmax.f32 %v3393, %v3394
        %v3396 = vsel %vm3332, %v3146, -inf
        %v3397 = vrot.slane %v3396, 4
        %v3398 = vmax.f32 %v3396, %v3397
        %v3399 = vrot.slane %v3398, 2
        %v3400 = vmax.f32 %v3398, %v3399
        %v3401 = vrot.slane %v3400, 1
        %v3402 = vmax.f32 %v3400, %v3401
        %v3403 = vsel %vm3332, %v3147, -inf
        %v3404 = vrot.slane %v3403, 4
        %v3405 = vmax.f32 %v3403, %v3404
        %v3406 = vrot.slane %v3405, 2
        %v3407 = vmax.f32 %v3405, %v3406
        %v3408 = vrot.slane %v3407, 1
        %v3409 = vmax.f32 %v3407, %v3408
        %v3410 = vsel %vm3332, %v3148, -inf
        %v3411 = vrot.slane %v3410, 4
        %v3412 = vmax.f32 %v3410, %v3411
        %v3413 = vrot.slane %v3412, 2
        %v3414 = vmax.f32 %v3412, %v3413
        %v3415 = vrot.slane %v3414, 1
        %v3416 = vmax.f32 %v3414, %v3415
        %v3417 = vsel %vm3332, %v3079, -inf
        %v3418 = vrot.slane %v3417, 4
        %v3419 = vmax.f32 %v3417, %v3418
        %v3420 = vrot.slane %v3419, 2
        %v3421 = vmax.f32 %v3419, %v3420
        %v3422 = vrot.slane %v3421, 1
        %v3423 = vmax.f32 %v3421, %v3422
        %v3424 = vsel %vm3332, %v3149, -inf
        %v3425 = vrot.slane %v3424, 4
        %v3426 = vmax.f32 %v3424, %v3425
        %v3427 = vrot.slane %v3426, 2
        %v3428 = vmax.f32 %v3426, %v3427
        %v3429 = vrot.slane %v3428, 1
        %v3430 = vmax.f32 %v3428, %v3429
        %v3431 = vsel %vm3332, %v3150, -inf
        %v3432 = vrot.slane %v3431, 4
        %v3433 = vmax.f32 %v3431, %v3432
        %v3434 = vrot.slane %v3433, 2
        %v3435 = vmax.f32 %v3433, %v3434
        %v3436 = vrot.slane %v3435, 1
        %v3437 = vmax.f32 %v3435, %v3436
        %v3438 = vsel %vm3332, %v3151, -inf
        %v3439 = vrot.slane %v3438, 4
        %v3440 = vmax.f32 %v3438, %v3439
        %v3441 = vrot.slane %v3440, 2
        %v3442 = vmax.f32 %v3440, %v3441
        %v3443 = vrot.slane %v3442, 1
        %v3444 = vmax.f32 %v3442, %v3443
        %v3445 = vsel %vm3332, %v3080, -inf
        %v3446 = vrot.slane %v3445, 4
        %v3447 = vmax.f32 %v3445, %v3446
        %v3448 = vrot.slane %v3447, 2
        %v3449 = vmax.f32 %v3447, %v3448
        %v3450 = vrot.slane %v3449, 1
        %v3451 = vmax.f32 %v3449, %v3450
        %v3452 = vsel %vm3332, %v3152, -inf
        %v3453 = vrot.slane %v3452, 4
        %v3454 = vmax.f32 %v3452, %v3453
        %v3455 = vrot.slane %v3454, 2
        %v3456 = vmax.f32 %v3454, %v3455
        %v3457 = vrot.slane %v3456, 1
        %v3458 = vmax.f32 %v3456, %v3457
        %v3459 = vsel %vm3332, %v3153, -inf
        %v3460 = vrot.slane %v3459, 4
        %v3461 = vmax.f32 %v3459, %v3460
        %v3462 = vrot.slane %v3461, 2
        %v3463 = vmax.f32 %v3461, %v3462
        %v3464 = vrot.slane %v3463, 1
        %v3465 = vmax.f32 %v3463, %v3464
        %v3466 = vsel %vm3332, %v3154, -inf
        %v3467 = vrot.slane %v3466, 4
        %v3468 = vmax.f32 %v3466, %v3467
        %v3469 = vrot.slane %v3468, 2
        %v3470 = vmax.f32 %v3468, %v3469
        %v3471 = vrot.slane %v3470, 1
        %v3472 = vmax.f32 %v3470, %v3471
        %v3473 = vsel %vm3332, %v3081, -inf
        %v3474 = vrot.slane %v3473, 4
        %v3475 = vmax.f32 %v3473, %v3474
        %v3476 = vrot.slane %v3475, 2
        %v3477 = vmax.f32 %v3475, %v3476
        %v3478 = vrot.slane %v3477, 1
        %v3479 = vmax.f32 %v3477, %v3478
        %v3480 = vsel %vm3332, %v3155, -inf
        %v3481 = vrot.slane %v3480, 4
        %v3482 = vmax.f32 %v3480, %v3481
        %v3483 = vrot.slane %v3482, 2
        %v3484 = vmax.f32 %v3482, %v3483
        %v3485 = vrot.slane %v3484, 1
        %v3486 = vmax.f32 %v3484, %v3485
        %v3487 = vsel %vm3332, %v3156, -inf
        %v3488 = vrot.slane %v3487, 4
        %v3489 = vmax.f32 %v3487, %v3488
        %v3490 = vrot.slane %v3489, 2
        %v3491 = vmax.f32 %v3489, %v3490
        %v3492 = vrot.slane %v3491, 1
        %v3493 = vmax.f32 %v3491, %v3492
        %v3494 = vsel %vm3332, %v3157, -inf
        %v3495 = vrot.slane %v3494, 4
        %v3496 = vmax.f32 %v3494, %v3495
        %v3497 = vrot.slane %v3496, 2
        %v3498 = vmax.f32 %v3496, %v3497
        %v3499 = vrot.slane %v3498, 1
        %v3500 = vmax.f32 %v3498, %v3499
        %v3501 = vsel %vm3332, %v3082, -inf
        %v3502 = vrot.slane %v3501, 4
        %v3503 = vmax.f32 %v3501, %v3502
        %v3504 = vrot.slane %v3503, 2
        %v3505 = vmax.f32 %v3503, %v3504
        %v3506 = vrot.slane %v3505, 1
        %v3507 = vmax.f32 %v3505, %v3506
        %v3508 = vsel %vm3332, %v3158, -inf
        %v3509 = vrot.slane %v3508, 4
        %v3510 = vmax.f32 %v3508, %v3509
        %v3511 = vrot.slane %v3510, 2
        %v3512 = vmax.f32 %v3510, %v3511
        %v3513 = vrot.slane %v3512, 1
        %v3514 = vmax.f32 %v3512, %v3513
        %v3515 = vsel %vm3332, %v3159, -inf
        %v3516 = vrot.slane %v3515, 4
        %v3517 = vmax.f32 %v3515, %v3516
        %v3518 = vrot.slane %v3517, 2
        %v3519 = vmax.f32 %v3517, %v3518
        %v3520 = vrot.slane %v3519, 1
        %v3521 = vmax.f32 %v3519, %v3520
        %v3522 = vsel %vm3332, %v3160, -inf
        %v3523 = vrot.slane %v3522, 4
        %v3524 = vmax.f32 %v3522, %v3523
        %v3525 = vrot.slane %v3524, 2
        %v3526 = vmax.f32 %v3524, %v3525
        %v3527 = vrot.slane %v3526, 1
        %v3528 = vmax.f32 %v3526, %v3527
        %v3529 = vsel %vm3332, %v3083, -inf
        %v3530 = vrot.slane %v3529, 4
        %v3531 = vmax.f32 %v3529, %v3530
        %v3532 = vrot.slane %v3531, 2
        %v3533 = vmax.f32 %v3531, %v3532
        %v3534 = vrot.slane %v3533, 1
        %v3535 = vmax.f32 %v3533, %v3534
        %v3536 = vsel %vm3332, %v3161, -inf
        %v3537 = vrot.slane %v3536, 4
        %v3538 = vmax.f32 %v3536, %v3537
        %v3539 = vrot.slane %v3538, 2
        %v3540 = vmax.f32 %v3538, %v3539
        %v3541 = vrot.slane %v3540, 1
        %v3542 = vmax.f32 %v3540, %v3541
        %v3543 = vsel %vm3332, %v3162, -inf
        %v3544 = vrot.slane %v3543, 4
        %v3545 = vmax.f32 %v3543, %v3544
        %v3546 = vrot.slane %v3545, 2
        %v3547 = vmax.f32 %v3545, %v3546
        %v3548 = vrot.slane %v3547, 1
        %v3549 = vmax.f32 %v3547, %v3548
        %v3550 = vsel %vm3332, %v3163, -inf
        %v3551 = vrot.slane %v3550, 4
        %v3552 = vmax.f32 %v3550, %v3551
        %v3553 = vrot.slane %v3552, 2
        %v3554 = vmax.f32 %v3552, %v3553
        %v3555 = vrot.slane %v3554, 1
        %v3556 = vmax.f32 %v3554, %v3555
        %v3557 = vsel %vm3332, %v3084, -inf
        %v3558 = vrot.slane %v3557, 4
        %v3559 = vmax.f32 %v3557, %v3558
        %v3560 = vrot.slane %v3559, 2
        %v3561 = vmax.f32 %v3559, %v3560
        %v3562 = vrot.slane %v3561, 1
        %v3563 = vmax.f32 %v3561, %v3562
        %v3564 = vsel %vm3332, %v3164, -inf
        %v3565 = vrot.slane %v3564, 4
        %v3566 = vmax.f32 %v3564, %v3565
        %v3567 = vrot.slane %v3566, 2
        %v3568 = vmax.f32 %v3566, %v3567
        %v3569 = vrot.slane %v3568, 1
        %v3570 = vmax.f32 %v3568, %v3569
        %v3571 = vsel %vm3332, %v3165, -inf
        %v3572 = vrot.slane %v3571, 4
        %v3573 = vmax.f32 %v3571, %v3572
        %v3574 = vrot.slane %v3573, 2
        %v3575 = vmax.f32 %v3573, %v3574
        %v3576 = vrot.slane %v3575, 1
        %v3577 = vmax.f32 %v3575, %v3576
        %v3578 = vsel %vm3332, %v3166, -inf
        %v3579 = vrot.slane %v3578, 4
        %v3580 = vmax.f32 %v3578, %v3579
        %v3581 = vrot.slane %v3580, 2
        %v3582 = vmax.f32 %v3580, %v3581
        %v3583 = vrot.slane %v3582, 1
        %v3584 = vmax.f32 %v3582, %v3583
        %v3585 = vsel %vm3332, %v3085, -inf
        %v3586 = vrot.slane %v3585, 4
        %v3587 = vmax.f32 %v3585, %v3586
        %v3588 = vrot.slane %v3587, 2
        %v3589 = vmax.f32 %v3587, %v3588
        %v3590 = vrot.slane %v3589, 1
        %v3591 = vmax.f32 %v3589, %v3590
        %v3592 = vsel %vm3332, %v3167, -inf
        %v3593 = vrot.slane %v3592, 4
        %v3594 = vmax.f32 %v3592, %v3593
        %v3595 = vrot.slane %v3594, 2
        %v3596 = vmax.f32 %v3594, %v3595
        %v3597 = vrot.slane %v3596, 1
        %v3598 = vmax.f32 %v3596, %v3597
        %v3599 = vsel %vm3332, %v3168, -inf
        %v3600 = vrot.slane %v3599, 4
        %v3601 = vmax.f32 %v3599, %v3600
        %v3602 = vrot.slane %v3601, 2
        %v3603 = vmax.f32 %v3601, %v3602
        %v3604 = vrot.slane %v3603, 1
        %v3605 = vmax.f32 %v3603, %v3604
        %v3606 = vsel %vm3332, %v3169, -inf
        %v3607 = vrot.slane %v3606, 4
        %v3608 = vmax.f32 %v3606, %v3607
        %v3609 = vrot.slane %v3608, 2
        %v3610 = vmax.f32 %v3608, %v3609
        %v3611 = vrot.slane %v3610, 1
        %v3612 = vmax.f32 %v3610, %v3611
        %v3613 = vsel %vm3332, %v3086, -inf
        %v3614 = vrot.slane %v3613, 4
        %v3615 = vmax.f32 %v3613, %v3614
        %v3616 = vrot.slane %v3615, 2
        %v3617 = vmax.f32 %v3615, %v3616
        %v3618 = vrot.slane %v3617, 1
        %v3619 = vmax.f32 %v3617, %v3618
        %v3620 = vsel %vm3332, %v3170, -inf
        %v3621 = vrot.slane %v3620, 4
        %v3622 = vmax.f32 %v3620, %v3621
        %v3623 = vrot.slane %v3622, 2
        %v3624 = vmax.f32 %v3622, %v3623
        %v3625 = vrot.slane %v3624, 1
        %v3626 = vmax.f32 %v3624, %v3625
        %v3627 = vsel %vm3332, %v3171, -inf
        %v3628 = vrot.slane %v3627, 4
        %v3629 = vmax.f32 %v3627, %v3628
        %v3630 = vrot.slane %v3629, 2
        %v3631 = vmax.f32 %v3629, %v3630
        %v3632 = vrot.slane %v3631, 1
        %v3633 = vmax.f32 %v3631, %v3632
        %v3634 = vsel %vm3332, %v3172, -inf
        %v3635 = vrot.slane %v3634, 4
        %v3636 = vmax.f32 %v3634, %v3635
        %v3637 = vrot.slane %v3636, 2
        %v3638 = vmax.f32 %v3636, %v3637
        %v3639 = vrot.slane %v3638, 1
        %v3640 = vmax.f32 %v3638, %v3639
        %v3641 = vsel %vm3332, %v3087, -inf
        %v3642 = vrot.slane %v3641, 4
        %v3643 = vmax.f32 %v3641, %v3642
        %v3644 = vrot.slane %v3643, 2
        %v3645 = vmax.f32 %v3643, %v3644
        %v3646 = vrot.slane %v3645, 1
        %v3647 = vmax.f32 %v3645, %v3646
        %v3648 = vsel %vm3332, %v3173, -inf
        %v3649 = vrot.slane %v3648, 4
        %v3650 = vmax.f32 %v3648, %v3649
        %v3651 = vrot.slane %v3650, 2
        %v3652 = vmax.f32 %v3650, %v3651
        %v3653 = vrot.slane %v3652, 1
        %v3654 = vmax.f32 %v3652, %v3653
        %v3655 = vsel %vm3332, %v3174, -inf
        %v3656 = vrot.slane %v3655, 4
        %v3657 = vmax.f32 %v3655, %v3656
        %v3658 = vrot.slane %v3657, 2
        %v3659 = vmax.f32 %v3657, %v3658
        %v3660 = vrot.slane %v3659, 1
        %v3661 = vmax.f32 %v3659, %v3660
        %v3662 = vsel %vm3332, %v3175, -inf
        %v3663 = vrot.slane %v3662, 4
        %v3664 = vmax.f32 %v3662, %v3663
        %v3665 = vrot.slane %v3664, 2
        %v3666 = vmax.f32 %v3664, %v3665
        %v3667 = vrot.slane %v3666, 1
        %v3668 = vmax.f32 %v3666, %v3667
        %v3669 = vsel %vm3332, %v3088, -inf
        %v3670 = vrot.slane %v3669, 4
        %v3671 = vmax.f32 %v3669, %v3670
        %v3672 = vrot.slane %v3671, 2
        %v3673 = vmax.f32 %v3671, %v3672
        %v3674 = vrot.slane %v3673, 1
        %v3675 = vmax.f32 %v3673, %v3674
        %v3676 = vsel %vm3332, %v3176, -inf
        %v3677 = vrot.slane %v3676, 4
        %v3678 = vmax.f32 %v3676, %v3677
        %v3679 = vrot.slane %v3678, 2
        %v3680 = vmax.f32 %v3678, %v3679
        %v3681 = vrot.slane %v3680, 1
        %v3682 = vmax.f32 %v3680, %v3681
        %v3683 = vsel %vm3332, %v3177, -inf
        %v3684 = vrot.slane %v3683, 4
        %v3685 = vmax.f32 %v3683, %v3684
        %v3686 = vrot.slane %v3685, 2
        %v3687 = vmax.f32 %v3685, %v3686
        %v3688 = vrot.slane %v3687, 1
        %v3689 = vmax.f32 %v3687, %v3688
        %v3690 = vsel %vm3332, %v3178, -inf
        %v3691 = vrot.slane %v3690, 4
        %v3692 = vmax.f32 %v3690, %v3691
        %v3693 = vrot.slane %v3692, 2
        %v3694 = vmax.f32 %v3692, %v3693
        %v3695 = vrot.slane %v3694, 1
        %v3696 = vmax.f32 %v3694, %v3695
        %v3697 = vsel %vm3332, %v3089, -inf
        %v3698 = vrot.slane %v3697, 4
        %v3699 = vmax.f32 %v3697, %v3698
        %v3700 = vrot.slane %v3699, 2
        %v3701 = vmax.f32 %v3699, %v3700
        %v3702 = vrot.slane %v3701, 1
        %v3703 = vmax.f32 %v3701, %v3702
        %v3704 = vsel %vm3332, %v3179, -inf
        %v3705 = vrot.slane %v3704, 4
        %v3706 = vmax.f32 %v3704, %v3705
        %v3707 = vrot.slane %v3706, 2
        %v3708 = vmax.f32 %v3706, %v3707
        %v3709 = vrot.slane %v3708, 1
        %v3710 = vmax.f32 %v3708, %v3709
        %v3711 = vsel %vm3332, %v3180, -inf
        %v3712 = vrot.slane %v3711, 4
        %v3713 = vmax.f32 %v3711, %v3712
        %v3714 = vrot.slane %v3713, 2
        %v3715 = vmax.f32 %v3713, %v3714
        %v3716 = vrot.slane %v3715, 1
        %v3717 = vmax.f32 %v3715, %v3716
        %v3718 = vsel %vm3332, %v3181, -inf
        %v3719 = vrot.slane %v3718, 4
        %v3720 = vmax.f32 %v3718, %v3719
        %v3721 = vrot.slane %v3720, 2
        %v3722 = vmax.f32 %v3720, %v3721
        %v3723 = vrot.slane %v3722, 1
        %v3724 = vmax.f32 %v3722, %v3723
        %v3725 = vsel %vm3332, %v3090, -inf
        %v3726 = vrot.slane %v3725, 4
        %v3727 = vmax.f32 %v3725, %v3726
        %v3728 = vrot.slane %v3727, 2
        %v3729 = vmax.f32 %v3727, %v3728
        %v3730 = vrot.slane %v3729, 1
        %v3731 = vmax.f32 %v3729, %v3730
        %v3732 = vsel %vm3332, %v3182, -inf
        %v3733 = vrot.slane %v3732, 4
        %v3734 = vmax.f32 %v3732, %v3733
        %v3735 = vrot.slane %v3734, 2
        %v3736 = vmax.f32 %v3734, %v3735
        %v3737 = vrot.slane %v3736, 1
        %v3738 = vmax.f32 %v3736, %v3737
        %v3739 = vsel %vm3332, %v3183, -inf
        %v3740 = vrot.slane %v3739, 4
        %v3741 = vmax.f32 %v3739, %v3740
        %v3742 = vrot.slane %v3741, 2
        %v3743 = vmax.f32 %v3741, %v3742
        %v3744 = vrot.slane %v3743, 1
        %v3745 = vmax.f32 %v3743, %v3744
        %v3746 = vsel %vm3332, %v3184, -inf
        %v3747 = vrot.slane %v3746, 4
        %v3748 = vmax.f32 %v3746, %v3747
        %v3749 = vrot.slane %v3748, 2
        %v3750 = vmax.f32 %v3748, %v3749
        %v3751 = vrot.slane %v3750, 1
        %v3752 = vmax.f32 %v3750, %v3751
        %v3753 = vsel %vm3332, %v3091, -inf
        %v3754 = vrot.slane %v3753, 4
        %v3755 = vmax.f32 %v3753, %v3754
        %v3756 = vrot.slane %v3755, 2
        %v3757 = vmax.f32 %v3755, %v3756
        %v3758 = vrot.slane %v3757, 1
        %v3759 = vmax.f32 %v3757, %v3758
        %v3760 = vsel %vm3332, %v3185, -inf
        %v3761 = vrot.slane %v3760, 4
        %v3762 = vmax.f32 %v3760, %v3761
        %v3763 = vrot.slane %v3762, 2
        %v3764 = vmax.f32 %v3762, %v3763
        %v3765 = vrot.slane %v3764, 1
        %v3766 = vmax.f32 %v3764, %v3765
        %v3767 = vsel %vm3332, %v3186, -inf
        %v3768 = vrot.slane %v3767, 4
        %v3769 = vmax.f32 %v3767, %v3768
        %v3770 = vrot.slane %v3769, 2
        %v3771 = vmax.f32 %v3769, %v3770
        %v3772 = vrot.slane %v3771, 1
        %v3773 = vmax.f32 %v3771, %v3772
        %v3774 = vsel %vm3332, %v3187, -inf
        %v3775 = vrot.slane %v3774, 4
        %v3776 = vmax.f32 %v3774, %v3775
        %v3777 = vrot.slane %v3776, 2
        %v3778 = vmax.f32 %v3776, %v3777
        %v3779 = vrot.slane %v3778, 1
        %v3780 = vmax.f32 %v3778, %v3779
        %v3781 = vsel %vm3332, %v3092, -inf
        %v3782 = vrot.slane %v3781, 4
        %v3783 = vmax.f32 %v3781, %v3782
        %v3784 = vrot.slane %v3783, 2
        %v3785 = vmax.f32 %v3783, %v3784
        %v3786 = vrot.slane %v3785, 1
        %v3787 = vmax.f32 %v3785, %v3786
        %v3788 = vsel %vm3332, %v3188, -inf
        %v3789 = vrot.slane %v3788, 4
        %v3790 = vmax.f32 %v3788, %v3789
        %v3791 = vrot.slane %v3790, 2
        %v3792 = vmax.f32 %v3790, %v3791
        %v3793 = vrot.slane %v3792, 1
        %v3794 = vmax.f32 %v3792, %v3793
        %v3795 = vsel %vm3332, %v3189, -inf
        %v3796 = vrot.slane %v3795, 4
        %v3797 = vmax.f32 %v3795, %v3796
        %v3798 = vrot.slane %v3797, 2
        %v3799 = vmax.f32 %v3797, %v3798
        %v3800 = vrot.slane %v3799, 1
        %v3801 = vmax.f32 %v3799, %v3800
        %v3802 = vsel %vm3332, %v3190, -inf
        %v3803 = vrot.slane %v3802, 4
        %v3804 = vmax.f32 %v3802, %v3803
        %v3805 = vrot.slane %v3804, 2
        %v3806 = vmax.f32 %v3804, %v3805
        %v3807 = vrot.slane %v3806, 1
        %v3808 = vmax.f32 %v3806, %v3807
        %v3809 = vsel %vm3332, %v3093, -inf
        %v3810 = vrot.slane %v3809, 4
        %v3811 = vmax.f32 %v3809, %v3810
        %v3812 = vrot.slane %v3811, 2
        %v3813 = vmax.f32 %v3811, %v3812
        %v3814 = vrot.slane %v3813, 1
        %v3815 = vmax.f32 %v3813, %v3814
        %v3816 = vsel %vm3332, %v3191, -inf
        %v3817 = vrot.slane %v3816, 4
        %v3818 = vmax.f32 %v3816, %v3817
        %v3819 = vrot.slane %v3818, 2
        %v3820 = vmax.f32 %v3818, %v3819
        %v3821 = vrot.slane %v3820, 1
        %v3822 = vmax.f32 %v3820, %v3821
        %v3823 = vsel %vm3332, %v3192, -inf
        %v3824 = vrot.slane %v3823, 4
        %v3825 = vmax.f32 %v3823, %v3824
        %v3826 = vrot.slane %v3825, 2
        %v3827 = vmax.f32 %v3825, %v3826
        %v3828 = vrot.slane %v3827, 1
        %v3829 = vmax.f32 %v3827, %v3828
        %v3830 = vsel %vm3332, %v3193, -inf
        %v3831 = vrot.slane %v3830, 4
        %v3832 = vmax.f32 %v3830, %v3831
        %v3833 = vrot.slane %v3832, 2
        %v3834 = vmax.f32 %v3832, %v3833
        %v3835 = vrot.slane %v3834, 1
        %v3836 = vmax.f32 %v3834, %v3835
        %v3837 = vsel %vm3332, %v3094, -inf
        %v3838 = vrot.slane %v3837, 4
        %v3839 = vmax.f32 %v3837, %v3838
        %v3840 = vrot.slane %v3839, 2
        %v3841 = vmax.f32 %v3839, %v3840
        %v3842 = vrot.slane %v3841, 1
        %v3843 = vmax.f32 %v3841, %v3842
        %v3844 = vsel %vm3332, %v3194, -inf
        %v3845 = vrot.slane %v3844, 4
        %v3846 = vmax.f32 %v3844, %v3845
        %v3847 = vrot.slane %v3846, 2
        %v3848 = vmax.f32 %v3846, %v3847
        %v3849 = vrot.slane %v3848, 1
        %v3850 = vmax.f32 %v3848, %v3849
        %v3851 = vsel %vm3332, %v3195, -inf
        %v3852 = vrot.slane %v3851, 4
        %v3853 = vmax.f32 %v3851, %v3852
        %v3854 = vrot.slane %v3853, 2
        %v3855 = vmax.f32 %v3853, %v3854
        %v3856 = vrot.slane %v3855, 1
        %v3857 = vmax.f32 %v3855, %v3856
        %v3858 = vsel %vm3332, %v3196, -inf
        %v3859 = vrot.slane %v3858, 4
        %v3860 = vmax.f32 %v3858, %v3859
        %v3861 = vrot.slane %v3860, 2
        %v3862 = vmax.f32 %v3860, %v3861
        %v3863 = vrot.slane %v3862, 1
        %v3864 = vmax.f32 %v3862, %v3863
        %v3865 = vsel %vm3332, %v3095, -inf
        %v3866 = vrot.slane %v3865, 4
        %v3867 = vmax.f32 %v3865, %v3866
        %v3868 = vrot.slane %v3867, 2
        %v3869 = vmax.f32 %v3867, %v3868
        %v3870 = vrot.slane %v3869, 1
        %v3871 = vmax.f32 %v3869, %v3870
        %v3872 = vsel %vm3332, %v3197, -inf
        %v3873 = vrot.slane %v3872, 4
        %v3874 = vmax.f32 %v3872, %v3873
        %v3875 = vrot.slane %v3874, 2
        %v3876 = vmax.f32 %v3874, %v3875
        %v3877 = vrot.slane %v3876, 1
        %v3878 = vmax.f32 %v3876, %v3877
        %v3879 = vsel %vm3332, %v3198, -inf
        %v3880 = vrot.slane %v3879, 4
        %v3881 = vmax.f32 %v3879, %v3880
        %v3882 = vrot.slane %v3881, 2
        %v3883 = vmax.f32 %v3881, %v3882
        %v3884 = vrot.slane %v3883, 1
        %v3885 = vmax.f32 %v3883, %v3884
        %v3886 = vsel %vm3332, %v3199, -inf
        %v3887 = vrot.slane %v3886, 4
        %v3888 = vmax.f32 %v3886, %v3887
        %v3889 = vrot.slane %v3888, 2
        %v3890 = vmax.f32 %v3888, %v3889
        %v3891 = vrot.slane %v3890, 1
        %v3892 = vmax.f32 %v3890, %v3891
        %v3893 = vsel %vm3332, %v3096, -inf
        %v3894 = vrot.slane %v3893, 4
        %v3895 = vmax.f32 %v3893, %v3894
        %v3896 = vrot.slane %v3895, 2
        %v3897 = vmax.f32 %v3895, %v3896
        %v3898 = vrot.slane %v3897, 1
        %v3899 = vmax.f32 %v3897, %v3898
        %v3900 = vsel %vm3332, %v3200, -inf
        %v3901 = vrot.slane %v3900, 4
        %v3902 = vmax.f32 %v3900, %v3901
        %v3903 = vrot.slane %v3902, 2
        %v3904 = vmax.f32 %v3902, %v3903
        %v3905 = vrot.slane %v3904, 1
        %v3906 = vmax.f32 %v3904, %v3905
        %v3907 = vsel %vm3332, %v3201, -inf
        %v3908 = vrot.slane %v3907, 4
        %v3909 = vmax.f32 %v3907, %v3908
        %v3910 = vrot.slane %v3909, 2
        %v3911 = vmax.f32 %v3909, %v3910
        %v3912 = vrot.slane %v3911, 1
        %v3913 = vmax.f32 %v3911, %v3912
        %v3914 = vsel %vm3332, %v3202, -inf
        %v3915 = vrot.slane %v3914, 4
        %v3916 = vmax.f32 %v3914, %v3915
        %v3917 = vrot.slane %v3916, 2
        %v3918 = vmax.f32 %v3916, %v3917
        %v3919 = vrot.slane %v3918, 1
        %v3920 = vmax.f32 %v3918, %v3919
        %v3921 = vsel %vm3332, %v3097, -inf
        %v3922 = vrot.slane %v3921, 4
        %v3923 = vmax.f32 %v3921, %v3922
        %v3924 = vrot.slane %v3923, 2
        %v3925 = vmax.f32 %v3923, %v3924
        %v3926 = vrot.slane %v3925, 1
        %v3927 = vmax.f32 %v3925, %v3926
        %v3928 = vsel %vm3332, %v3203, -inf
        %v3929 = vrot.slane %v3928, 4
        %v3930 = vmax.f32 %v3928, %v3929
        %v3931 = vrot.slane %v3930, 2
        %v3932 = vmax.f32 %v3930, %v3931
        %v3933 = vrot.slane %v3932, 1
        %v3934 = vmax.f32 %v3932, %v3933
        %v3935 = vsel %vm3332, %v3204, -inf
        %v3936 = vrot.slane %v3935, 4
        %v3937 = vmax.f32 %v3935, %v3936
        %v3938 = vrot.slane %v3937, 2
        %v3939 = vmax.f32 %v3937, %v3938
        %v3940 = vrot.slane %v3939, 1
        %v3941 = vmax.f32 %v3939, %v3940
        %v3942 = vsel %vm3332, %v3205, -inf
        %v3943 = vrot.slane %v3942, 4
        %v3944 = vmax.f32 %v3942, %v3943
        %v3945 = vrot.slane %v3944, 2
        %v3946 = vmax.f32 %v3944, %v3945
        %v3947 = vrot.slane %v3946, 1
        %v3948 = vmax.f32 %v3946, %v3947
        %v3949 = vsel %vm3332, %v3098, -inf
        %v3950 = vrot.slane %v3949, 4
        %v3951 = vmax.f32 %v3949, %v3950
        %v3952 = vrot.slane %v3951, 2
        %v3953 = vmax.f32 %v3951, %v3952
        %v3954 = vrot.slane %v3953, 1
        %v3955 = vmax.f32 %v3953, %v3954
        %v3956 = vsel %vm3332, %v3206, -inf
        %v3957 = vrot.slane %v3956, 4
        %v3958 = vmax.f32 %v3956, %v3957
        %v3959 = vrot.slane %v3958, 2
        %v3960 = vmax.f32 %v3958, %v3959
        %v3961 = vrot.slane %v3960, 1
        %v3962 = vmax.f32 %v3960, %v3961
        %v3963 = vsel %vm3332, %v3207, -inf
        %v3964 = vrot.slane %v3963, 4
        %v3965 = vmax.f32 %v3963, %v3964
        %v3966 = vrot.slane %v3965, 2
        %v3967 = vmax.f32 %v3965, %v3966
        %v3968 = vrot.slane %v3967, 1
        %v3969 = vmax.f32 %v3967, %v3968
        %v3970 = vsel %vm3332, %v3208, -inf
        %v3971 = vrot.slane %v3970, 4
        %v3972 = vmax.f32 %v3970, %v3971
        %v3973 = vrot.slane %v3972, 2
        %v3974 = vmax.f32 %v3972, %v3973
        %v3975 = vrot.slane %v3974, 1
        %v3976 = vmax.f32 %v3974, %v3975
        %v3977 = vsel %vm3332, %v3099, -inf
        %v3978 = vrot.slane %v3977, 4
        %v3979 = vmax.f32 %v3977, %v3978
        %v3980 = vrot.slane %v3979, 2
        %v3981 = vmax.f32 %v3979, %v3980
        %v3982 = vrot.slane %v3981, 1
        %v3983 = vmax.f32 %v3981, %v3982
        %v3984 = vsel %vm3332, %v3209, -inf
        %v3985 = vrot.slane %v3984, 4
        %v3986 = vmax.f32 %v3984, %v3985
        %v3987 = vrot.slane %v3986, 2
        %v3988 = vmax.f32 %v3986, %v3987
        %v3989 = vrot.slane %v3988, 1
        %v3990 = vmax.f32 %v3988, %v3989
        %v3991 = vsel %vm3332, %v3210, -inf
        %v3992 = vrot.slane %v3991, 4
        %v3993 = vmax.f32 %v3991, %v3992
        %v3994 = vrot.slane %v3993, 2
        %v3995 = vmax.f32 %v3993, %v3994
        %v3996 = vrot.slane %v3995, 1
        %v3997 = vmax.f32 %v3995, %v3996
        %v3998 = vsel %vm3332, %v3211, -inf
        %v3999 = vrot.slane %v3998, 4
        %v4000 = vmax.f32 %v3998, %v3999
        %v4001 = vrot.slane %v4000, 2
        %v4002 = vmax.f32 %v4000, %v4001
        %v4003 = vrot.slane %v4002, 1
        %v4004 = vmax.f32 %v4002, %v4003
        %v4005 = vsel %vm3332, %v3100, -inf
        %v4006 = vrot.slane %v4005, 4
        %v4007 = vmax.f32 %v4005, %v4006
        %v4008 = vrot.slane %v4007, 2
        %v4009 = vmax.f32 %v4007, %v4008
        %v4010 = vrot.slane %v4009, 1
        %v4011 = vmax.f32 %v4009, %v4010
        %v4012 = vsel %vm3332, %v3212, -inf
        %v4013 = vrot.slane %v4012, 4
        %v4014 = vmax.f32 %v4012, %v4013
        %v4015 = vrot.slane %v4014, 2
        %v4016 = vmax.f32 %v4014, %v4015
        %v4017 = vrot.slane %v4016, 1
        %v4018 = vmax.f32 %v4016, %v4017
        %v4019 = vsel %vm3332, %v3213, -inf
        %v4020 = vrot.slane %v4019, 4
        %v4021 = vmax.f32 %v4019, %v4020
        %v4022 = vrot.slane %v4021, 2
        %v4023 = vmax.f32 %v4021, %v4022
        %v4024 = vrot.slane %v4023, 1
        %v4025 = vmax.f32 %v4023, %v4024
        %v4026 = vsel %vm3332, %v3214, -inf
        %v4027 = vrot.slane %v4026, 4
        %v4028 = vmax.f32 %v4026, %v4027
        %v4029 = vrot.slane %v4028, 2
        %v4030 = vmax.f32 %v4028, %v4029
        %v4031 = vrot.slane %v4030, 1
        %v4032 = vmax.f32 %v4030, %v4031
        %v4033 = vsel %vm3332, %v3101, -inf
        %v4034 = vrot.slane %v4033, 4
        %v4035 = vmax.f32 %v4033, %v4034
        %v4036 = vrot.slane %v4035, 2
        %v4037 = vmax.f32 %v4035, %v4036
        %v4038 = vrot.slane %v4037, 1
        %v4039 = vmax.f32 %v4037, %v4038
        %v4040 = vsel %vm3332, %v3215, -inf
        %v4041 = vrot.slane %v4040, 4
        %v4042 = vmax.f32 %v4040, %v4041
        %v4043 = vrot.slane %v4042, 2
        %v4044 = vmax.f32 %v4042, %v4043
        %v4045 = vrot.slane %v4044, 1
        %v4046 = vmax.f32 %v4044, %v4045
        %v4047 = vsel %vm3332, %v3216, -inf
        %v4048 = vrot.slane %v4047, 4
        %v4049 = vmax.f32 %v4047, %v4048
        %v4050 = vrot.slane %v4049, 2
        %v4051 = vmax.f32 %v4049, %v4050
        %v4052 = vrot.slane %v4051, 1
        %v4053 = vmax.f32 %v4051, %v4052
        %v4054 = vsel %vm3332, %v3217, -inf
        %v4055 = vrot.slane %v4054, 4
        %v4056 = vmax.f32 %v4054, %v4055
        %v4057 = vrot.slane %v4056, 2
        %v4058 = vmax.f32 %v4056, %v4057
        %v4059 = vrot.slane %v4058, 1
        %v4060 = vmax.f32 %v4058, %v4059
        %v4061 = vsel %vm3332, %v3102, -inf
        %v4062 = vrot.slane %v4061, 4
        %v4063 = vmax.f32 %v4061, %v4062
        %v4064 = vrot.slane %v4063, 2
        %v4065 = vmax.f32 %v4063, %v4064
        %v4066 = vrot.slane %v4065, 1
        %v4067 = vmax.f32 %v4065, %v4066
        %v4068 = vsel %vm3332, %v3218, -inf
        %v4069 = vrot.slane %v4068, 4
        %v4070 = vmax.f32 %v4068, %v4069
        %v4071 = vrot.slane %v4070, 2
        %v4072 = vmax.f32 %v4070, %v4071
        %v4073 = vrot.slane %v4072, 1
        %v4074 = vmax.f32 %v4072, %v4073
        %v4075 = vsel %vm3332, %v3219, -inf
        %v4076 = vrot.slane %v4075, 4
        %v4077 = vmax.f32 %v4075, %v4076
        %v4078 = vrot.slane %v4077, 2
        %v4079 = vmax.f32 %v4077, %v4078
        %v4080 = vrot.slane %v4079, 1
        %v4081 = vmax.f32 %v4079, %v4080
        %v4082 = vsel %vm3332, %v3220, -inf
        %v4083 = vrot.slane %v4082, 4
        %v4084 = vmax.f32 %v4082, %v4083
        %v4085 = vrot.slane %v4084, 2
        %v4086 = vmax.f32 %v4084, %v4085
        %v4087 = vrot.slane %v4086, 1
        %v4088 = vmax.f32 %v4086, %v4087
        %v4089 = vsel %vm3332, %v3103, -inf
        %v4090 = vrot.slane %v4089, 4
        %v4091 = vmax.f32 %v4089, %v4090
        %v4092 = vrot.slane %v4091, 2
        %v4093 = vmax.f32 %v4091, %v4092
        %v4094 = vrot.slane %v4093, 1
        %v4095 = vmax.f32 %v4093, %v4094
        %v4096 = vsel %vm3332, %v3221, -inf
        %v4097 = vrot.slane %v4096, 4
        %v4098 = vmax.f32 %v4096, %v4097
        %v4099 = vrot.slane %v4098, 2
        %v4100 = vmax.f32 %v4098, %v4099
        %v4101 = vrot.slane %v4100, 1
        %v4102 = vmax.f32 %v4100, %v4101
        %v4103 = vsel %vm3332, %v3222, -inf
        %v4104 = vrot.slane %v4103, 4
        %v4105 = vmax.f32 %v4103, %v4104
        %v4106 = vrot.slane %v4105, 2
        %v4107 = vmax.f32 %v4105, %v4106
        %v4108 = vrot.slane %v4107, 1
        %v4109 = vmax.f32 %v4107, %v4108
        %v4110 = vsel %vm3332, %v3223, -inf
        %v4111 = vrot.slane %v4110, 4
        %v4112 = vmax.f32 %v4110, %v4111
        %v4113 = vrot.slane %v4112, 2
        %v4114 = vmax.f32 %v4112, %v4113
        %v4115 = vrot.slane %v4114, 1
        %v4116 = vmax.f32 %v4114, %v4115
        %v4117 = vsel %vm3332, %v3104, -inf
        %v4118 = vrot.slane %v4117, 4
        %v4119 = vmax.f32 %v4117, %v4118
        %v4120 = vrot.slane %v4119, 2
        %v4121 = vmax.f32 %v4119, %v4120
        %v4122 = vrot.slane %v4121, 1
        %v4123 = vmax.f32 %v4121, %v4122
        %v4124 = vsel %vm3332, %v3224, -inf
        %v4125 = vrot.slane %v4124, 4
        %v4126 = vmax.f32 %v4124, %v4125
        %v4127 = vrot.slane %v4126, 2
        %v4128 = vmax.f32 %v4126, %v4127
        %v4129 = vrot.slane %v4128, 1
        %v4130 = vmax.f32 %v4128, %v4129
        %v4131 = vsel %vm3332, %v3225, -inf
        %v4132 = vrot.slane %v4131, 4
        %v4133 = vmax.f32 %v4131, %v4132
        %v4134 = vrot.slane %v4133, 2
        %v4135 = vmax.f32 %v4133, %v4134
        %v4136 = vrot.slane %v4135, 1
        %v4137 = vmax.f32 %v4135, %v4136
        %v4138 = vsel %vm3332, %v3226, -inf
        %v4139 = vrot.slane %v4138, 4
        %v4140 = vmax.f32 %v4138, %v4139
        %v4141 = vrot.slane %v4140, 2
        %v4142 = vmax.f32 %v4140, %v4141
        %v4143 = vrot.slane %v4142, 1
        %v4144 = vmax.f32 %v4142, %v4143
        %v4145 = vsel %vm3332, %v3105, -inf
        %v4146 = vrot.slane %v4145, 4
        %v4147 = vmax.f32 %v4145, %v4146
        %v4148 = vrot.slane %v4147, 2
        %v4149 = vmax.f32 %v4147, %v4148
        %v4150 = vrot.slane %v4149, 1
        %v4151 = vmax.f32 %v4149, %v4150
        %v4152 = vsel %vm3332, %v3227, -inf
        %v4153 = vrot.slane %v4152, 4
        %v4154 = vmax.f32 %v4152, %v4153
        %v4155 = vrot.slane %v4154, 2
        %v4156 = vmax.f32 %v4154, %v4155
        %v4157 = vrot.slane %v4156, 1
        %v4158 = vmax.f32 %v4156, %v4157
        %v4159 = vsel %vm3332, %v3228, -inf
        %v4160 = vrot.slane %v4159, 4
        %v4161 = vmax.f32 %v4159, %v4160
        %v4162 = vrot.slane %v4161, 2
        %v4163 = vmax.f32 %v4161, %v4162
        %v4164 = vrot.slane %v4163, 1
        %v4165 = vmax.f32 %v4163, %v4164
        %v4166 = vsel %vm3332, %v3229, -inf
        %v4167 = vrot.slane %v4166, 4
        %v4168 = vmax.f32 %v4166, %v4167
        %v4169 = vrot.slane %v4168, 2
        %v4170 = vmax.f32 %v4168, %v4169
        %v4171 = vrot.slane %v4170, 1
        %v4172 = vmax.f32 %v4170, %v4171
        %v4173 = vsel %vm3332, %v3106, -inf
        %v4174 = vrot.slane %v4173, 4
        %v4175 = vmax.f32 %v4173, %v4174
        %v4176 = vrot.slane %v4175, 2
        %v4177 = vmax.f32 %v4175, %v4176
        %v4178 = vrot.slane %v4177, 1
        %v4179 = vmax.f32 %v4177, %v4178
        %v4180 = vsel %vm3332, %v3230, -inf
        %v4181 = vrot.slane %v4180, 4
        %v4182 = vmax.f32 %v4180, %v4181
        %v4183 = vrot.slane %v4182, 2
        %v4184 = vmax.f32 %v4182, %v4183
        %v4185 = vrot.slane %v4184, 1
        %v4186 = vmax.f32 %v4184, %v4185
        %v4187 = vsel %vm3332, %v3231, -inf
        %v4188 = vrot.slane %v4187, 4
        %v4189 = vmax.f32 %v4187, %v4188
        %v4190 = vrot.slane %v4189, 2
        %v4191 = vmax.f32 %v4189, %v4190
        %v4192 = vrot.slane %v4191, 1
        %v4193 = vmax.f32 %v4191, %v4192
        %v4194 = vsel %vm3332, %v3232, -inf
        %v4195 = vrot.slane %v4194, 4
        %v4196 = vmax.f32 %v4194, %v4195
        %v4197 = vrot.slane %v4196, 2
        %v4198 = vmax.f32 %v4196, %v4197
        %v4199 = vrot.slane %v4198, 1
        %v4200 = vmax.f32 %v4198, %v4199
        %v4201 = vsel %vm3332, %v3107, -inf
        %v4202 = vrot.slane %v4201, 4
        %v4203 = vmax.f32 %v4201, %v4202
        %v4204 = vrot.slane %v4203, 2
        %v4205 = vmax.f32 %v4203, %v4204
        %v4206 = vrot.slane %v4205, 1
        %v4207 = vmax.f32 %v4205, %v4206
        %v4208 = vsel %vm3332, %v3233, -inf
        %v4209 = vrot.slane %v4208, 4
        %v4210 = vmax.f32 %v4208, %v4209
        %v4211 = vrot.slane %v4210, 2
        %v4212 = vmax.f32 %v4210, %v4211
        %v4213 = vrot.slane %v4212, 1
        %v4214 = vmax.f32 %v4212, %v4213
        %v4215 = vsel %vm3332, %v3234, -inf
        %v4216 = vrot.slane %v4215, 4
        %v4217 = vmax.f32 %v4215, %v4216
        %v4218 = vrot.slane %v4217, 2
        %v4219 = vmax.f32 %v4217, %v4218
        %v4220 = vrot.slane %v4219, 1
        %v4221 = vmax.f32 %v4219, %v4220
        %v4222 = vsel %vm3332, %v3235, -inf
        %v4223 = vrot.slane %v4222, 4
        %v4224 = vmax.f32 %v4222, %v4223
        %v4225 = vrot.slane %v4224, 2
        %v4226 = vmax.f32 %v4224, %v4225
        %v4227 = vrot.slane %v4226, 1
        %v4228 = vmax.f32 %v4226, %v4227
        %vm4229 = vcmask 64512
        %v4230 = vsel %vm4229, %v3339, -inf
        %v4231 = vsel %vm4229, %v3395, -inf
        %v4232 = vmax.f32 %v4230, %v4231
        %v4233 = vsel %vm4229, %v3346, -inf
        %v4234 = vsel %vm4229, %v3402, -inf
        %v4235 = vmax.f32 %v4233, %v4234
        %v4236 = vsel %vm4229, %v3353, -inf
        %v4237 = vsel %vm4229, %v3409, -inf
        %v4238 = vmax.f32 %v4236, %v4237
        %v4239 = vsel %vm4229, %v3360, -inf
        %v4240 = vsel %vm4229, %v3416, -inf
        %v4241 = vmax.f32 %v4239, %v4240
        %v4242 = vsel %vm4229, %v3367, -inf
        %v4243 = vsel %vm4229, %v3423, -inf
        %v4244 = vmax.f32 %v4242, %v4243
        %v4245 = vsel %vm4229, %v3374, -inf
        %v4246 = vsel %vm4229, %v3430, -inf
        %v4247 = vmax.f32 %v4245, %v4246
        %v4248 = vsel %vm4229, %v3381, -inf
        %v4249 = vsel %vm4229, %v3437, -inf
        %v4250 = vmax.f32 %v4248, %v4249
        %v4251 = vsel %vm4229, %v3388, -inf
        %v4252 = vsel %vm4229, %v3444, -inf
        %v4253 = vmax.f32 %v4251, %v4252
        %v4254 = vsel %vm4229, %v3451, -inf
        %v4255 = vsel %vm4229, %v3507, -inf
        %v4256 = vmax.f32 %v4254, %v4255
        %v4257 = vsel %vm4229, %v3458, -inf
        %v4258 = vsel %vm4229, %v3514, -inf
        %v4259 = vmax.f32 %v4257, %v4258
        %v4260 = vsel %vm4229, %v3465, -inf
        %v4261 = vsel %vm4229, %v3521, -inf
        %v4262 = vmax.f32 %v4260, %v4261
        %v4263 = vsel %vm4229, %v3472, -inf
        %v4264 = vsel %vm4229, %v3528, -inf
        %v4265 = vmax.f32 %v4263, %v4264
        %v4266 = vsel %vm4229, %v3479, -inf
        %v4267 = vsel %vm4229, %v3535, -inf
        %v4268 = vmax.f32 %v4266, %v4267
        %v4269 = vsel %vm4229, %v3486, -inf
        %v4270 = vsel %vm4229, %v3542, -inf
        %v4271 = vmax.f32 %v4269, %v4270
        %v4272 = vsel %vm4229, %v3493, -inf
        %v4273 = vsel %vm4229, %v3549, -inf
        %v4274 = vmax.f32 %v4272, %v4273
        %v4275 = vsel %vm4229, %v3500, -inf
        %v4276 = vsel %vm4229, %v3556, -inf
        %v4277 = vmax.f32 %v4275, %v4276
        %v4278 = vsel %vm4229, %v3563, -inf
        %v4279 = vsel %vm4229, %v3619, -inf
        %v4280 = vmax.f32 %v4278, %v4279
        %v4281 = vsel %vm4229, %v3570, -inf
        %v4282 = vsel %vm4229, %v3626, -inf
        %v4283 = vmax.f32 %v4281, %v4282
        %v4284 = vsel %vm4229, %v3577, -inf
        %v4285 = vsel %vm4229, %v3633, -inf
        %v4286 = vmax.f32 %v4284, %v4285
        %v4287 = vsel %vm4229, %v3584, -inf
        %v4288 = vsel %vm4229, %v3640, -inf
        %v4289 = vmax.f32 %v4287, %v4288
        %v4290 = vsel %vm4229, %v3591, -inf
        %v4291 = vsel %vm4229, %v3647, -inf
        %v4292 = vmax.f32 %v4290, %v4291
        %v4293 = vsel %vm4229, %v3598, -inf
        %v4294 = vsel %vm4229, %v3654, -inf
        %v4295 = vmax.f32 %v4293, %v4294
        %v4296 = vsel %vm4229, %v3605, -inf
        %v4297 = vsel %vm4229, %v3661, -inf
        %v4298 = vmax.f32 %v4296, %v4297
        %v4299 = vsel %vm4229, %v3612, -inf
        %v4300 = vsel %vm4229, %v3668, -inf
        %v4301 = vmax.f32 %v4299, %v4300
        %v4302 = vsel %vm4229, %v3675, -inf
        %v4303 = vsel %vm4229, %v3731, -inf
        %v4304 = vmax.f32 %v4302, %v4303
        %v4305 = vsel %vm4229, %v3682, -inf
        %v4306 = vsel %vm4229, %v3738, -inf
        %v4307 = vmax.f32 %v4305, %v4306
        %v4308 = vsel %vm4229, %v3689, -inf
        %v4309 = vsel %vm4229, %v3745, -inf
        %v4310 = vmax.f32 %v4308, %v4309
        %v4311 = vsel %vm4229, %v3696, -inf
        %v4312 = vsel %vm4229, %v3752, -inf
        %v4313 = vmax.f32 %v4311, %v4312
        %v4314 = vsel %vm4229, %v3703, -inf
        %v4315 = vsel %vm4229, %v3759, -inf
        %v4316 = vmax.f32 %v4314, %v4315
        %v4317 = vsel %vm4229, %v3710, -inf
        %v4318 = vsel %vm4229, %v3766, -inf
        %v4319 = vmax.f32 %v4317, %v4318
        %v4320 = vsel %vm4229, %v3717, -inf
        %v4321 = vsel %vm4229, %v3773, -inf
        %v4322 = vmax.f32 %v4320, %v4321
        %v4323 = vsel %vm4229, %v3724, -inf
        %v4324 = vsel %vm4229, %v3780, -inf
        %v4325 = vmax.f32 %v4323, %v4324
        %v4326 = vsel %vm4229, %v3787, -inf
        %v4327 = vsel %vm4229, %v3843, -inf
        %v4328 = vmax.f32 %v4326, %v4327
        %v4329 = vsel %vm4229, %v3794, -inf
        %v4330 = vsel %vm4229, %v3850, -inf
        %v4331 = vmax.f32 %v4329, %v4330
        %v4332 = vsel %vm4229, %v3801, -inf
        %v4333 = vsel %vm4229, %v3857, -inf
        %v4334 = vmax.f32 %v4332, %v4333
        %v4335 = vsel %vm4229, %v3808, -inf
        %v4336 = vsel %vm4229, %v3864, -inf
        %v4337 = vmax.f32 %v4335, %v4336
        %v4338 = vsel %vm4229, %v3815, -inf
        %v4339 = vsel %vm4229, %v3871, -inf
        %v4340 = vmax.f32 %v4338, %v4339
        %v4341 = vsel %vm4229, %v3822, -inf
        %v4342 = vsel %vm4229, %v3878, -inf
        %v4343 = vmax.f32 %v4341, %v4342
        %v4344 = vsel %vm4229, %v3829, -inf
        %v4345 = vsel %vm4229, %v3885, -inf
        %v4346 = vmax.f32 %v4344, %v4345
        %v4347 = vsel %vm4229, %v3836, -inf
        %v4348 = vsel %vm4229, %v3892, -inf
        %v4349 = vmax.f32 %v4347, %v4348
        %v4350 = vsel %vm4229, %v3899, -inf
        %v4351 = vsel %vm4229, %v3955, -inf
        %v4352 = vmax.f32 %v4350, %v4351
        %v4353 = vsel %vm4229, %v3906, -inf
        %v4354 = vsel %vm4229, %v3962, -inf
        %v4355 = vmax.f32 %v4353, %v4354
        %v4356 = vsel %vm4229, %v3913, -inf
        %v4357 = vsel %vm4229, %v3969, -inf
        %v4358 = vmax.f32 %v4356, %v4357
        %v4359 = vsel %vm4229, %v3920, -inf
        %v4360 = vsel %vm4229, %v3976, -inf
        %v4361 = vmax.f32 %v4359, %v4360
        %v4362 = vsel %vm4229, %v3927, -inf
        %v4363 = vsel %vm4229, %v3983, -inf
        %v4364 = vmax.f32 %v4362, %v4363
        %v4365 = vsel %vm4229, %v3934, -inf
        %v4366 = vsel %vm4229, %v3990, -inf
        %v4367 = vmax.f32 %v4365, %v4366
        %v4368 = vsel %vm4229, %v3941, -inf
        %v4369 = vsel %vm4229, %v3997, -inf
        %v4370 = vmax.f32 %v4368, %v4369
        %v4371 = vsel %vm4229, %v3948, -inf
        %v4372 = vsel %vm4229, %v4004, -inf
        %v4373 = vmax.f32 %v4371, %v4372
        %v4374 = vsel %vm4229, %v4011, -inf
        %v4375 = vsel %vm4229, %v4067, -inf
        %v4376 = vmax.f32 %v4374, %v4375
        %v4377 = vsel %vm4229, %v4018, -inf
        %v4378 = vsel %vm4229, %v4074, -inf
        %v4379 = vmax.f32 %v4377, %v4378
        %v4380 = vsel %vm4229, %v4025, -inf
        %v4381 = vsel %vm4229, %v4081, -inf
        %v4382 = vmax.f32 %v4380, %v4381
        %v4383 = vsel %vm4229, %v4032, -inf
        %v4384 = vsel %vm4229, %v4088, -inf
        %v4385 = vmax.f32 %v4383, %v4384
        %v4386 = vsel %vm4229, %v4039, -inf
        %v4387 = vsel %vm4229, %v4095, -inf
        %v4388 = vmax.f32 %v4386, %v4387
        %v4389 = vsel %vm4229, %v4046, -inf
        %v4390 = vsel %vm4229, %v4102, -inf
        %v4391 = vmax.f32 %v4389, %v4390
        %v4392 = vsel %vm4229, %v4053, -inf
        %v4393 = vsel %vm4229, %v4109, -inf
        %v4394 = vmax.f32 %v4392, %v4393
        %v4395 = vsel %vm4229, %v4060, -inf
        %v4396 = vsel %vm4229, %v4116, -inf
        %v4397 = vmax.f32 %v4395, %v4396
        %v4398 = vsel %vm4229, %v4123, -inf
        %v4399 = vsel %vm4229, %v4179, -inf
        %v4400 = vmax.f32 %v4398, %v4399
        %v4401 = vsel %vm4229, %v4130, -inf
        %v4402 = vsel %vm4229, %v4186, -inf
        %v4403 = vmax.f32 %v4401, %v4402
        %v4404 = vsel %vm4229, %v4137, -inf
        %v4405 = vsel %vm4229, %v4193, -inf
        %v4406 = vmax.f32 %v4404, %v4405
        %v4407 = vsel %vm4229, %v4144, -inf
        %v4408 = vsel %vm4229, %v4200, -inf
        %v4409 = vmax.f32 %v4407, %v4408
        %v4410 = vsel %vm4229, %v4151, -inf
        %v4411 = vsel %vm4229, %v4207, -inf
        %v4412 = vmax.f32 %v4410, %v4411
        %v4413 = vsel %vm4229, %v4158, -inf
        %v4414 = vsel %vm4229, %v4214, -inf
        %v4415 = vmax.f32 %v4413, %v4414
        %v4416 = vsel %vm4229, %v4165, -inf
        %v4417 = vsel %vm4229, %v4221, -inf
        %v4418 = vmax.f32 %v4416, %v4417
        %v4419 = vsel %vm4229, %v4172, -inf
        %v4420 = vsel %vm4229, %v4228, -inf
        %v4421 = vmax.f32 %v4419, %v4420
        %4422 = vst.msk [vmem:[#allocation3] sm:$0xff] %vm4229, 0.0
        %4423 = vst.msk [vmem:[#allocation3 + $0x8] sm:$0xff] %vm4229, 0.0
        %vm4488 = vcmask 1041409
        %v4489 = vsel %vm4488, %v4235, %v4232
        %vm4490 = vcmask 1042434
        %v4491 = vsel %vm4490, %v4238, %v4489
        %vm4492 = vcmask 1043459
        %v4493 = vsel %vm4492, %v4241, %v4491
        %vm4494 = vcmask 1044484
        %v4495 = vsel %vm4494, %v4244, %v4493
        %vm4496 = vcmask 1045509
        %v4497 = vsel %vm4496, %v4247, %v4495
        %vm4498 = vcmask 1046534
        %v4499 = vsel %vm4498, %v4250, %v4497
        %vm4500 = vcmask 1047559
        %v4501 = vsel %vm4500, %v4253, %v4499
        %v4502 = vsel %vm4488, %v4259, %v4256
        %v4503 = vsel %vm4490, %v4262, %v4502
        %v4504 = vsel %vm4492, %v4265, %v4503
        %v4505 = vsel %vm4494, %v4268, %v4504
        %v4506 = vsel %vm4496, %v4271, %v4505
        %v4507 = vsel %vm4498, %v4274, %v4506
        %v4508 = vsel %vm4500, %v4277, %v4507
        %v4509 = vsel %vm4488, %v4283, %v4280
        %v4510 = vsel %vm4490, %v4286, %v4509
        %v4511 = vsel %vm4492, %v4289, %v4510
        %v4512 = vsel %vm4494, %v4292, %v4511
        %v4513 = vsel %vm4496, %v4295, %v4512
        %v4514 = vsel %vm4498, %v4298, %v4513
        %v4515 = vsel %vm4500, %v4301, %v4514
        %v4516 = vsel %vm4488, %v4307, %v4304
        %v4517 = vsel %vm4490, %v4310, %v4516
        %v4518 = vsel %vm4492, %v4313, %v4517
        %v4519 = vsel %vm4494, %v4316, %v4518
        %v4520 = vsel %vm4496, %v4319, %v4519
        %v4521 = vsel %vm4498, %v4322, %v4520
        %v4522 = vsel %vm4500, %v4325, %v4521
        %v4523 = vsel %vm4488, %v4331, %v4328
        %v4524 = vsel %vm4490, %v4334, %v4523
        %v4525 = vsel %vm4492, %v4337, %v4524
        %v4526 = vsel %vm4494, %v4340, %v4525
        %v4527 = vsel %vm4496, %v4343, %v4526
        %v4528 = vsel %vm4498, %v4346, %v4527
        %v4529 = vsel %vm4500, %v4349, %v4528
        %v4530 = vsel %vm4488, %v4355, %v4352
        %v4531 = vsel %vm4490, %v4358, %v4530
        %v4532 = vsel %vm4492, %v4361, %v4531
        %v4533 = vsel %vm4494, %v4364, %v4532
        %v4534 = vsel %vm4496, %v4367, %v4533
        %v4535 = vsel %vm4498, %v4370, %v4534
        %v4536 = vsel %vm4500, %v4373, %v4535
        %v4537 = vsel %vm4488, %v4379, %v4376
        %v4538 = vsel %vm4490, %v4382, %v4537
        %v4539 = vsel %vm4492, %v4385, %v4538
        %v4540 = vsel %vm4494, %v4388, %v4539
        %v4541 = vsel %vm4496, %v4391, %v4540
        %v4542 = vsel %vm4498, %v4394, %v4541
        %v4543 = vsel %vm4500, %v4397, %v4542
        %v4544 = vsel %vm4488, %v4403, %v4400
        %v4545 = vsel %vm4490, %v4406, %v4544
        %v4546 = vsel %vm4492, %v4409, %v4545
        %v4547 = vsel %vm4494, %v4412, %v4546
        %v4548 = vsel %vm4496, %v4415, %v4547
        %v4549 = vsel %vm4498, %v4418, %v4548
        %v4550 = vsel %vm4500, %v4421, %v4549
        %4559 = vst.msk [vmem:[#allocation3 + $0x10] sm:$0xff] %vm4229, %v4501
        %4560 = vst.msk [vmem:[#allocation3 + $0x18] sm:$0xff] %vm4229, %v4508
        %4561 = vst.msk [vmem:[#allocation3 + $0x20] sm:$0xff] %vm4229, %v4515
        %4562 = vst.msk [vmem:[#allocation3 + $0x28] sm:$0xff] %vm4229, %v4522
        %4563 = vst.msk [vmem:[#allocation3 + $0x30] sm:$0xff] %vm4229, %v4529
        %4564 = vst.msk [vmem:[#allocation3 + $0x38] sm:$0xff] %vm4229, %v4536
        %4565 = vst.msk [vmem:[#allocation3 + $0x40] sm:$0xff] %vm4229, %v4543
        %4566 = vst.msk [vmem:[#allocation3 + $0x48] sm:$0xff] %vm4229, %v4550
        %4567 = vst.msk [vmem:[#allocation3 + $0x50] sm:$0xff] %vm4229, 0.0
        %4568 = vst.msk [vmem:[#allocation3 + $0x58] sm:$0xff] %vm4229, 0.0
        %v4569 = vld [vmem:[#allocation3 + $0x7] sm:$0xff]
        %v4570 = vld [vmem:[#allocation3 + $0xf] sm:$0xff]
        %v4571 = vld [vmem:[#allocation3 + $0x17] sm:$0xff]
        %v4572 = vld [vmem:[#allocation3 + $0x1f] sm:$0xff]
        %v4573 = vld [vmem:[#allocation3 + $0x27] sm:$0xff]
        %v4574 = vld [vmem:[#allocation3 + $0x2f] sm:$0xff]
        %v4575 = vld [vmem:[#allocation3 + $0x37] sm:$0xff]
        %v4576 = vld [vmem:[#allocation3 + $0x3f] sm:$0xff]
        %v4577 = vsel %vm438, %v4569, 0.0
        %v4578 = vsel %vm438, %v4570, 0.0
        %v4579 = vsel %vm438, %v4571, 0.0
        %v4580 = vsel %vm438, %v4572, 0.0
        %v4581 = vsel %vm438, %v4573, 0.0
        %v4582 = vsel %vm438, %v4574, 0.0
        %v4583 = vsel %vm438, %v4575, 0.0
        %v4584 = vsel %vm438, %v4576, 0.0
        %v4585 = vld [vmem:[%s3] sm:$0xff]
        %v4586 = vld [vmem:[#allocation3 + $0x8] sm:$0xff]
        %v4587 = vld [vmem:[#allocation3 + $0x10] sm:$0xff]
        %v4588 = vld [vmem:[#allocation3 + $0x18] sm:$0xff]
        %v4589 = vld [vmem:[#allocation3 + $0x20] sm:$0xff]
        %v4590 = vld [vmem:[#allocation3 + $0x28] sm:$0xff]
        %v4591 = vld [vmem:[#allocation3 + $0x30] sm:$0xff]
        %v4592 = vld [vmem:[#allocation3 + $0x38] sm:$0xff]
        %v4593 = vld [vmem:[#allocation3 + $0x40] sm:$0xff]
        %s4594 = scalar_lea.vmem %s3, 8
        %v4595 = vld [vmem:[%s4594] sm:$0xff]
        %v4597 = vsel %vm4229, %v4586, 0
        %v4600 = vsel %vm4229, %v4587, 0
        %v4603 = vsel %vm4229, %v4588, 0
        %v4606 = vsel %vm4229, %v4589, 0
        %v4609 = vsel %vm4229, %v4590, 0
        %v4612 = vsel %vm4229, %v4591, 0
        %v4615 = vsel %vm4229, %v4592, 0
        %v4618 = vsel %vm4229, %v4593, 0
        %4620 = vmatpush.msra.mxu0 0.0
        %4621 = vmatpush.msra.mxu0 0.0
        %4622 = vmatpush.msra.mxu0 0.0
        %4623 = vmatpush.msra.mxu0 0.0
        %4624 = vmatpush.msra.mxu0 0.0
        %4625 = vmatpush.msra.mxu0 0.0
        %4626 = vmatpush.msra.mxu0 0.0
        %4627 = vmatpush.msra.mxu0 0.0
        %4628 = vmatpush.msra.mxu0 0.0
        %4629 = vmatpush.msra.mxu0 0.0
        %4630 = vmatpush.msra.mxu0 0.0
        %4631 = vmatpush.msra.mxu0 0.0
        %4632 = vmatpush.msra.mxu0 0.0
        %4633 = vmatpush.msra.mxu0 0.0
        %4634 = vmatpush.msra.mxu0 0.0
        %4635 = vmatpush.msra.mxu0 %v4595
        %4636 = vmatmul.f32.gmra.mxu0 %v4597
        %v4637 = vpop.f32.mrf.mxu0
        %v4638 = vadd.f32 0.0, %v4637
        %4639 = vmatmul.f32.gmra.mxu0 %v4600
        %v4640 = vpop.f32.mrf.mxu0
        %v4641 = vadd.f32 0.0, %v4640
        %4642 = vmatmul.f32.gmra.mxu0 %v4603
        %v4643 = vpop.f32.mrf.mxu0
        %v4644 = vadd.f32 0.0, %v4643
        %4645 = vmatmul.f32.gmra.mxu0 %v4606
        %v4646 = vpop.f32.mrf.mxu0
        %v4647 = vadd.f32 0.0, %v4646
        %4648 = vmatmul.f32.gmra.mxu0 %v4609
        %v4649 = vpop.f32.mrf.mxu0
        %v4650 = vadd.f32 0.0, %v4649
        %4651 = vmatmul.f32.gmra.mxu0 %v4612
        %v4652 = vpop.f32.mrf.mxu0
        %v4653 = vadd.f32 0.0, %v4652
        %4654 = vmatmul.f32.gmra.mxu0 %v4615
        %v4655 = vpop.f32.mrf.mxu0
        %v4656 = vadd.f32 0.0, %v4655
        %4657 = vmatmul.f32.gmra.mxu0 %v4618
        %v4658 = vpop.f32.mrf.mxu0
        %v4659 = vadd.f32 0.0, %v4658
        %4660 = vdwg.mxu0
        %v4662 = vsel %vm4229, %v4577, 0
        %v4665 = vsel %vm4229, %v4578, 0
        %v4668 = vsel %vm4229, %v4579, 0
        %v4671 = vsel %vm4229, %v4580, 0
        %v4674 = vsel %vm4229, %v4581, 0
        %v4677 = vsel %vm4229, %v4582, 0
        %v4680 = vsel %vm4229, %v4583, 0
        %v4683 = vsel %vm4229, %v4584, 0
        %4685 = vmatpush.msra.mxu0 0.0
        %4686 = vmatpush.msra.mxu0 0.0
        %4687 = vmatpush.msra.mxu0 0.0
        %4688 = vmatpush.msra.mxu0 0.0
        %4689 = vmatpush.msra.mxu0 0.0
        %4690 = vmatpush.msra.mxu0 0.0
        %4691 = vmatpush.msra.mxu0 0.0
        %4692 = vmatpush.msra.mxu0 0.0
        %4693 = vmatpush.msra.mxu0 0.0
        %4694 = vmatpush.msra.mxu0 0.0
        %4695 = vmatpush.msra.mxu0 0.0
        %4696 = vmatpush.msra.mxu0 0.0
        %4697 = vmatpush.msra.mxu0 0.0
        %4698 = vmatpush.msra.mxu0 0.0
        %4699 = vmatpush.msra.mxu0 0.0
        %4700 = vmatpush.msra.mxu0 %v4585
        %4701 = vmatmul.f32.gmra.mxu0 %v4662
        %v4702 = vpop.f32.mrf.mxu0
        %v4703 = vadd.f32 %v4638, %v4702
        %4704 = vmatmul.f32.gmra.mxu0 %v4665
        %v4705 = vpop.f32.mrf.mxu0
        %v4706 = vadd.f32 %v4641, %v4705
        %4707 = vmatmul.f32.gmra.mxu0 %v4668
        %v4708 = vpop.f32.mrf.mxu0
        %v4709 = vadd.f32 %v4644, %v4708
        %4710 = vmatmul.f32.gmra.mxu0 %v4671
        %v4711 = vpop.f32.mrf.mxu0
        %v4712 = vadd.f32 %v4647, %v4711
        %4713 = vmatmul.f32.gmra.mxu0 %v4674
        %v4714 = vpop.f32.mrf.mxu0
        %v4715 = vadd.f32 %v4650, %v4714
        %4716 = vmatmul.f32.gmra.mxu0 %v4677
        %v4717 = vpop.f32.mrf.mxu0
        %v4718 = vadd.f32 %v4653, %v4717
        %4719 = vmatmul.f32.gmra.mxu0 %v4680
        %v4720 = vpop.f32.mrf.mxu0
        %v4721 = vadd.f32 %v4656, %v4720
        %4722 = vmatmul.f32.gmra.mxu0 %v4683
        %v4723 = vpop.f32.mrf.mxu0
        %v4724 = vadd.f32 %v4659, %v4723
        %4725 = vdwg.mxu0
        %v4726 = vld [vmem:[#allocation3 + $0x9] sm:$0xff]
        %v4727 = vld [vmem:[#allocation3 + $0x11] sm:$0xff]
        %v4728 = vld [vmem:[#allocation3 + $0x19] sm:$0xff]
        %v4729 = vld [vmem:[#allocation3 + $0x21] sm:$0xff]
        %v4730 = vld [vmem:[#allocation3 + $0x29] sm:$0xff]
        %v4731 = vld [vmem:[#allocation3 + $0x31] sm:$0xff]
        %v4732 = vld [vmem:[#allocation3 + $0x39] sm:$0xff]
        %v4733 = vld [vmem:[#allocation3 + $0x41] sm:$0xff]
        %vm4734 = vcmp.le.s32.totalorder %v404, 6
        %v4735 = vsel %vm4734, %v4726, 0.0
        %v4736 = vsel %vm4734, %v4727, 0.0
        %v4737 = vsel %vm4734, %v4728, 0.0
        %v4738 = vsel %vm4734, %v4729, 0.0
        %v4739 = vsel %vm4734, %v4730, 0.0
        %v4740 = vsel %vm4734, %v4731, 0.0
        %v4741 = vsel %vm4734, %v4732, 0.0
        %v4742 = vsel %vm4734, %v4733, 0.0
        %s4743 = scalar_lea.vmem %s3, 16
        %v4744 = vld [vmem:[%s4743] sm:$0xff]
        %v4746 = vsel %vm4229, %v4735, 0
        %v4749 = vsel %vm4229, %v4736, 0
        %v4752 = vsel %vm4229, %v4737, 0
        %v4755 = vsel %vm4229, %v4738, 0
        %v4758 = vsel %vm4229, %v4739, 0
        %v4761 = vsel %vm4229, %v4740, 0
        %v4764 = vsel %vm4229, %v4741, 0
        %v4767 = vsel %vm4229, %v4742, 0
        %4769 = vmatpush.msra.mxu0 0.0
        %4770 = vmatpush.msra.mxu0 0.0
        %4771 = vmatpush.msra.mxu0 0.0
        %4772 = vmatpush.msra.mxu0 0.0
        %4773 = vmatpush.msra.mxu0 0.0
        %4774 = vmatpush.msra.mxu0 0.0
        %4775 = vmatpush.msra.mxu0 0.0
        %4776 = vmatpush.msra.mxu0 0.0
        %4777 = vmatpush.msra.mxu0 0.0
        %4778 = vmatpush.msra.mxu0 0.0
        %4779 = vmatpush.msra.mxu0 0.0
        %4780 = vmatpush.msra.mxu0 0.0
        %4781 = vmatpush.msra.mxu0 0.0
        %4782 = vmatpush.msra.mxu0 0.0
        %4783 = vmatpush.msra.mxu0 0.0
        %4784 = vmatpush.msra.mxu0 %v4744
        %4785 = vmatmul.f32.gmra.mxu0 %v4746
        %v4786 = vpop.f32.mrf.mxu0
        %v4787 = vadd.f32 0.0, %v4786
        %4788 = vmatmul.f32.gmra.mxu0 %v4749
        %v4789 = vpop.f32.mrf.mxu0
        %v4790 = vadd.f32 0.0, %v4789
        %4791 = vmatmul.f32.gmra.mxu0 %v4752
        %v4792 = vpop.f32.mrf.mxu0
        %v4793 = vadd.f32 0.0, %v4792
        %4794 = vmatmul.f32.gmra.mxu0 %v4755
        %v4795 = vpop.f32.mrf.mxu0
        %v4796 = vadd.f32 0.0, %v4795
        %4797 = vmatmul.f32.gmra.mxu0 %v4758
        %v4798 = vpop.f32.mrf.mxu0
        %v4799 = vadd.f32 0.0, %v4798
        %4800 = vmatmul.f32.gmra.mxu0 %v4761
        %v4801 = vpop.f32.mrf.mxu0
        %v4802 = vadd.f32 0.0, %v4801
        %4803 = vmatmul.f32.gmra.mxu0 %v4764
        %v4804 = vpop.f32.mrf.mxu0
        %v4805 = vadd.f32 0.0, %v4804
        %4806 = vmatmul.f32.gmra.mxu0 %v4767
        %v4807 = vpop.f32.mrf.mxu0
        %v4808 = vadd.f32 0.0, %v4807
        %4809 = vdwg.mxu0
        %v4810 = vadd.f32 %v4703, %v4787
        %v4811 = vadd.f32 %v4706, %v4790
        %v4812 = vadd.f32 %v4709, %v4793
        %v4813 = vadd.f32 %v4712, %v4796
        %v4814 = vadd.f32 %v4715, %v4799
        %v4815 = vadd.f32 %v4718, %v4802
        %v4816 = vadd.f32 %v4721, %v4805
        %v4817 = vadd.f32 %v4724, %v4808
        %v4818 = vld [vmem:[#allocation3 + $0xf] sm:$0xff]
        %v4819 = vld [vmem:[#allocation3 + $0x17] sm:$0xff]
        %v4820 = vld [vmem:[#allocation3 + $0x1f] sm:$0xff]
        %v4821 = vld [vmem:[#allocation3 + $0x27] sm:$0xff]
        %v4822 = vld [vmem:[#allocation3 + $0x2f] sm:$0xff]
        %v4823 = vld [vmem:[#allocation3 + $0x37] sm:$0xff]
        %v4824 = vld [vmem:[#allocation3 + $0x3f] sm:$0xff]
        %v4825 = vld [vmem:[#allocation3 + $0x47] sm:$0xff]
        %v4826 = vsel %vm438, %v4818, 0.0
        %v4827 = vsel %vm438, %v4819, 0.0
        %v4828 = vsel %vm438, %v4820, 0.0
        %v4829 = vsel %vm438, %v4821, 0.0
        %v4830 = vsel %vm438, %v4822, 0.0
        %v4831 = vsel %vm438, %v4823, 0.0
        %v4832 = vsel %vm438, %v4824, 0.0
        %v4833 = vsel %vm438, %v4825, 0.0
        %s4834 = scalar_lea.vmem %s3, 24
        %v4835 = vld [vmem:[%s4834] sm:$0xff]
        %v4837 = vsel %vm4229, %v4826, 0
        %v4840 = vsel %vm4229, %v4827, 0
        %v4843 = vsel %vm4229, %v4828, 0
        %v4846 = vsel %vm4229, %v4829, 0
        %v4849 = vsel %vm4229, %v4830, 0
        %v4852 = vsel %vm4229, %v4831, 0
        %v4855 = vsel %vm4229, %v4832, 0
        %v4858 = vsel %vm4229, %v4833, 0
        %4860 = vmatpush.msra.mxu0 0.0
        %4861 = vmatpush.msra.mxu0 0.0
        %4862 = vmatpush.msra.mxu0 0.0
        %4863 = vmatpush.msra.mxu0 0.0
        %4864 = vmatpush.msra.mxu0 0.0
        %4865 = vmatpush.msra.mxu0 0.0
        %4866 = vmatpush.msra.mxu0 0.0
        %4867 = vmatpush.msra.mxu0 0.0
        %4868 = vmatpush.msra.mxu0 0.0
        %4869 = vmatpush.msra.mxu0 0.0
        %4870 = vmatpush.msra.mxu0 0.0
        %4871 = vmatpush.msra.mxu0 0.0
        %4872 = vmatpush.msra.mxu0 0.0
        %4873 = vmatpush.msra.mxu0 0.0
        %4874 = vmatpush.msra.mxu0 0.0
        %4875 = vmatpush.msra.mxu0 %v4835
        %4876 = vmatmul.f32.gmra.mxu0 %v4837
        %v4877 = vpop.f32.mrf.mxu0
        %v4878 = vadd.f32 0.0, %v4877
        %4879 = vmatmul.f32.gmra.mxu0 %v4840
        %v4880 = vpop.f32.mrf.mxu0
        %v4881 = vadd.f32 0.0, %v4880
        %4882 = vmatmul.f32.gmra.mxu0 %v4843
        %v4883 = vpop.f32.mrf.mxu0
        %v4884 = vadd.f32 0.0, %v4883
        %4885 = vmatmul.f32.gmra.mxu0 %v4846
        %v4886 = vpop.f32.mrf.mxu0
        %v4887 = vadd.f32 0.0, %v4886
        %4888 = vmatmul.f32.gmra.mxu0 %v4849
        %v4889 = vpop.f32.mrf.mxu0
        %v4890 = vadd.f32 0.0, %v4889
        %4891 = vmatmul.f32.gmra.mxu0 %v4852
        %v4892 = vpop.f32.mrf.mxu0
        %v4893 = vadd.f32 0.0, %v4892
        %4894 = vmatmul.f32.gmra.mxu0 %v4855
        %v4895 = vpop.f32.mrf.mxu0
        %v4896 = vadd.f32 0.0, %v4895
        %4897 = vmatmul.f32.gmra.mxu0 %v4858
        %v4898 = vpop.f32.mrf.mxu0
        %v4899 = vadd.f32 0.0, %v4898
        %4900 = vdwg.mxu0
        %v4901 = vadd.f32 %v4810, %v4878
        %v4902 = vadd.f32 %v4811, %v4881
        %v4903 = vadd.f32 %v4812, %v4884
        %v4904 = vadd.f32 %v4813, %v4887
        %v4905 = vadd.f32 %v4814, %v4890
        %v4906 = vadd.f32 %v4815, %v4893
        %v4907 = vadd.f32 %v4816, %v4896
        %v4908 = vadd.f32 %v4817, %v4899
        %v4909 = vld [vmem:[#allocation3 + $0x10] sm:$0xff]
        %v4910 = vld [vmem:[#allocation3 + $0x18] sm:$0xff]
        %v4911 = vld [vmem:[#allocation3 + $0x20] sm:$0xff]
        %v4912 = vld [vmem:[#allocation3 + $0x28] sm:$0xff]
        %v4913 = vld [vmem:[#allocation3 + $0x30] sm:$0xff]
        %v4914 = vld [vmem:[#allocation3 + $0x38] sm:$0xff]
        %v4915 = vld [vmem:[#allocation3 + $0x40] sm:$0xff]
        %v4916 = vld [vmem:[#allocation3 + $0x48] sm:$0xff]
        %s4917 = scalar_lea.vmem %s3, 32
        %v4918 = vld [vmem:[%s4917] sm:$0xff]
        %v4920 = vsel %vm4229, %v4909, 0
        %v4923 = vsel %vm4229, %v4910, 0
        %v4926 = vsel %vm4229, %v4911, 0
        %v4929 = vsel %vm4229, %v4912, 0
        %v4932 = vsel %vm4229, %v4913, 0
        %v4935 = vsel %vm4229, %v4914, 0
        %v4938 = vsel %vm4229, %v4915, 0
        %v4941 = vsel %vm4229, %v4916, 0
        %4943 = vmatpush.msra.mxu0 0.0
        %4944 = vmatpush.msra.mxu0 0.0
        %4945 = vmatpush.msra.mxu0 0.0
        %4946 = vmatpush.msra.mxu0 0.0
        %4947 = vmatpush.msra.mxu0 0.0
        %4948 = vmatpush.msra.mxu0 0.0
        %4949 = vmatpush.msra.mxu0 0.0
        %4950 = vmatpush.msra.mxu0 0.0
        %4951 = vmatpush.msra.mxu0 0.0
        %4952 = vmatpush.msra.mxu0 0.0
        %4953 = vmatpush.msra.mxu0 0.0
        %4954 = vmatpush.msra.mxu0 0.0
        %4955 = vmatpush.msra.mxu0 0.0
        %4956 = vmatpush.msra.mxu0 0.0
        %4957 = vmatpush.msra.mxu0 0.0
        %4958 = vmatpush.msra.mxu0 %v4918
        %4959 = vmatmul.f32.gmra.mxu0 %v4920
        %v4960 = vpop.f32.mrf.mxu0
        %v4961 = vadd.f32 0.0, %v4960
        %4962 = vmatmul.f32.gmra.mxu0 %v4923
        %v4963 = vpop.f32.mrf.mxu0
        %v4964 = vadd.f32 0.0, %v4963
        %4965 = vmatmul.f32.gmra.mxu0 %v4926
        %v4966 = vpop.f32.mrf.mxu0
        %v4967 = vadd.f32 0.0, %v4966
        %4968 = vmatmul.f32.gmra.mxu0 %v4929
        %v4969 = vpop.f32.mrf.mxu0
        %v4970 = vadd.f32 0.0, %v4969
        %4971 = vmatmul.f32.gmra.mxu0 %v4932
        %v4972 = vpop.f32.mrf.mxu0
        %v4973 = vadd.f32 0.0, %v4972
        %4974 = vmatmul.f32.gmra.mxu0 %v4935
        %v4975 = vpop.f32.mrf.mxu0
        %v4976 = vadd.f32 0.0, %v4975
        %4977 = vmatmul.f32.gmra.mxu0 %v4938
        %v4978 = vpop.f32.mrf.mxu0
        %v4979 = vadd.f32 0.0, %v4978
        %4980 = vmatmul.f32.gmra.mxu0 %v4941
        %v4981 = vpop.f32.mrf.mxu0
        %v4982 = vadd.f32 0.0, %v4981
        %4983 = vdwg.mxu0
        %v4984 = vadd.f32 %v4901, %v4961
        %v4985 = vadd.f32 %v4902, %v4964
        %v4986 = vadd.f32 %v4903, %v4967
        %v4987 = vadd.f32 %v4904, %v4970
        %v4988 = vadd.f32 %v4905, %v4973
        %v4989 = vadd.f32 %v4906, %v4976
        %v4990 = vadd.f32 %v4907, %v4979
        %v4991 = vadd.f32 %v4908, %v4982
        %v4992 = vld [vmem:[#allocation3 + $0x11] sm:$0xff]
        %v4993 = vld [vmem:[#allocation3 + $0x19] sm:$0xff]
        %v4994 = vld [vmem:[#allocation3 + $0x21] sm:$0xff]
        %v4995 = vld [vmem:[#allocation3 + $0x29] sm:$0xff]
        %v4996 = vld [vmem:[#allocation3 + $0x31] sm:$0xff]
        %v4997 = vld [vmem:[#allocation3 + $0x39] sm:$0xff]
        %v4998 = vld [vmem:[#allocation3 + $0x41] sm:$0xff]
        %v4999 = vld [vmem:[#allocation3 + $0x49] sm:$0xff]
        %v5000 = vsel %vm4734, %v4992, 0.0
        %v5001 = vsel %vm4734, %v4993, 0.0
        %v5002 = vsel %vm4734, %v4994, 0.0
        %v5003 = vsel %vm4734, %v4995, 0.0
        %v5004 = vsel %vm4734, %v4996, 0.0
        %v5005 = vsel %vm4734, %v4997, 0.0
        %v5006 = vsel %vm4734, %v4998, 0.0
        %v5007 = vsel %vm4734, %v4999, 0.0
        %s5008 = scalar_lea.vmem %s3, 40
        %v5009 = vld [vmem:[%s5008] sm:$0xff]
        %v5011 = vsel %vm4229, %v5000, 0
        %v5014 = vsel %vm4229, %v5001, 0
        %v5017 = vsel %vm4229, %v5002, 0
        %v5020 = vsel %vm4229, %v5003, 0
        %v5023 = vsel %vm4229, %v5004, 0
        %v5026 = vsel %vm4229, %v5005, 0
        %v5029 = vsel %vm4229, %v5006, 0
        %v5032 = vsel %vm4229, %v5007, 0
        %5034 = vmatpush.msra.mxu0 0.0
        %5035 = vmatpush.msra.mxu0 0.0
        %5036 = vmatpush.msra.mxu0 0.0
        %5037 = vmatpush.msra.mxu0 0.0
        %5038 = vmatpush.msra.mxu0 0.0
        %5039 = vmatpush.msra.mxu0 0.0
        %5040 = vmatpush.msra.mxu0 0.0
        %5041 = vmatpush.msra.mxu0 0.0
        %5042 = vmatpush.msra.mxu0 0.0
        %5043 = vmatpush.msra.mxu0 0.0
        %5044 = vmatpush.msra.mxu0 0.0
        %5045 = vmatpush.msra.mxu0 0.0
        %5046 = vmatpush.msra.mxu0 0.0
        %5047 = vmatpush.msra.mxu0 0.0
        %5048 = vmatpush.msra.mxu0 0.0
        %5049 = vmatpush.msra.mxu0 %v5009
        %5050 = vmatmul.f32.gmra.mxu0 %v5011
        %v5051 = vpop.f32.mrf.mxu0
        %v5052 = vadd.f32 0.0, %v5051
        %5053 = vmatmul.f32.gmra.mxu0 %v5014
        %v5054 = vpop.f32.mrf.mxu0
        %v5055 = vadd.f32 0.0, %v5054
        %5056 = vmatmul.f32.gmra.mxu0 %v5017
        %v5057 = vpop.f32.mrf.mxu0
        %v5058 = vadd.f32 0.0, %v5057
        %5059 = vmatmul.f32.gmra.mxu0 %v5020
        %v5060 = vpop.f32.mrf.mxu0
        %v5061 = vadd.f32 0.0, %v5060
        %5062 = vmatmul.f32.gmra.mxu0 %v5023
        %v5063 = vpop.f32.mrf.mxu0
        %v5064 = vadd.f32 0.0, %v5063
        %5065 = vmatmul.f32.gmra.mxu0 %v5026
        %v5066 = vpop.f32.mrf.mxu0
        %v5067 = vadd.f32 0.0, %v5066
        %5068 = vmatmul.f32.gmra.mxu0 %v5029
        %v5069 = vpop.f32.mrf.mxu0
        %v5070 = vadd.f32 0.0, %v5069
        %5071 = vmatmul.f32.gmra.mxu0 %v5032
        %v5072 = vpop.f32.mrf.mxu0
        %v5073 = vadd.f32 0.0, %v5072
        %5074 = vdwg.mxu0
        %v5075 = vadd.f32 %v4984, %v5052
        %v5076 = vadd.f32 %v4985, %v5055
        %v5077 = vadd.f32 %v4986, %v5058
        %v5078 = vadd.f32 %v4987, %v5061
        %v5079 = vadd.f32 %v4988, %v5064
        %v5080 = vadd.f32 %v4989, %v5067
        %v5081 = vadd.f32 %v4990, %v5070
        %v5082 = vadd.f32 %v4991, %v5073
        %v5083 = vld [vmem:[#allocation3 + $0x17] sm:$0xff]
        %v5084 = vld [vmem:[#allocation3 + $0x1f] sm:$0xff]
        %v5085 = vld [vmem:[#allocation3 + $0x27] sm:$0xff]
        %v5086 = vld [vmem:[#allocation3 + $0x2f] sm:$0xff]
        %v5087 = vld [vmem:[#allocation3 + $0x37] sm:$0xff]
        %v5088 = vld [vmem:[#allocation3 + $0x3f] sm:$0xff]
        %v5089 = vld [vmem:[#allocation3 + $0x47] sm:$0xff]
        %v5090 = vld [vmem:[#allocation3 + $0x4f] sm:$0xff]
        %v5091 = vsel %vm438, %v5083, 0.0
        %v5092 = vsel %vm438, %v5084, 0.0
        %v5093 = vsel %vm438, %v5085, 0.0
        %v5094 = vsel %vm438, %v5086, 0.0
        %v5095 = vsel %vm438, %v5087, 0.0
        %v5096 = vsel %vm438, %v5088, 0.0
        %v5097 = vsel %vm438, %v5089, 0.0
        %v5098 = vsel %vm438, %v5090, 0.0
        %s5099 = scalar_lea.vmem %s3, 48
        %v5100 = vld [vmem:[%s5099] sm:$0xff]
        %v5102 = vsel %vm4229, %v5091, 0
        %v5105 = vsel %vm4229, %v5092, 0
        %v5108 = vsel %vm4229, %v5093, 0
        %v5111 = vsel %vm4229, %v5094, 0
        %v5114 = vsel %vm4229, %v5095, 0
        %v5117 = vsel %vm4229, %v5096, 0
        %v5120 = vsel %vm4229, %v5097, 0
        %v5123 = vsel %vm4229, %v5098, 0
        %5125 = vmatpush.msra.mxu0 0.0
        %5126 = vmatpush.msra.mxu0 0.0
        %5127 = vmatpush.msra.mxu0 0.0
        %5128 = vmatpush.msra.mxu0 0.0
        %5129 = vmatpush.msra.mxu0 0.0
        %5130 = vmatpush.msra.mxu0 0.0
        %5131 = vmatpush.msra.mxu0 0.0
        %5132 = vmatpush.msra.mxu0 0.0
        %5133 = vmatpush.msra.mxu0 0.0
        %5134 = vmatpush.msra.mxu0 0.0
        %5135 = vmatpush.msra.mxu0 0.0
        %5136 = vmatpush.msra.mxu0 0.0
        %5137 = vmatpush.msra.mxu0 0.0
        %5138 = vmatpush.msra.mxu0 0.0
        %5139 = vmatpush.msra.mxu0 0.0
        %5140 = vmatpush.msra.mxu0 %v5100
        %5141 = vmatmul.f32.gmra.mxu0 %v5102
        %v5142 = vpop.f32.mrf.mxu0
        %v5143 = vadd.f32 0.0, %v5142
        %5144 = vmatmul.f32.gmra.mxu0 %v5105
        %v5145 = vpop.f32.mrf.mxu0
        %v5146 = vadd.f32 0.0, %v5145
        %5147 = vmatmul.f32.gmra.mxu0 %v5108
        %v5148 = vpop.f32.mrf.mxu0
        %v5149 = vadd.f32 0.0, %v5148
        %5150 = vmatmul.f32.gmra.mxu0 %v5111
        %v5151 = vpop.f32.mrf.mxu0
        %v5152 = vadd.f32 0.0, %v5151
        %5153 = vmatmul.f32.gmra.mxu0 %v5114
        %v5154 = vpop.f32.mrf.mxu0
        %v5155 = vadd.f32 0.0, %v5154
        %5156 = vmatmul.f32.gmra.mxu0 %v5117
        %v5157 = vpop.f32.mrf.mxu0
        %v5158 = vadd.f32 0.0, %v5157
        %5159 = vmatmul.f32.gmra.mxu0 %v5120
        %v5160 = vpop.f32.mrf.mxu0
        %v5161 = vadd.f32 0.0, %v5160
        %5162 = vmatmul.f32.gmra.mxu0 %v5123
        %v5163 = vpop.f32.mrf.mxu0
        %v5164 = vadd.f32 0.0, %v5163
        %5165 = vdwg.mxu0
        %v5166 = vadd.f32 %v5075, %v5143
        %v5167 = vadd.f32 %v5076, %v5146
        %v5168 = vadd.f32 %v5077, %v5149
        %v5169 = vadd.f32 %v5078, %v5152
        %v5170 = vadd.f32 %v5079, %v5155
        %v5171 = vadd.f32 %v5080, %v5158
        %v5172 = vadd.f32 %v5081, %v5161
        %v5173 = vadd.f32 %v5082, %v5164
        %v5174 = vld [vmem:[#allocation3 + $0x18] sm:$0xff]
        %v5175 = vld [vmem:[#allocation3 + $0x20] sm:$0xff]
        %v5176 = vld [vmem:[#allocation3 + $0x28] sm:$0xff]
        %v5177 = vld [vmem:[#allocation3 + $0x30] sm:$0xff]
        %v5178 = vld [vmem:[#allocation3 + $0x38] sm:$0xff]
        %v5179 = vld [vmem:[#allocation3 + $0x40] sm:$0xff]
        %v5180 = vld [vmem:[#allocation3 + $0x48] sm:$0xff]
        %v5181 = vld [vmem:[#allocation3 + $0x50] sm:$0xff]
        %s5182 = scalar_lea.vmem %s3, 56
        %v5183 = vld [vmem:[%s5182] sm:$0xff]
        %v5185 = vsel %vm4229, %v5174, 0
        %v5188 = vsel %vm4229, %v5175, 0
        %v5191 = vsel %vm4229, %v5176, 0
        %v5194 = vsel %vm4229, %v5177, 0
        %v5197 = vsel %vm4229, %v5178, 0
        %v5200 = vsel %vm4229, %v5179, 0
        %v5203 = vsel %vm4229, %v5180, 0
        %v5206 = vsel %vm4229, %v5181, 0
        %5208 = vmatpush.msra.mxu0 0.0
        %5209 = vmatpush.msra.mxu0 0.0
        %5210 = vmatpush.msra.mxu0 0.0
        %5211 = vmatpush.msra.mxu0 0.0
        %5212 = vmatpush.msra.mxu0 0.0
        %5213 = vmatpush.msra.mxu0 0.0
        %5214 = vmatpush.msra.mxu0 0.0
        %5215 = vmatpush.msra.mxu0 0.0
        %5216 = vmatpush.msra.mxu0 0.0
        %5217 = vmatpush.msra.mxu0 0.0
        %5218 = vmatpush.msra.mxu0 0.0
        %5219 = vmatpush.msra.mxu0 0.0
        %5220 = vmatpush.msra.mxu0 0.0
        %5221 = vmatpush.msra.mxu0 0.0
        %5222 = vmatpush.msra.mxu0 0.0
        %5223 = vmatpush.msra.mxu0 %v5183
        %5224 = vmatmul.f32.gmra.mxu0 %v5185
        %v5225 = vpop.f32.mrf.mxu0
        %v5226 = vadd.f32 0.0, %v5225
        %5227 = vmatmul.f32.gmra.mxu0 %v5188
        %v5228 = vpop.f32.mrf.mxu0
        %v5229 = vadd.f32 0.0, %v5228
        %5230 = vmatmul.f32.gmra.mxu0 %v5191
        %v5231 = vpop.f32.mrf.mxu0
        %v5232 = vadd.f32 0.0, %v5231
        %5233 = vmatmul.f32.gmra.mxu0 %v5194
        %v5234 = vpop.f32.mrf.mxu0
        %v5235 = vadd.f32 0.0, %v5234
        %5236 = vmatmul.f32.gmra.mxu0 %v5197
        %v5237 = vpop.f32.mrf.mxu0
        %v5238 = vadd.f32 0.0, %v5237
        %5239 = vmatmul.f32.gmra.mxu0 %v5200
        %v5240 = vpop.f32.mrf.mxu0
        %v5241 = vadd.f32 0.0, %v5240
        %5242 = vmatmul.f32.gmra.mxu0 %v5203
        %v5243 = vpop.f32.mrf.mxu0
        %v5244 = vadd.f32 0.0, %v5243
        %5245 = vmatmul.f32.gmra.mxu0 %v5206
        %v5246 = vpop.f32.mrf.mxu0
        %v5247 = vadd.f32 0.0, %v5246
        %5248 = vdwg.mxu0
        %v5249 = vadd.f32 %v5166, %v5226
        %v5250 = vadd.f32 %v5167, %v5229
        %v5251 = vadd.f32 %v5168, %v5232
        %v5252 = vadd.f32 %v5169, %v5235
        %v5253 = vadd.f32 %v5170, %v5238
        %v5254 = vadd.f32 %v5171, %v5241
        %v5255 = vadd.f32 %v5172, %v5244
        %v5256 = vadd.f32 %v5173, %v5247
        %v5257 = vld [vmem:[#allocation3 + $0x19] sm:$0xff]
        %v5258 = vld [vmem:[#allocation3 + $0x21] sm:$0xff]
        %v5259 = vld [vmem:[#allocation3 + $0x29] sm:$0xff]
        %v5260 = vld [vmem:[#allocation3 + $0x31] sm:$0xff]
        %v5261 = vld [vmem:[#allocation3 + $0x39] sm:$0xff]
        %v5262 = vld [vmem:[#allocation3 + $0x41] sm:$0xff]
        %v5263 = vld [vmem:[#allocation3 + $0x49] sm:$0xff]
        %v5264 = vld [vmem:[#allocation3 + $0x51] sm:$0xff]
        %v5265 = vsel %vm4734, %v5257, 0.0
        %v5266 = vsel %vm4734, %v5258, 0.0
        %v5267 = vsel %vm4734, %v5259, 0.0
        %v5268 = vsel %vm4734, %v5260, 0.0
        %v5269 = vsel %vm4734, %v5261, 0.0
        %v5270 = vsel %vm4734, %v5262, 0.0
        %v5271 = vsel %vm4734, %v5263, 0.0
        %v5272 = vsel %vm4734, %v5264, 0.0
        %s5273 = scalar_lea.vmem %s3, 64
        %v5274 = vld [vmem:[%s5273] sm:$0xff]
        %v5276 = vsel %vm4229, %v5265, 0
        %v5279 = vsel %vm4229, %v5266, 0
        %v5282 = vsel %vm4229, %v5267, 0
        %v5285 = vsel %vm4229, %v5268, 0
        %v5288 = vsel %vm4229, %v5269, 0
        %v5291 = vsel %vm4229, %v5270, 0
        %v5294 = vsel %vm4229, %v5271, 0
        %v5297 = vsel %vm4229, %v5272, 0
        %5299 = vmatpush.msra.mxu0 0.0
        %5300 = vmatpush.msra.mxu0 0.0
        %5301 = vmatpush.msra.mxu0 0.0
        %5302 = vmatpush.msra.mxu0 0.0
        %5303 = vmatpush.msra.mxu0 0.0
        %5304 = vmatpush.msra.mxu0 0.0
        %5305 = vmatpush.msra.mxu0 0.0
        %5306 = vmatpush.msra.mxu0 0.0
        %5307 = vmatpush.msra.mxu0 0.0
        %5308 = vmatpush.msra.mxu0 0.0
        %5309 = vmatpush.msra.mxu0 0.0
        %5310 = vmatpush.msra.mxu0 0.0
        %5311 = vmatpush.msra.mxu0 0.0
        %5312 = vmatpush.msra.mxu0 0.0
        %5313 = vmatpush.msra.mxu0 0.0
        %5314 = vmatpush.msra.mxu0 %v5274
        %5315 = vmatmul.f32.gmra.mxu0 %v5276
        %v5316 = vpop.f32.mrf.mxu0
        %v5317 = vadd.f32 0.0, %v5316
        %5318 = vmatmul.f32.gmra.mxu0 %v5279
        %v5319 = vpop.f32.mrf.mxu0
        %v5320 = vadd.f32 0.0, %v5319
        %5321 = vmatmul.f32.gmra.mxu0 %v5282
        %v5322 = vpop.f32.mrf.mxu0
        %v5323 = vadd.f32 0.0, %v5322
        %5324 = vmatmul.f32.gmra.mxu0 %v5285
        %v5325 = vpop.f32.mrf.mxu0
        %v5326 = vadd.f32 0.0, %v5325
        %5327 = vmatmul.f32.gmra.mxu0 %v5288
        %v5328 = vpop.f32.mrf.mxu0
        %v5329 = vadd.f32 0.0, %v5328
        %5330 = vmatmul.f32.gmra.mxu0 %v5291
        %v5331 = vpop.f32.mrf.mxu0
        %v5332 = vadd.f32 0.0, %v5331
        %5333 = vmatmul.f32.gmra.mxu0 %v5294
        %v5334 = vpop.f32.mrf.mxu0
        %v5335 = vadd.f32 0.0, %v5334
        %5336 = vmatmul.f32.gmra.mxu0 %v5297
        %v5337 = vpop.f32.mrf.mxu0
        %v5338 = vadd.f32 0.0, %v5337
        %5339 = vdwg.mxu0
        %v5340 = vadd.f32 %v5249, %v5317
        %v5341 = vadd.f32 %v5250, %v5320
        %v5342 = vadd.f32 %v5251, %v5323
        %v5343 = vadd.f32 %v5252, %v5326
        %v5344 = vadd.f32 %v5253, %v5329
        %v5345 = vadd.f32 %v5254, %v5332
        %v5346 = vadd.f32 %v5255, %v5335
        %v5347 = vadd.f32 %v5256, %v5338
        %v5348 = vld [vmem:[%s4] sm:$0x1]
        %v5350 = vperm.slane %v5348, 0
        %v5352 = vadd.f32 %v5340, %v5350
        %v5353 = vadd.f32 %v5341, %v5350
        %v5354 = vadd.f32 %v5342, %v5350
        %v5355 = vadd.f32 %v5343, %v5350
        %v5356 = vadd.f32 %v5344, %v5350
        %v5357 = vadd.f32 %v5345, %v5350
        %v5358 = vadd.f32 %v5346, %v5350
        %v5359 = vadd.f32 %v5347, %v5350
        %v5360 = vmax.f32 %v5352, 0.0
        %v5361 = vmax.f32 %v5353, 0.0
        %v5362 = vmax.f32 %v5354, 0.0
        %v5363 = vmax.f32 %v5355, 0.0
        %v5364 = vmax.f32 %v5356, 0.0
        %v5365 = vmax.f32 %v5357, 0.0
        %v5366 = vmax.f32 %v5358, 0.0
        %v5367 = vmax.f32 %v5359, 0.0
        %v5376 = vrot.slane %v5360, 2
        %v5377 = vrot.slane %v5360, 4
        %v5378 = vrot.slane %v5360, 6
        %v5379 = vrot.slane %v5361, 2
        %v5380 = vrot.slane %v5361, 4
        %v5381 = vrot.slane %v5361, 6
        %v5382 = vrot.slane %v5362, 2
        %v5383 = vrot.slane %v5362, 4
        %v5384 = vrot.slane %v5362, 6
        %v5385 = vrot.slane %v5363, 2
        %v5386 = vrot.slane %v5363, 4
        %v5387 = vrot.slane %v5363, 6
        %v5388 = vrot.slane %v5364, 2
        %v5389 = vrot.slane %v5364, 4
        %v5390 = vrot.slane %v5364, 6
        %v5391 = vrot.slane %v5365, 2
        %v5392 = vrot.slane %v5365, 4
        %v5393 = vrot.slane %v5365, 6
        %v5394 = vrot.slane %v5366, 2
        %v5395 = vrot.slane %v5366, 4
        %v5396 = vrot.slane %v5366, 6
        %v5397 = vrot.slane %v5367, 2
        %v5398 = vrot.slane %v5367, 4
        %v5399 = vrot.slane %v5367, 6
        %vm5424 = vcmask 123904
        %v5425 = vsel %vm5424, %v5360, -inf
        %v5426 = vrot.slane %v5425, 4
        %v5427 = vmax.f32 %v5425, %v5426
        %v5428 = vrot.slane %v5427, 2
        %v5429 = vmax.f32 %v5427, %v5428
        %v5430 = vrot.slane %v5429, 1
        %v5431 = vmax.f32 %v5429, %v5430
        %v5432 = vsel %vm5424, %v5376, -inf
        %v5433 = vrot.slane %v5432, 4
        %v5434 = vmax.f32 %v5432, %v5433
        %v5435 = vrot.slane %v5434, 2
        %v5436 = vmax.f32 %v5434, %v5435
        %v5437 = vrot.slane %v5436, 1
        %v5438 = vmax.f32 %v5436, %v5437
        %v5439 = vsel %vm5424, %v5377, -inf
        %v5440 = vrot.slane %v5439, 4
        %v5441 = vmax.f32 %v5439, %v5440
        %v5442 = vrot.slane %v5441, 2
        %v5443 = vmax.f32 %v5441, %v5442
        %v5444 = vrot.slane %v5443, 1
        %v5445 = vmax.f32 %v5443, %v5444
        %v5446 = vsel %vm5424, %v5378, -inf
        %v5447 = vrot.slane %v5446, 4
        %v5448 = vmax.f32 %v5446, %v5447
        %v5449 = vrot.slane %v5448, 2
        %v5450 = vmax.f32 %v5448, %v5449
        %v5451 = vrot.slane %v5450, 1
        %v5452 = vmax.f32 %v5450, %v5451
        %v5453 = vsel %vm5424, %v5361, -inf
        %v5454 = vrot.slane %v5453, 4
        %v5455 = vmax.f32 %v5453, %v5454
        %v5456 = vrot.slane %v5455, 2
        %v5457 = vmax.f32 %v5455, %v5456
        %v5458 = vrot.slane %v5457, 1
        %v5459 = vmax.f32 %v5457, %v5458
        %v5460 = vsel %vm5424, %v5379, -inf
        %v5461 = vrot.slane %v5460, 4
        %v5462 = vmax.f32 %v5460, %v5461
        %v5463 = vrot.slane %v5462, 2
        %v5464 = vmax.f32 %v5462, %v5463
        %v5465 = vrot.slane %v5464, 1
        %v5466 = vmax.f32 %v5464, %v5465
        %v5467 = vsel %vm5424, %v5380, -inf
        %v5468 = vrot.slane %v5467, 4
        %v5469 = vmax.f32 %v5467, %v5468
        %v5470 = vrot.slane %v5469, 2
        %v5471 = vmax.f32 %v5469, %v5470
        %v5472 = vrot.slane %v5471, 1
        %v5473 = vmax.f32 %v5471, %v5472
        %v5474 = vsel %vm5424, %v5381, -inf
        %v5475 = vrot.slane %v5474, 4
        %v5476 = vmax.f32 %v5474, %v5475
        %v5477 = vrot.slane %v5476, 2
        %v5478 = vmax.f32 %v5476, %v5477
        %v5479 = vrot.slane %v5478, 1
        %v5480 = vmax.f32 %v5478, %v5479
        %v5481 = vsel %vm5424, %v5362, -inf
        %v5482 = vrot.slane %v5481, 4
        %v5483 = vmax.f32 %v5481, %v5482
        %v5484 = vrot.slane %v5483, 2
        %v5485 = vmax.f32 %v5483, %v5484
        %v5486 = vrot.slane %v5485, 1
        %v5487 = vmax.f32 %v5485, %v5486
        %v5488 = vsel %vm5424, %v5382, -inf
        %v5489 = vrot.slane %v5488, 4
        %v5490 = vmax.f32 %v5488, %v5489
        %v5491 = vrot.slane %v5490, 2
        %v5492 = vmax.f32 %v5490, %v5491
        %v5493 = vrot.slane %v5492, 1
        %v5494 = vmax.f32 %v5492, %v5493
        %v5495 = vsel %vm5424, %v5383, -inf
        %v5496 = vrot.slane %v5495, 4
        %v5497 = vmax.f32 %v5495, %v5496
        %v5498 = vrot.slane %v5497, 2
        %v5499 = vmax.f32 %v5497, %v5498
        %v5500 = vrot.slane %v5499, 1
        %v5501 = vmax.f32 %v5499, %v5500
        %v5502 = vsel %vm5424, %v5384, -inf
        %v5503 = vrot.slane %v5502, 4
        %v5504 = vmax.f32 %v5502, %v5503
        %v5505 = vrot.slane %v5504, 2
        %v5506 = vmax.f32 %v5504, %v5505
        %v5507 = vrot.slane %v5506, 1
        %v5508 = vmax.f32 %v5506, %v5507
        %v5509 = vsel %vm5424, %v5363, -inf
        %v5510 = vrot.slane %v5509, 4
        %v5511 = vmax.f32 %v5509, %v5510
        %v5512 = vrot.slane %v5511, 2
        %v5513 = vmax.f32 %v5511, %v5512
        %v5514 = vrot.slane %v5513, 1
        %v5515 = vmax.f32 %v5513, %v5514
        %v5516 = vsel %vm5424, %v5385, -inf
        %v5517 = vrot.slane %v5516, 4
        %v5518 = vmax.f32 %v5516, %v5517
        %v5519 = vrot.slane %v5518, 2
        %v5520 = vmax.f32 %v5518, %v5519
        %v5521 = vrot.slane %v5520, 1
        %v5522 = vmax.f32 %v5520, %v5521
        %v5523 = vsel %vm5424, %v5386, -inf
        %v5524 = vrot.slane %v5523, 4
        %v5525 = vmax.f32 %v5523, %v5524
        %v5526 = vrot.slane %v5525, 2
        %v5527 = vmax.f32 %v5525, %v5526
        %v5528 = vrot.slane %v5527, 1
        %v5529 = vmax.f32 %v5527, %v5528
        %v5530 = vsel %vm5424, %v5387, -inf
        %v5531 = vrot.slane %v5530, 4
        %v5532 = vmax.f32 %v5530, %v5531
        %v5533 = vrot.slane %v5532, 2
        %v5534 = vmax.f32 %v5532, %v5533
        %v5535 = vrot.slane %v5534, 1
        %v5536 = vmax.f32 %v5534, %v5535
        %v5537 = vsel %vm5424, %v5364, -inf
        %v5538 = vrot.slane %v5537, 4
        %v5539 = vmax.f32 %v5537, %v5538
        %v5540 = vrot.slane %v5539, 2
        %v5541 = vmax.f32 %v5539, %v5540
        %v5542 = vrot.slane %v5541, 1
        %v5543 = vmax.f32 %v5541, %v5542
        %v5544 = vsel %vm5424, %v5388, -inf
        %v5545 = vrot.slane %v5544, 4
        %v5546 = vmax.f32 %v5544, %v5545
        %v5547 = vrot.slane %v5546, 2
        %v5548 = vmax.f32 %v5546, %v5547
        %v5549 = vrot.slane %v5548, 1
        %v5550 = vmax.f32 %v5548, %v5549
        %v5551 = vsel %vm5424, %v5389, -inf
        %v5552 = vrot.slane %v5551, 4
        %v5553 = vmax.f32 %v5551, %v5552
        %v5554 = vrot.slane %v5553, 2
        %v5555 = vmax.f32 %v5553, %v5554
        %v5556 = vrot.slane %v5555, 1
        %v5557 = vmax.f32 %v5555, %v5556
        %v5558 = vsel %vm5424, %v5390, -inf
        %v5559 = vrot.slane %v5558, 4
        %v5560 = vmax.f32 %v5558, %v5559
        %v5561 = vrot.slane %v5560, 2
        %v5562 = vmax.f32 %v5560, %v5561
        %v5563 = vrot.slane %v5562, 1
        %v5564 = vmax.f32 %v5562, %v5563
        %v5565 = vsel %vm5424, %v5365, -inf
        %v5566 = vrot.slane %v5565, 4
        %v5567 = vmax.f32 %v5565, %v5566
        %v5568 = vrot.slane %v5567, 2
        %v5569 = vmax.f32 %v5567, %v5568
        %v5570 = vrot.slane %v5569, 1
        %v5571 = vmax.f32 %v5569, %v5570
        %v5572 = vsel %vm5424, %v5391, -inf
        %v5573 = vrot.slane %v5572, 4
        %v5574 = vmax.f32 %v5572, %v5573
        %v5575 = vrot.slane %v5574, 2
        %v5576 = vmax.f32 %v5574, %v5575
        %v5577 = vrot.slane %v5576, 1
        %v5578 = vmax.f32 %v5576, %v5577
        %v5579 = vsel %vm5424, %v5392, -inf
        %v5580 = vrot.slane %v5579, 4
        %v5581 = vmax.f32 %v5579, %v5580
        %v5582 = vrot.slane %v5581, 2
        %v5583 = vmax.f32 %v5581, %v5582
        %v5584 = vrot.slane %v5583, 1
        %v5585 = vmax.f32 %v5583, %v5584
        %v5586 = vsel %vm5424, %v5393, -inf
        %v5587 = vrot.slane %v5586, 4
        %v5588 = vmax.f32 %v5586, %v5587
        %v5589 = vrot.slane %v5588, 2
        %v5590 = vmax.f32 %v5588, %v5589
        %v5591 = vrot.slane %v5590, 1
        %v5592 = vmax.f32 %v5590, %v5591
        %v5593 = vsel %vm5424, %v5366, -inf
        %v5594 = vrot.slane %v5593, 4
        %v5595 = vmax.f32 %v5593, %v5594
        %v5596 = vrot.slane %v5595, 2
        %v5597 = vmax.f32 %v5595, %v5596
        %v5598 = vrot.slane %v5597, 1
        %v5599 = vmax.f32 %v5597, %v5598
        %v5600 = vsel %vm5424, %v5394, -inf
        %v5601 = vrot.slane %v5600, 4
        %v5602 = vmax.f32 %v5600, %v5601
        %v5603 = vrot.slane %v5602, 2
        %v5604 = vmax.f32 %v5602, %v5603
        %v5605 = vrot.slane %v5604, 1
        %v5606 = vmax.f32 %v5604, %v5605
        %v5607 = vsel %vm5424, %v5395, -inf
        %v5608 = vrot.slane %v5607, 4
        %v5609 = vmax.f32 %v5607, %v5608
        %v5610 = vrot.slane %v5609, 2
        %v5611 = vmax.f32 %v5609, %v5610
        %v5612 = vrot.slane %v5611, 1
        %v5613 = vmax.f32 %v5611, %v5612
        %v5614 = vsel %vm5424, %v5396, -inf
        %v5615 = vrot.slane %v5614, 4
        %v5616 = vmax.f32 %v5614, %v5615
        %v5617 = vrot.slane %v5616, 2
        %v5618 = vmax.f32 %v5616, %v5617
        %v5619 = vrot.slane %v5618, 1
        %v5620 = vmax.f32 %v5618, %v5619
        %v5621 = vsel %vm5424, %v5367, -inf
        %v5622 = vrot.slane %v5621, 4
        %v5623 = vmax.f32 %v5621, %v5622
        %v5624 = vrot.slane %v5623, 2
        %v5625 = vmax.f32 %v5623, %v5624
        %v5626 = vrot.slane %v5625, 1
        %v5627 = vmax.f32 %v5625, %v5626
        %v5628 = vsel %vm5424, %v5397, -inf
        %v5629 = vrot.slane %v5628, 4
        %v5630 = vmax.f32 %v5628, %v5629
        %v5631 = vrot.slane %v5630, 2
        %v5632 = vmax.f32 %v5630, %v5631
        %v5633 = vrot.slane %v5632, 1
        %v5634 = vmax.f32 %v5632, %v5633
        %v5635 = vsel %vm5424, %v5398, -inf
        %v5636 = vrot.slane %v5635, 4
        %v5637 = vmax.f32 %v5635, %v5636
        %v5638 = vrot.slane %v5637, 2
        %v5639 = vmax.f32 %v5637, %v5638
        %v5640 = vrot.slane %v5639, 1
        %v5641 = vmax.f32 %v5639, %v5640
        %v5642 = vsel %vm5424, %v5399, -inf
        %v5643 = vrot.slane %v5642, 4
        %v5644 = vmax.f32 %v5642, %v5643
        %v5645 = vrot.slane %v5644, 2
        %v5646 = vmax.f32 %v5644, %v5645
        %v5647 = vrot.slane %v5646, 1
        %v5648 = vmax.f32 %v5646, %v5647
        %vm5649 = vcmask 130048
        %v5650 = vsel %vm5649, %v5431, -inf
        %v5651 = vsel %vm5649, %v5459, -inf
        %v5652 = vmax.f32 %v5650, %v5651
        %v5653 = vsel %vm5649, %v5438, -inf
        %v5654 = vsel %vm5649, %v5466, -inf
        %v5655 = vmax.f32 %v5653, %v5654
        %v5656 = vsel %vm5649, %v5445, -inf
        %v5657 = vsel %vm5649, %v5473, -inf
        %v5658 = vmax.f32 %v5656, %v5657
        %v5659 = vsel %vm5649, %v5452, -inf
        %v5660 = vsel %vm5649, %v5480, -inf
        %v5661 = vmax.f32 %v5659, %v5660
        %v5662 = vsel %vm5649, %v5487, -inf
        %v5663 = vsel %vm5649, %v5515, -inf
        %v5664 = vmax.f32 %v5662, %v5663
        %v5665 = vsel %vm5649, %v5494, -inf
        %v5666 = vsel %vm5649, %v5522, -inf
        %v5667 = vmax.f32 %v5665, %v5666
        %v5668 = vsel %vm5649, %v5501, -inf
        %v5669 = vsel %vm5649, %v5529, -inf
        %v5670 = vmax.f32 %v5668, %v5669
        %v5671 = vsel %vm5649, %v5508, -inf
        %v5672 = vsel %vm5649, %v5536, -inf
        %v5673 = vmax.f32 %v5671, %v5672
        %v5674 = vsel %vm5649, %v5543, -inf
        %v5675 = vsel %vm5649, %v5571, -inf
        %v5676 = vmax.f32 %v5674, %v5675
        %v5677 = vsel %vm5649, %v5550, -inf
        %v5678 = vsel %vm5649, %v5578, -inf
        %v5679 = vmax.f32 %v5677, %v5678
        %v5680 = vsel %vm5649, %v5557, -inf
        %v5681 = vsel %vm5649, %v5585, -inf
        %v5682 = vmax.f32 %v5680, %v5681
        %v5683 = vsel %vm5649, %v5564, -inf
        %v5684 = vsel %vm5649, %v5592, -inf
        %v5685 = vmax.f32 %v5683, %v5684
        %v5686 = vsel %vm5649, %v5599, -inf
        %v5687 = vsel %vm5649, %v5627, -inf
        %v5688 = vmax.f32 %v5686, %v5687
        %v5689 = vsel %vm5649, %v5606, -inf
        %v5690 = vsel %vm5649, %v5634, -inf
        %v5691 = vmax.f32 %v5689, %v5690
        %v5692 = vsel %vm5649, %v5613, -inf
        %v5693 = vsel %vm5649, %v5641, -inf
        %v5694 = vmax.f32 %v5692, %v5693
        %v5695 = vsel %vm5649, %v5620, -inf
        %v5696 = vsel %vm5649, %v5648, -inf
        %v5697 = vmax.f32 %v5695, %v5696
        %5698 = vst.msk [vmem:[#allocation4] sm:$0xff] %vm5649, 0.0
        %v5715 = vsel %vm4488, %v5655, %v5652
        %v5716 = vsel %vm4490, %v5658, %v5715
        %v5717 = vsel %vm4492, %v5661, %v5716
        %v5718 = vsel %vm4494, %v5664, %v5717
        %v5719 = vsel %vm4496, %v5667, %v5718
        %v5720 = vsel %vm4498, %v5670, %v5719
        %v5721 = vsel %vm4500, %v5673, %v5720
        %v5722 = vsel %vm4488, %v5679, %v5676
        %v5723 = vsel %vm4490, %v5682, %v5722
        %v5724 = vsel %vm4492, %v5685, %v5723
        %v5725 = vsel %vm4494, %v5688, %v5724
        %v5726 = vsel %vm4496, %v5691, %v5725
        %v5727 = vsel %vm4498, %v5694, %v5726
        %v5728 = vsel %vm4500, %v5697, %v5727
        %5731 = vst.msk [vmem:[#allocation4 + $0x8] sm:$0xff] %vm5649, %v5721
        %5732 = vst.msk [vmem:[#allocation4 + $0x10] sm:$0xff] %vm5649, %v5728
        %5733 = vst.msk [vmem:[#allocation4 + $0x18] sm:$0xff] %vm5649, 0.0
        %v5734 = vld [vmem:[#allocation4 + $0x3] sm:$0xff]
        %v5735 = vld [vmem:[#allocation4 + $0xb] sm:$0xff]
        %v5738 = vrot.slane %v5734, 4
        %v5739 = vrot.slane %v5735, 4
        %v5742 = vsel %vm438, %v5734, 0.0
        %v5743 = vsel %vm438, %v5738, 0.0
        %v5744 = vsel %vm438, %v5735, 0.0
        %v5745 = vsel %vm438, %v5739, 0.0
        %v5746 = vld [vmem:[%s5] sm:$0xff]
        %v5747 = vld [vmem:[%s5 + $0x8] sm:$0xff]
        %v5748 = vld [vmem:[#allocation4 + $0x4] sm:$0xff]
        %v5749 = vld [vmem:[#allocation4 + $0xc] sm:$0xff]
        %s5750 = scalar_lea.vmem %s5, 16
        %v5751 = vld [vmem:[%s5750] sm:$0xff]
        %v5752 = vld [vmem:[%s5750 + $0x8] sm:$0xff]
        %v5754 = vsel %vm5649, %v5748, 0
        %v5757 = vsel %vm5649, %v5749, 0
        %5759 = vmatpush.msra.mxu0 0.0
        %5760 = vmatpush.msra.mxu0 0.0
        %5761 = vmatpush.msra.mxu0 0.0
        %5762 = vmatpush.msra.mxu0 0.0
        %5763 = vmatpush.msra.mxu0 0.0
        %5764 = vmatpush.msra.mxu0 0.0
        %5765 = vmatpush.msra.mxu0 0.0
        %5766 = vmatpush.msra.mxu0 0.0
        %5767 = vmatpush.msra.mxu0 0.0
        %5768 = vmatpush.msra.mxu0 0.0
        %5769 = vmatpush.msra.mxu0 0.0
        %5770 = vmatpush.msra.mxu0 0.0
        %5771 = vmatpush.msra.mxu0 0.0
        %5772 = vmatpush.msra.mxu0 0.0
        %5773 = vmatpush.msra.mxu0 %v5752
        %5774 = vmatpush.msra.mxu0 %v5751
        %5775 = vmatmul.f32.gmra.mxu0 %v5754
        %v5776 = vpop.f32.mrf.mxu0
        %v5777 = vadd.f32 0.0, %v5776
        %5778 = vmatmul.f32.gmra.mxu0 %v5757
        %v5779 = vpop.f32.mrf.mxu0
        %v5780 = vadd.f32 0.0, %v5779
        %5781 = vdwg.mxu0
        %5786 = vst [vmem:[#allocation1] ss:$2 sm:$0xff] %v5742
        %s5787 = scalar_lea.vmem [#allocation1], 1
        %5788 = vst [vmem:[%s5787] ss:$2 sm:$0xff] %v5743
        %s5789 = scalar_lea.vmem [#allocation1], 16
        %5790 = vst [vmem:[%s5789] ss:$2 sm:$0xff] %v5744
        %s5791 = scalar_lea.vmem [#allocation1], 17
        %5792 = vst [vmem:[%s5791] ss:$2 sm:$0xff] %v5745
        %v5793 = vld.sshfl [vmem:[#allocation1] sm:$0xff pattern:$0x75316420]
        %v5794 = vld.sshfl [vmem:[#allocation1 + $0x10] sm:$0xff pattern:$0x75316420]
        %v5795 = vsel %vm5649, %v5793, 0
        %v5797 = vsel %vm5649, %v5794, 0
        %5799 = vmatpush.msra.mxu0 0.0
        %5800 = vmatpush.msra.mxu0 0.0
        %5801 = vmatpush.msra.mxu0 0.0
        %5802 = vmatpush.msra.mxu0 0.0
        %5803 = vmatpush.msra.mxu0 0.0
        %5804 = vmatpush.msra.mxu0 0.0
        %5805 = vmatpush.msra.mxu0 0.0
        %5806 = vmatpush.msra.mxu0 0.0
        %5807 = vmatpush.msra.mxu0 0.0
        %5808 = vmatpush.msra.mxu0 0.0
        %5809 = vmatpush.msra.mxu0 0.0
        %5810 = vmatpush.msra.mxu0 0.0
        %5811 = vmatpush.msra.mxu0 0.0
        %5812 = vmatpush.msra.mxu0 0.0
        %5813 = vmatpush.msra.mxu0 %v5747
        %5814 = vmatpush.msra.mxu0 %v5746
        %5815 = vmatmul.f32.gmra.mxu0 %v5795
        %v5816 = vpop.f32.mrf.mxu0
        %v5817 = vadd.f32 %v5777, %v5816
        %5818 = vmatmul.f32.gmra.mxu0 %v5797
        %v5819 = vpop.f32.mrf.mxu0
        %v5820 = vadd.f32 %v5780, %v5819
        %5821 = vdwg.mxu0
        %v5822 = vld [vmem:[#allocation4 + $0x5] sm:$0xff]
        %v5823 = vld [vmem:[#allocation4 + $0xd] sm:$0xff]
        %vm5824 = vcmp.le.s32.totalorder %v404, 2
        %v5827 = vrot.slane %v5822, 4
        %v5828 = vrot.slane %v5823, 4
        %v5831 = vsel %vm5824, %v5822, 0.0
        %v5832 = vsel %vm5824, %v5827, 0.0
        %v5833 = vsel %vm5824, %v5823, 0.0
        %v5834 = vsel %vm5824, %v5828, 0.0
        %s5835 = scalar_lea.vmem %s5, 32
        %v5836 = vld [vmem:[%s5835] sm:$0xff]
        %v5837 = vld [vmem:[%s5835 + $0x8] sm:$0xff]
        %5842 = vst [vmem:[#allocation1] ss:$2 sm:$0xff] %v5831
        %s5843 = scalar_lea.vmem [#allocation1], 1
        %5844 = vst [vmem:[%s5843] ss:$2 sm:$0xff] %v5832
        %s5845 = scalar_lea.vmem [#allocation1], 16
        %5846 = vst [vmem:[%s5845] ss:$2 sm:$0xff] %v5833
        %s5847 = scalar_lea.vmem [#allocation1], 17
        %5848 = vst [vmem:[%s5847] ss:$2 sm:$0xff] %v5834
        %v5849 = vld.sshfl [vmem:[#allocation1] sm:$0xff pattern:$0x75316420]
        %v5850 = vld.sshfl [vmem:[#allocation1 + $0x10] sm:$0xff pattern:$0x75316420]
        %v5851 = vsel %vm5649, %v5849, 0
        %v5853 = vsel %vm5649, %v5850, 0
        %5855 = vmatpush.msra.mxu0 0.0
        %5856 = vmatpush.msra.mxu0 0.0
        %5857 = vmatpush.msra.mxu0 0.0
        %5858 = vmatpush.msra.mxu0 0.0
        %5859 = vmatpush.msra.mxu0 0.0
        %5860 = vmatpush.msra.mxu0 0.0
        %5861 = vmatpush.msra.mxu0 0.0
        %5862 = vmatpush.msra.mxu0 0.0
        %5863 = vmatpush.msra.mxu0 0.0
        %5864 = vmatpush.msra.mxu0 0.0
        %5865 = vmatpush.msra.mxu0 0.0
        %5866 = vmatpush.msra.mxu0 0.0
        %5867 = vmatpush.msra.mxu0 0.0
        %5868 = vmatpush.msra.mxu0 0.0
        %5869 = vmatpush.msra.mxu0 %v5837
        %5870 = vmatpush.msra.mxu0 %v5836
        %5871 = vmatmul.f32.gmra.mxu0 %v5851
        %v5872 = vpop.f32.mrf.mxu0
        %v5873 = vadd.f32 0.0, %v5872
        %5874 = vmatmul.f32.gmra.mxu0 %v5853
        %v5875 = vpop.f32.mrf.mxu0
        %v5876 = vadd.f32 0.0, %v5875
        %5877 = vdwg.mxu0
        %v5878 = vadd.f32 %v5817, %v5873
        %v5879 = vadd.f32 %v5820, %v5876
        %v5880 = vld [vmem:[#allocation4 + $0x7] sm:$0xff]
        %v5881 = vld [vmem:[#allocation4 + $0xf] sm:$0xff]
        %v5884 = vrot.slane %v5880, 4
        %v5885 = vrot.slane %v5881, 4
        %v5888 = vsel %vm438, %v5880, 0.0
        %v5889 = vsel %vm438, %v5884, 0.0
        %v5890 = vsel %vm438, %v5881, 0.0
        %v5891 = vsel %vm438, %v5885, 0.0
        %s5892 = scalar_lea.vmem %s5, 48
        %v5893 = vld [vmem:[%s5892] sm:$0xff]
        %v5894 = vld [vmem:[%s5892 + $0x8] sm:$0xff]
        %5899 = vst [vmem:[#allocation1] ss:$2 sm:$0xff] %v5888
        %s5900 = scalar_lea.vmem [#allocation1], 1
        %5901 = vst [vmem:[%s5900] ss:$2 sm:$0xff] %v5889
        %s5902 = scalar_lea.vmem [#allocation1], 16
        %5903 = vst [vmem:[%s5902] ss:$2 sm:$0xff] %v5890
        %s5904 = scalar_lea.vmem [#allocation1], 17
        %5905 = vst [vmem:[%s5904] ss:$2 sm:$0xff] %v5891
        %v5906 = vld.sshfl [vmem:[#allocation1] sm:$0xff pattern:$0x75316420]
        %v5907 = vld.sshfl [vmem:[#allocation1 + $0x10] sm:$0xff pattern:$0x75316420]
        %v5908 = vsel %vm5649, %v5906, 0
        %v5910 = vsel %vm5649, %v5907, 0
        %5912 = vmatpush.msra.mxu0 0.0
        %5913 = vmatpush.msra.mxu0 0.0
        %5914 = vmatpush.msra.mxu0 0.0
        %5915 = vmatpush.msra.mxu0 0.0
        %5916 = vmatpush.msra.mxu0 0.0
        %5917 = vmatpush.msra.mxu0 0.0
        %5918 = vmatpush.msra.mxu0 0.0
        %5919 = vmatpush.msra.mxu0 0.0
        %5920 = vmatpush.msra.mxu0 0.0
        %5921 = vmatpush.msra.mxu0 0.0
        %5922 = vmatpush.msra.mxu0 0.0
        %5923 = vmatpush.msra.mxu0 0.0
        %5924 = vmatpush.msra.mxu0 0.0
        %5925 = vmatpush.msra.mxu0 0.0
        %5926 = vmatpush.msra.mxu0 %v5894
        %5927 = vmatpush.msra.mxu0 %v5893
        %5928 = vmatmul.f32.gmra.mxu0 %v5908
        %v5929 = vpop.f32.mrf.mxu0
        %v5930 = vadd.f32 0.0, %v5929
        %5931 = vmatmul.f32.gmra.mxu0 %v5910
        %v5932 = vpop.f32.mrf.mxu0
        %v5933 = vadd.f32 0.0, %v5932
        %5934 = vdwg.mxu0
        %v5935 = vadd.f32 %v5878, %v5930
        %v5936 = vadd.f32 %v5879, %v5933
        %v5937 = vld [vmem:[#allocation4 + $0x8] sm:$0xff]
        %v5938 = vld [vmem:[#allocation4 + $0x10] sm:$0xff]
        %s5939 = scalar_lea.vmem %s5, 64
        %v5940 = vld [vmem:[%s5939] sm:$0xff]
        %v5941 = vld [vmem:[%s5939 + $0x8] sm:$0xff]
        %v5943 = vsel %vm5649, %v5937, 0
        %v5946 = vsel %vm5649, %v5938, 0
        %5948 = vmatpush.msra.mxu0 0.0
        %5949 = vmatpush.msra.mxu0 0.0
        %5950 = vmatpush.msra.mxu0 0.0
        %5951 = vmatpush.msra.mxu0 0.0
        %5952 = vmatpush.msra.mxu0 0.0
        %5953 = vmatpush.msra.mxu0 0.0
        %5954 = vmatpush.msra.mxu0 0.0
        %5955 = vmatpush.msra.mxu0 0.0
        %5956 = vmatpush.msra.mxu0 0.0
        %5957 = vmatpush.msra.mxu0 0.0
        %5958 = vmatpush.msra.mxu0 0.0
        %5959 = vmatpush.msra.mxu0 0.0
        %5960 = vmatpush.msra.mxu0 0.0
        %5961 = vmatpush.msra.mxu0 0.0
        %5962 = vmatpush.msra.mxu0 %v5941
        %5963 = vmatpush.msra.mxu0 %v5940
        %5964 = vmatmul.f32.gmra.mxu0 %v5943
        %v5965 = vpop.f32.mrf.mxu0
        %v5966 = vadd.f32 0.0, %v5965
        %5967 = vmatmul.f32.gmra.mxu0 %v5946
        %v5968 = vpop.f32.mrf.mxu0
        %v5969 = vadd.f32 0.0, %v5968
        %5970 = vdwg.mxu0
        %v5971 = vadd.f32 %v5935, %v5966
        %v5972 = vadd.f32 %v5936, %v5969
        %v5973 = vld [vmem:[#allocation4 + $0x9] sm:$0xff]
        %v5974 = vld [vmem:[#allocation4 + $0x11] sm:$0xff]
        %v5977 = vrot.slane %v5973, 4
        %v5978 = vrot.slane %v5974, 4
        %v5981 = vsel %vm5824, %v5973, 0.0
        %v5982 = vsel %vm5824, %v5977, 0.0
        %v5983 = vsel %vm5824, %v5974, 0.0
        %v5984 = vsel %vm5824, %v5978, 0.0
        %s5985 = scalar_lea.vmem %s5, 80
        %v5986 = vld [vmem:[%s5985] sm:$0xff]
        %v5987 = vld [vmem:[%s5985 + $0x8] sm:$0xff]
        %5992 = vst [vmem:[#allocation1] ss:$2 sm:$0xff] %v5981
        %s5993 = scalar_lea.vmem [#allocation1], 1
        %5994 = vst [vmem:[%s5993] ss:$2 sm:$0xff] %v5982
        %s5995 = scalar_lea.vmem [#allocation1], 16
        %5996 = vst [vmem:[%s5995] ss:$2 sm:$0xff] %v5983
        %s5997 = scalar_lea.vmem [#allocation1], 17
        %5998 = vst [vmem:[%s5997] ss:$2 sm:$0xff] %v5984
        %v5999 = vld.sshfl [vmem:[#allocation1] sm:$0xff pattern:$0x75316420]
        %v6000 = vld.sshfl [vmem:[#allocation1 + $0x10] sm:$0xff pattern:$0x75316420]
        %v6001 = vsel %vm5649, %v5999, 0
        %v6003 = vsel %vm5649, %v6000, 0
        %6005 = vmatpush.msra.mxu0 0.0
        %6006 = vmatpush.msra.mxu0 0.0
        %6007 = vmatpush.msra.mxu0 0.0
        %6008 = vmatpush.msra.mxu0 0.0
        %6009 = vmatpush.msra.mxu0 0.0
        %6010 = vmatpush.msra.mxu0 0.0
        %6011 = vmatpush.msra.mxu0 0.0
        %6012 = vmatpush.msra.mxu0 0.0
        %6013 = vmatpush.msra.mxu0 0.0
        %6014 = vmatpush.msra.mxu0 0.0
        %6015 = vmatpush.msra.mxu0 0.0
        %6016 = vmatpush.msra.mxu0 0.0
        %6017 = vmatpush.msra.mxu0 0.0
        %6018 = vmatpush.msra.mxu0 0.0
        %6019 = vmatpush.msra.mxu0 %v5987
        %6020 = vmatpush.msra.mxu0 %v5986
        %6021 = vmatmul.f32.gmra.mxu0 %v6001
        %v6022 = vpop.f32.mrf.mxu0
        %v6023 = vadd.f32 0.0, %v6022
        %6024 = vmatmul.f32.gmra.mxu0 %v6003
        %v6025 = vpop.f32.mrf.mxu0
        %v6026 = vadd.f32 0.0, %v6025
        %6027 = vdwg.mxu0
        %v6028 = vadd.f32 %v5971, %v6023
        %v6029 = vadd.f32 %v5972, %v6026
        %v6030 = vld [vmem:[#allocation4 + $0xb] sm:$0xff]
        %v6031 = vld [vmem:[#allocation4 + $0x13] sm:$0xff]
        %v6034 = vrot.slane %v6030, 4
        %v6035 = vrot.slane %v6031, 4
        %v6038 = vsel %vm438, %v6030, 0.0
        %v6039 = vsel %vm438, %v6034, 0.0
        %v6040 = vsel %vm438, %v6031, 0.0
        %v6041 = vsel %vm438, %v6035, 0.0
        %s6042 = scalar_lea.vmem %s5, 96
        %v6043 = vld [vmem:[%s6042] sm:$0xff]
        %v6044 = vld [vmem:[%s6042 + $0x8] sm:$0xff]
        %6049 = vst [vmem:[#allocation1] ss:$2 sm:$0xff] %v6038
        %s6050 = scalar_lea.vmem [#allocation1], 1
        %6051 = vst [vmem:[%s6050] ss:$2 sm:$0xff] %v6039
        %s6052 = scalar_lea.vmem [#allocation1], 16
        %6053 = vst [vmem:[%s6052] ss:$2 sm:$0xff] %v6040
        %s6054 = scalar_lea.vmem [#allocation1], 17
        %6055 = vst [vmem:[%s6054] ss:$2 sm:$0xff] %v6041
        %v6056 = vld.sshfl [vmem:[#allocation1] sm:$0xff pattern:$0x75316420]
        %v6057 = vld.sshfl [vmem:[#allocation1 + $0x10] sm:$0xff pattern:$0x75316420]
        %v6058 = vsel %vm5649, %v6056, 0
        %v6060 = vsel %vm5649, %v6057, 0
        %6062 = vmatpush.msra.mxu0 0.0
        %6063 = vmatpush.msra.mxu0 0.0
        %6064 = vmatpush.msra.mxu0 0.0
        %6065 = vmatpush.msra.mxu0 0.0
        %6066 = vmatpush.msra.mxu0 0.0
        %6067 = vmatpush.msra.mxu0 0.0
        %6068 = vmatpush.msra.mxu0 0.0
        %6069 = vmatpush.msra.mxu0 0.0
        %6070 = vmatpush.msra.mxu0 0.0
        %6071 = vmatpush.msra.mxu0 0.0
        %6072 = vmatpush.msra.mxu0 0.0
        %6073 = vmatpush.msra.mxu0 0.0
        %6074 = vmatpush.msra.mxu0 0.0
        %6075 = vmatpush.msra.mxu0 0.0
        %6076 = vmatpush.msra.mxu0 %v6044
        %6077 = vmatpush.msra.mxu0 %v6043
        %6078 = vmatmul.f32.gmra.mxu0 %v6058
        %v6079 = vpop.f32.mrf.mxu0
        %v6080 = vadd.f32 0.0, %v6079
        %6081 = vmatmul.f32.gmra.mxu0 %v6060
        %v6082 = vpop.f32.mrf.mxu0
        %v6083 = vadd.f32 0.0, %v6082
        %6084 = vdwg.mxu0
        %v6085 = vadd.f32 %v6028, %v6080
        %v6086 = vadd.f32 %v6029, %v6083
        %v6087 = vld [vmem:[#allocation4 + $0xc] sm:$0xff]
        %v6088 = vld [vmem:[#allocation4 + $0x14] sm:$0xff]
        %s6089 = scalar_lea.vmem %s5, 112
        %v6090 = vld [vmem:[%s6089] sm:$0xff]
        %v6091 = vld [vmem:[%s6089 + $0x8] sm:$0xff]
        %v6093 = vsel %vm5649, %v6087, 0
        %v6096 = vsel %vm5649, %v6088, 0
        %6098 = vmatpush.msra.mxu0 0.0
        %6099 = vmatpush.msra.mxu0 0.0
        %6100 = vmatpush.msra.mxu0 0.0
        %6101 = vmatpush.msra.mxu0 0.0
        %6102 = vmatpush.msra.mxu0 0.0
        %6103 = vmatpush.msra.mxu0 0.0
        %6104 = vmatpush.msra.mxu0 0.0
        %6105 = vmatpush.msra.mxu0 0.0
        %6106 = vmatpush.msra.mxu0 0.0
        %6107 = vmatpush.msra.mxu0 0.0
        %6108 = vmatpush.msra.mxu0 0.0
        %6109 = vmatpush.msra.mxu0 0.0
        %6110 = vmatpush.msra.mxu0 0.0
        %6111 = vmatpush.msra.mxu0 0.0
        %6112 = vmatpush.msra.mxu0 %v6091
        %6113 = vmatpush.msra.mxu0 %v6090
        %6114 = vmatmul.f32.gmra.mxu0 %v6093
        %v6115 = vpop.f32.mrf.mxu0
        %v6116 = vadd.f32 0.0, %v6115
        %6117 = vmatmul.f32.gmra.mxu0 %v6096
        %v6118 = vpop.f32.mrf.mxu0
        %v6119 = vadd.f32 0.0, %v6118
        %6120 = vdwg.mxu0
        %v6121 = vadd.f32 %v6085, %v6116
        %v6122 = vadd.f32 %v6086, %v6119
        %v6123 = vld [vmem:[#allocation4 + $0xd] sm:$0xff]
        %v6124 = vld [vmem:[#allocation4 + $0x15] sm:$0xff]
        %v6127 = vrot.slane %v6123, 4
        %v6128 = vrot.slane %v6124, 4
        %v6131 = vsel %vm5824, %v6123, 0.0
        %v6132 = vsel %vm5824, %v6127, 0.0
        %v6133 = vsel %vm5824, %v6124, 0.0
        %v6134 = vsel %vm5824, %v6128, 0.0
        %s6135 = scalar_lea.vmem %s5, 128
        %v6136 = vld [vmem:[%s6135] sm:$0xff]
        %v6137 = vld [vmem:[%s6135 + $0x8] sm:$0xff]
        %6142 = vst [vmem:[#allocation1] ss:$2 sm:$0xff] %v6131
        %s6143 = scalar_lea.vmem [#allocation1], 1
        %6144 = vst [vmem:[%s6143] ss:$2 sm:$0xff] %v6132
        %s6145 = scalar_lea.vmem [#allocation1], 16
        %6146 = vst [vmem:[%s6145] ss:$2 sm:$0xff] %v6133
        %s6147 = scalar_lea.vmem [#allocation1], 17
        %6148 = vst [vmem:[%s6147] ss:$2 sm:$0xff] %v6134
        %v6149 = vld.sshfl [vmem:[#allocation1] sm:$0xff pattern:$0x75316420]
        %v6150 = vld.sshfl [vmem:[#allocation1 + $0x10] sm:$0xff pattern:$0x75316420]
        %v6151 = vsel %vm5649, %v6149, 0
        %v6153 = vsel %vm5649, %v6150, 0
        %6155 = vmatpush.msra.mxu0 0.0
        %6156 = vmatpush.msra.mxu0 0.0
        %6157 = vmatpush.msra.mxu0 0.0
        %6158 = vmatpush.msra.mxu0 0.0
        %6159 = vmatpush.msra.mxu0 0.0
        %6160 = vmatpush.msra.mxu0 0.0
        %6161 = vmatpush.msra.mxu0 0.0
        %6162 = vmatpush.msra.mxu0 0.0
        %6163 = vmatpush.msra.mxu0 0.0
        %6164 = vmatpush.msra.mxu0 0.0
        %6165 = vmatpush.msra.mxu0 0.0
        %6166 = vmatpush.msra.mxu0 0.0
        %6167 = vmatpush.msra.mxu0 0.0
        %6168 = vmatpush.msra.mxu0 0.0
        %6169 = vmatpush.msra.mxu0 %v6137
        %6170 = vmatpush.msra.mxu0 %v6136
        %6171 = vmatmul.f32.gmra.mxu0 %v6151
        %v6172 = vpop.f32.mrf.mxu0
        %v6173 = vadd.f32 0.0, %v6172
        %6174 = vmatmul.f32.gmra.mxu0 %v6153
        %v6175 = vpop.f32.mrf.mxu0
        %v6176 = vadd.f32 0.0, %v6175
        %6177 = vdwg.mxu0
        %v6178 = vadd.f32 %v6121, %v6173
        %v6179 = vadd.f32 %v6122, %v6176
        %v6180 = vld [vmem:[%s6] sm:$0x1]
        %v6182 = vperm.slane %v6180, 0
        %v6184 = vadd.f32 %v6178, %v6182
        %v6185 = vadd.f32 %v6179, %v6182
        %v6186 = vmax.f32 %v6184, 0.0
        %v6187 = vmax.f32 %v6185, 0.0
        %v6190 = vrot.slane %v6186, 2
        %v6191 = vrot.slane %v6186, 4
        %v6192 = vrot.slane %v6186, 6
        %v6193 = vrot.slane %v6187, 2
        %v6194 = vrot.slane %v6187, 4
        %v6195 = vrot.slane %v6187, 6
        %vm6202 = vcmask 254976
        %v6203 = vsel %vm6202, %v6186, -inf
        %v6204 = vrot.slane %v6203, 4
        %v6205 = vmax.f32 %v6203, %v6204
        %v6206 = vrot.slane %v6205, 2
        %v6207 = vmax.f32 %v6205, %v6206
        %v6208 = vrot.slane %v6207, 1
        %v6209 = vmax.f32 %v6207, %v6208
        %v6210 = vsel %vm6202, %v6190, -inf
        %v6211 = vrot.slane %v6210, 4
        %v6212 = vmax.f32 %v6210, %v6211
        %v6213 = vrot.slane %v6212, 2
        %v6214 = vmax.f32 %v6212, %v6213
        %v6215 = vrot.slane %v6214, 1
        %v6216 = vmax.f32 %v6214, %v6215
        %v6217 = vsel %vm6202, %v6191, -inf
        %v6218 = vrot.slane %v6217, 4
        %v6219 = vmax.f32 %v6217, %v6218
        %v6220 = vrot.slane %v6219, 2
        %v6221 = vmax.f32 %v6219, %v6220
        %v6222 = vrot.slane %v6221, 1
        %v6223 = vmax.f32 %v6221, %v6222
        %v6224 = vsel %vm6202, %v6192, -inf
        %v6225 = vrot.slane %v6224, 4
        %v6226 = vmax.f32 %v6224, %v6225
        %v6227 = vrot.slane %v6226, 2
        %v6228 = vmax.f32 %v6226, %v6227
        %v6229 = vrot.slane %v6228, 1
        %v6230 = vmax.f32 %v6228, %v6229
        %v6231 = vsel %vm6202, %v6187, -inf
        %v6232 = vrot.slane %v6231, 4
        %v6233 = vmax.f32 %v6231, %v6232
        %v6234 = vrot.slane %v6233, 2
        %v6235 = vmax.f32 %v6233, %v6234
        %v6236 = vrot.slane %v6235, 1
        %v6237 = vmax.f32 %v6235, %v6236
        %v6238 = vsel %vm6202, %v6193, -inf
        %v6239 = vrot.slane %v6238, 4
        %v6240 = vmax.f32 %v6238, %v6239
        %v6241 = vrot.slane %v6240, 2
        %v6242 = vmax.f32 %v6240, %v6241
        %v6243 = vrot.slane %v6242, 1
        %v6244 = vmax.f32 %v6242, %v6243
        %v6245 = vsel %vm6202, %v6194, -inf
        %v6246 = vrot.slane %v6245, 4
        %v6247 = vmax.f32 %v6245, %v6246
        %v6248 = vrot.slane %v6247, 2
        %v6249 = vmax.f32 %v6247, %v6248
        %v6250 = vrot.slane %v6249, 1
        %v6251 = vmax.f32 %v6249, %v6250
        %v6252 = vsel %vm6202, %v6195, -inf
        %v6253 = vrot.slane %v6252, 4
        %v6254 = vmax.f32 %v6252, %v6253
        %v6255 = vrot.slane %v6254, 2
        %v6256 = vmax.f32 %v6254, %v6255
        %v6257 = vrot.slane %v6256, 1
        %v6258 = vmax.f32 %v6256, %v6257
        %vm6259 = vcmask 261120
        %v6260 = vsel %vm6259, %v6209, -inf
        %v6261 = vsel %vm6259, %v6223, -inf
        %v6262 = vmax.f32 %v6260, %v6261
        %v6263 = vsel %vm6259, %v6216, -inf
        %v6264 = vsel %vm6259, %v6230, -inf
        %v6265 = vmax.f32 %v6263, %v6264
        %v6266 = vsel %vm6259, %v6237, -inf
        %v6267 = vsel %vm6259, %v6251, -inf
        %v6268 = vmax.f32 %v6266, %v6267
        %v6269 = vsel %vm6259, %v6244, -inf
        %v6270 = vsel %vm6259, %v6258, -inf
        %v6271 = vmax.f32 %v6269, %v6270
        %v6272 = vld [vmem:[%s8] sm:$0x1]
        %v6273 = vld [vmem:[%s7] sm:$0xff]
        %v6274 = vld [vmem:[%s7 + $0x8] sm:$0xff]
        %v6275 = vld [vmem:[%s7 + $0x10] sm:$0xff]
        %v6276 = vld [vmem:[%s7 + $0x18] sm:$0xff]
        %v6278 = vsel %vm6259, %v6262, 0
        %6280 = vmatpush.msra.mxu0 0.0
        %6281 = vmatpush.msra.mxu0 0.0
        %6282 = vmatpush.msra.mxu0 0.0
        %6283 = vmatpush.msra.mxu0 0.0
        %6284 = vmatpush.msra.mxu0 0.0
        %6285 = vmatpush.msra.mxu0 0.0
        %6286 = vmatpush.msra.mxu0 0.0
        %6287 = vmatpush.msra.mxu0 0.0
        %6288 = vmatpush.msra.mxu0 0.0
        %6289 = vmatpush.msra.mxu0 0.0
        %6290 = vmatpush.msra.mxu0 0.0
        %6291 = vmatpush.msra.mxu0 0.0
        %6292 = vmatpush.msra.mxu0 %v6276
        %6293 = vmatpush.msra.mxu0 %v6275
        %6294 = vmatpush.msra.mxu0 %v6274
        %6295 = vmatpush.msra.mxu0 %v6273
        %6296 = vmatmul.f32.gmra.mxu0 %v6278
        %v6297 = vpop.f32.mrf.mxu0
        %v6298 = vadd.f32 0.0, %v6297
        %6299 = vdwg.mxu0
        %v6300 = vadd.f32 %v6272, %v6298
        %s6301 = scalar_lea.vmem %s7, 32
        %v6302 = vld [vmem:[%s6301] sm:$0xff]
        %v6303 = vld [vmem:[%s6301 + $0x8] sm:$0xff]
        %v6304 = vld [vmem:[%s6301 + $0x10] sm:$0xff]
        %v6305 = vld [vmem:[%s6301 + $0x18] sm:$0xff]
        %v6307 = vsel %vm6259, %v6265, 0
        %6309 = vmatpush.msra.mxu0 0.0
        %6310 = vmatpush.msra.mxu0 0.0
        %6311 = vmatpush.msra.mxu0 0.0
        %6312 = vmatpush.msra.mxu0 0.0
        %6313 = vmatpush.msra.mxu0 0.0
        %6314 = vmatpush.msra.mxu0 0.0
        %6315 = vmatpush.msra.mxu0 0.0
        %6316 = vmatpush.msra.mxu0 0.0
        %6317 = vmatpush.msra.mxu0 0.0
        %6318 = vmatpush.msra.mxu0 0.0
        %6319 = vmatpush.msra.mxu0 0.0
        %6320 = vmatpush.msra.mxu0 0.0
        %6321 = vmatpush.msra.mxu0 %v6305
        %6322 = vmatpush.msra.mxu0 %v6304
        %6323 = vmatpush.msra.mxu0 %v6303
        %6324 = vmatpush.msra.mxu0 %v6302
        %6325 = vmatmul.f32.gmra.mxu0 %v6307
        %v6326 = vpop.f32.mrf.mxu0
        %v6327 = vadd.f32 0.0, %v6326
        %6328 = vdwg.mxu0
        %v6329 = vadd.f32 %v6300, %v6327
        %s6330 = scalar_lea.vmem %s7, 64
        %v6331 = vld [vmem:[%s6330] sm:$0xff]
        %v6332 = vld [vmem:[%s6330 + $0x8] sm:$0xff]
        %v6333 = vld [vmem:[%s6330 + $0x10] sm:$0xff]
        %v6334 = vld [vmem:[%s6330 + $0x18] sm:$0xff]
        %v6336 = vsel %vm6259, %v6268, 0
        %6338 = vmatpush.msra.mxu0 0.0
        %6339 = vmatpush.msra.mxu0 0.0
        %6340 = vmatpush.msra.mxu0 0.0
        %6341 = vmatpush.msra.mxu0 0.0
        %6342 = vmatpush.msra.mxu0 0.0
        %6343 = vmatpush.msra.mxu0 0.0
        %6344 = vmatpush.msra.mxu0 0.0
        %6345 = vmatpush.msra.mxu0 0.0
        %6346 = vmatpush.msra.mxu0 0.0
        %6347 = vmatpush.msra.mxu0 0.0
        %6348 = vmatpush.msra.mxu0 0.0
        %6349 = vmatpush.msra.mxu0 0.0
        %6350 = vmatpush.msra.mxu0 %v6334
        %6351 = vmatpush.msra.mxu0 %v6333
        %6352 = vmatpush.msra.mxu0 %v6332
        %6353 = vmatpush.msra.mxu0 %v6331
        %6354 = vmatmul.f32.gmra.mxu0 %v6336
        %v6355 = vpop.f32.mrf.mxu0
        %v6356 = vadd.f32 0.0, %v6355
        %6357 = vdwg.mxu0
        %v6358 = vadd.f32 %v6329, %v6356
        %s6359 = scalar_lea.vmem %s7, 96
        %v6360 = vld [vmem:[%s6359] sm:$0xff]
        %v6361 = vld [vmem:[%s6359 + $0x8] sm:$0xff]
        %v6362 = vld [vmem:[%s6359 + $0x10] sm:$0xff]
        %v6363 = vld [vmem:[%s6359 + $0x18] sm:$0xff]
        %v6365 = vsel %vm6259, %v6271, 0
        %6367 = vmatpush.msra.mxu0 0.0
        %6368 = vmatpush.msra.mxu0 0.0
        %6369 = vmatpush.msra.mxu0 0.0
        %6370 = vmatpush.msra.mxu0 0.0
        %6371 = vmatpush.msra.mxu0 0.0
        %6372 = vmatpush.msra.mxu0 0.0
        %6373 = vmatpush.msra.mxu0 0.0
        %6374 = vmatpush.msra.mxu0 0.0
        %6375 = vmatpush.msra.mxu0 0.0
        %6376 = vmatpush.msra.mxu0 0.0
        %6377 = vmatpush.msra.mxu0 0.0
        %6378 = vmatpush.msra.mxu0 0.0
        %6379 = vmatpush.msra.mxu0 %v6363
        %6380 = vmatpush.msra.mxu0 %v6362
        %6381 = vmatpush.msra.mxu0 %v6361
        %6382 = vmatpush.msra.mxu0 %v6360
        %6383 = vmatmul.f32.gmra.mxu0 %v6365
        %v6384 = vpop.f32.mrf.mxu0
        %v6385 = vadd.f32 0.0, %v6384
        %6386 = vdwg.mxu0
        %v6387 = vadd.f32 %v6358, %v6385
        %vm6388 = vcmask 73728
        %6389 = vst.msk [vmem:[%s324] sm:$0x1] %vm6388, %v6387
        %s6390 = sand.u32 %s225, 1
        %s6391 = scalar_lea.sflag [#allocation6], %s6390
        %s6392 = sand.u32 %s225, 1
        %s6393 = scalar_lea.vmem [#allocation5], %s6392
        // Predicated region
        $region57: #{network_classification_forward.1} parent=55 // pred_check
          %p6394 = pneg %p235
        $region58: #{network_classification_forward.1} parent=55 // pred_check_branch
          %6396 = sbr.rel (%p6394) target = $region60
        $region59: #{network_classification_forward.1} parent=55 // pred_region
          %6398 = vsyncadd %s6391, 0
          %s6399 = scalar_lea.hbm %s9, %s23
          %s6401 = sshll.u32 %s6393, 4
          %s6402 = int_to_ptr.vmem [resolvable:$true] %s6401
          %s6403 = sshll.u32 %s6399, 4
          %s6404 = int_to_ptr.hbm [resolvable:$true] %s6403
          %6406 = dma.vmem_to_hbm [thread:$0]  %s6402, 16, %s6404, %s6391
        $region60: #{network_classification_forward.1} parent=55 // pred_fallthru
          _
      $region56: #{network_classification_forward.1} parent=5 // pred_fallthru
        _
      %p6407 = scmp.le.s32.totalorder 2, %s18
      // Predicated region
      $region61: #{network_classification_forward.1} parent=5 // pred_check
        %p6408 = pneg %p6407
      $region62: #{network_classification_forward.1} parent=5 // pred_check_branch
        %6410 = sbr.rel (%p6408) target = $region64
      $region63: #{network_classification_forward.1} parent=5 // pred_region
        %s6411 = ssub.s32 %s18, 2
        // Predicated region
        $region65: #{network_classification_forward.1} parent=63 // pred_check
          %p6412 = pneg %p241
        $region66: #{network_classification_forward.1} parent=63 // pred_check_branch
          %6414 = sbr.rel (%p6412) target = $region68
        $region67: #{network_classification_forward.1} parent=63 // pred_region
          %s6415 = sand.u32 %s226, 1
          %s6416 = scalar_lea.sflag [#allocation6], %s6415
          %s6417 = sand.u32 %s226, 1
          %s6418 = scalar_lea.vmem [#allocation5], %s6417
          %6420 = dma.done %s6416, 16
        $region68: #{network_classification_forward.1} parent=63 // pred_fallthru
          _
      $region64: #{network_classification_forward.1} parent=5 // pred_fallthru
        _
    $region6: #{network_classification_forward.1} parent=1 // loop_footer
      %s22 = sadd.s32 1, %s18
    $region7: #{network_classification_forward.1} parent=1 // loop_footer_branch
      %17 = sbr.rel target = $region3
    $region8: #{network_classification_forward.1} parent=1 // loop_exit
      _
    %6421 = vsyncpa [#allocation6], 1
    %s6422 = scalar_lea.sflag [#allocation6], 1
    %6423 = vsyncpa %s6422, 1

</llo_original>
